<compile_context>
chip_gen: v5e
topology: v5e:2x2
jax: 0.10.0
libtpu: 0.0.40
codegen_flags: <defaults>
</compile_context>

<pallas_src>
import functools

import jax
import jax.numpy as jnp
from jax.experimental import pallas as pl
from jax.experimental.pallas import tpu as pltpu

# Logical (PyTorch) dims
EMB = 300     # embedding_dim
H1 = 400      # linear1 out
H2 = 300      # linear2 out
OUT = 2       # linear3 out

# Lane-aligned (multiple-of-128) dims used inside the kernel
EMB_P = 384
X_P = 2 * EMB_P   # concatenated [ctx_sum | tgt] width = 768
H1_P = 512
H2_P = 384
OUT_P = 128

NEG_BIG = -1e30   # bias for padded logit lanes -> exp() underflows to 0


def _round_up(x, m):
    return (x + m - 1) // m * m


def _choose_tile(batch, block_b):
    """Batch tile: mult of 16 always; mult of 128 and >=4 grid steps when tiled."""
    b16 = _round_up(batch, 16)
    if b16 <= 256:
        return b16                                   # single tile, sublane-aligned
    tm = _round_up(max(128, b16 // 4), 128)          # >= 4 steps (>= 2 per TC on v7x)
    return max(128, min(tm, _round_up(block_b, 128)))


def w2v_kernel(x_ref, w1_ref, b1_ref, w2_ref, b2_ref, w3_ref, b3_ref, o_ref):
    # linear1 on the concatenated [ctx_sum | tgt] slab (single MXU dot).
    h = (jnp.dot(x_ref[...], w1_ref[...], preferred_element_type=jnp.float32)
         + b1_ref[...])                                              # (TM, H1_P) f32
    h = jnp.maximum(h, 0.0)                                          # ReLU

    h = (jnp.dot(h.astype(jnp.bfloat16), w2_ref[...],
                 preferred_element_type=jnp.float32) + b2_ref[...])  # (TM, H2_P)
    h = jnp.tanh(h)                                                  # f32 EUP

    logits = (jnp.dot(h.astype(jnp.bfloat16), w3_ref[...],
                      preferred_element_type=jnp.float32) + b3_ref[...])  # (TM, OUT_P)

    # Stable softmax over the lane axis.  Padded lanes carry NEG_BIG bias, so
    # exp() == 0 there and the normalization is exact over the 2 real classes.
    m = jnp.max(logits, axis=1, keepdims=True)
    e = jnp.exp(logits - m)
    o_ref[...] = e / jnp.sum(e, axis=1, keepdims=True)               # exact reciprocal


def init_params(vocab_size, key):
    """f32, unpadded parameters with PyTorch-default initializers."""
    ks = jax.random.split(key, 7)
    emb = jax.random.normal(ks[0], (vocab_size, EMB), jnp.float32)   # nn.Embedding: N(0,1)

    def linear(kw, kb, fan_in, fan_out):
        bound = 1.0 / (fan_in ** 0.5)                                # nn.Linear default
        w = jax.random.uniform(kw, (fan_in, fan_out), jnp.float32, -bound, bound)
        b = jax.random.uniform(kb, (fan_out,), jnp.float32, -bound, bound)
        return w, b

    w1, b1 = linear(ks[1], ks[2], 2 * EMB, H1)
    w2, b2 = linear(ks[3], ks[4], H1, H2)
    w3, b3 = linear(ks[5], ks[6], H2, OUT)
    return dict(embedding=emb, w1=w1, b1=b1, w2=w2, b2=b2, w3=w3, b3=b3)


def pack_params(params):
    """Pad feature dims to multiples of 128; gather table + matmul weights -> bf16."""
    # Embedding table: pre-padded + pre-cast so the wrapper's gather reads bf16.
    emb = jnp.pad(params["embedding"],
                  ((0, 0), (0, EMB_P - EMB))).astype(jnp.bfloat16)   # (vocab, EMB_P)

    # W1 packed as a single (X_P, H1_P) block matching the [ctx_sum | tgt] layout.
    w1 = params["w1"]                                                # (2*EMB, H1)
    w1p = jnp.zeros((X_P, H1_P), jnp.float32)
    w1p = w1p.at[:EMB, :H1].set(w1[:EMB])                            # ctx rows
    w1p = w1p.at[EMB_P:EMB_P + EMB, :H1].set(w1[EMB:])               # tgt rows
    w1p = w1p.astype(jnp.bfloat16)
    b1 = jnp.pad(params["b1"], (0, H1_P - H1)).reshape(1, H1_P)

    def pad2(w, rows, cols):
        return jnp.pad(w, ((0, rows - w.shape[0]), (0, cols - w.shape[1])))

    w2 = pad2(params["w2"], H1_P, H2_P).astype(jnp.bfloat16)
    b2 = jnp.pad(params["b2"], (0, H2_P - H2)).reshape(1, H2_P)

    w3 = pad2(params["w3"], H2_P, OUT_P).astype(jnp.bfloat16)
    # Padded logit lanes get a large negative bias so softmax ignores them.
    b3 = jnp.pad(params["b3"], (0, OUT_P - OUT),
                 constant_values=NEG_BIG).reshape(1, OUT_P)

    return dict(embedding=emb, w1=w1p, b1=b1, w2=w2, b2=b2, w3=w3, b3=b3)


@functools.partial(jax.jit, static_argnames=("block_b",))
def word2vec_forward(context, target, packed, *, block_b=1024):
    B = context.shape[0]
    emb = packed["embedding"]                                        # (vocab, EMB_P) bf16

    # bf16 row gather; window sum accumulated in f32; single concatenated slab.
    # TODO(synk): for very large B*vocab an in-kernel scalar-prefetched row
    # gather would avoid materializing this slab in HBM; not needed here.
    ctx_sum = jnp.sum(emb[context].astype(jnp.float32), axis=1)      # (B, EMB_P) f32
    x = jnp.concatenate([ctx_sum.astype(jnp.bfloat16), emb[target]], axis=1)  # (B, X_P)

    tm = _choose_tile(B, block_b)
    b_pad = _round_up(B, tm)
    x = jnp.pad(x, ((0, b_pad - B), (0, 0)))                         # (B_pad, X_P) bf16

    res = lambda shape: pl.BlockSpec(shape, lambda i: (0, 0))        # resident weight block

    out = pl.pallas_call(
        w2v_kernel,
        out_shape=jax.ShapeDtypeStruct((b_pad, OUT_P), jnp.float32),
        grid_spec=pltpu.PrefetchScalarGridSpec(
            num_scalar_prefetch=0,
            grid=(b_pad // tm,),
            in_specs=[pl.BlockSpec((tm, X_P), lambda i: (i, 0)),
                      res((X_P, H1_P)), res((1, H1_P)),
                      res((H1_P, H2_P)), res((1, H2_P)),
                      res((H2_P, OUT_P)), res((1, OUT_P))],
            out_specs=pl.BlockSpec((tm, OUT_P), lambda i: (i, 0)),
        ),
        compiler_params=pltpu.CompilerParams(
            dimension_semantics=("parallel",),
            vmem_limit_bytes=32 * 1024 * 1024),
    )(x,
      packed["w1"], packed["b1"],
      packed["w2"], packed["b2"],
      packed["w3"], packed["b3"])

    return out[:B, :OUT]


def reference_forward(context, target, params):
    emb = params["embedding"]
    ctx = jnp.sum(emb[context], axis=1)
    tgt = emb[target]
    x = jnp.concatenate([ctx, tgt], axis=1)
    x = jnp.maximum(x @ params["w1"] + params["b1"], 0.0)
    x = jnp.tanh(x @ params["w2"] + params["b2"])
    x = x @ params["w3"] + params["b3"]
    return jax.nn.softmax(x, axis=1)


if __name__ == "__main__":
    vocab_size = 1000
    B, C = 512, 4            # batch, context window

    key = jax.random.PRNGKey(0)
    kp, kc, kt = jax.random.split(key, 3)
    params = init_params(vocab_size, kp)
    packed = pack_params(params)
    context = jax.random.randint(kc, (B, C), 0, vocab_size, dtype=jnp.int32)
    target = jax.random.randint(kt, (B,), 0, vocab_size, dtype=jnp.int32)

    out = word2vec_forward(context, target, packed, block_b=1024)
    out = jax.block_until_ready(out)

    ref = reference_forward(context, target, params)
    assert out.shape == (B, OUT)
    assert jnp.allclose(jnp.sum(out, axis=1), 1.0, atol=1e-3)
    # bf16 embedding table + bf16 matmul operands -> looser tolerance vs the f32 reference.
    assert jnp.allclose(out, ref, atol=4e-2, rtol=4e-2)
    print("KERNEL_OK")
</pallas_src>

<mosaic_0001>
module attributes {stable_mosaic.version = 11 : i64} {
  func.func @w2v_kernel(%arg0: i32, %arg1: memref<128x768xbf16, #tpu.memory_space<vmem>>, %arg2: memref<768x512xbf16, #tpu.memory_space<vmem>>, %arg3: memref<1x512xf32, #tpu.memory_space<vmem>>, %arg4: memref<512x384xbf16, #tpu.memory_space<vmem>>, %arg5: memref<1x384xf32, #tpu.memory_space<vmem>>, %arg6: memref<384x128xbf16, #tpu.memory_space<vmem>>, %arg7: memref<1x128xf32, #tpu.memory_space<vmem>>, %arg8: memref<128x128xf32, #tpu.memory_space<vmem>>) attributes {dimension_semantics = [#tpu.dimension_semantics<parallel>], iteration_bounds = array<i64: 4>, scalar_prefetch = 0 : i64, scratch_operands = 0 : i64, tpu.core_type = #tpu.core_type<tc>, window_params = [{transform_indices = @transform_0, window_bounds = array<i64: 128, 768>}, {pipeline_mode = #tpu.pipeline_mode<synchronous>, transform_indices = @transform_1, window_bounds = array<i64: 768, 512>}, {pipeline_mode = #tpu.pipeline_mode<synchronous>, transform_indices = @transform_2, window_bounds = array<i64: 1, 512>}, {pipeline_mode = #tpu.pipeline_mode<synchronous>, transform_indices = @transform_3, window_bounds = array<i64: 512, 384>}, {pipeline_mode = #tpu.pipeline_mode<synchronous>, transform_indices = @transform_4, window_bounds = array<i64: 1, 384>}, {pipeline_mode = #tpu.pipeline_mode<synchronous>, transform_indices = @transform_5, window_bounds = array<i64: 384, 128>}, {pipeline_mode = #tpu.pipeline_mode<synchronous>, transform_indices = @transform_6, window_bounds = array<i64: 1, 128>}, {transform_indices = @transform_7, window_bounds = array<i64: 128, 128>}]} {
    %c0 = arith.constant 0 : index
    %c0_0 = arith.constant 0 : index
    %0 = vector.load %arg1[%c0, %c0_0] : memref<128x768xbf16, #tpu.memory_space<vmem>>, vector<128x768xbf16>
    %c0_1 = arith.constant 0 : index
    %c0_2 = arith.constant 0 : index
    %1 = vector.load %arg2[%c0_1, %c0_2] : memref<768x512xbf16, #tpu.memory_space<vmem>>, vector<768x512xbf16>
    %cst = arith.constant dense<0.000000e+00> : vector<128x512xf32>
    %2 = tpu.matmul %0, %1, %cst {dimension_numbers = #tpu.dot_dimension_numbers<[1], [0], [0], [1], [0, 0, 1, 1], [], []>} : vector<128x768xbf16>, vector<768x512xbf16>, vector<128x512xf32> -> vector<128x512xf32>
    %c0_3 = arith.constant 0 : index
    %c0_4 = arith.constant 0 : index
    %3 = vector.load %arg3[%c0_3, %c0_4] : memref<1x512xf32, #tpu.memory_space<vmem>>, vector<1x512xf32>
    %4 = vector.broadcast %3 : vector<1x512xf32> to vector<128x512xf32>
    %5 = arith.addf %2, %4 : vector<128x512xf32>
    %cst_5 = arith.constant 0.000000e+00 : f32
    %6 = vector.broadcast %cst_5 : f32 to vector<128x512xf32>
    %7 = arith.maximumf %5, %6 : vector<128x512xf32>
    %8 = arith.truncf %7 : vector<128x512xf32> to vector<128x512xbf16>
    %c0_6 = arith.constant 0 : index
    %c0_7 = arith.constant 0 : index
    %9 = vector.load %arg4[%c0_6, %c0_7] : memref<512x384xbf16, #tpu.memory_space<vmem>>, vector<512x384xbf16>
    %cst_8 = arith.constant dense<0.000000e+00> : vector<128x384xf32>
    %10 = tpu.matmul %8, %9, %cst_8 {dimension_numbers = #tpu.dot_dimension_numbers<[1], [0], [0], [1], [0, 0, 1, 1], [], []>} : vector<128x512xbf16>, vector<512x384xbf16>, vector<128x384xf32> -> vector<128x384xf32>
    %c0_9 = arith.constant 0 : index
    %c0_10 = arith.constant 0 : index
    %11 = vector.load %arg5[%c0_9, %c0_10] : memref<1x384xf32, #tpu.memory_space<vmem>>, vector<1x384xf32>
    %12 = vector.broadcast %11 : vector<1x384xf32> to vector<128x384xf32>
    %13 = arith.addf %10, %12 : vector<128x384xf32>
    %14 = math.tanh %13 : vector<128x384xf32>
    %15 = arith.truncf %14 : vector<128x384xf32> to vector<128x384xbf16>
    %c0_11 = arith.constant 0 : index
    %c0_12 = arith.constant 0 : index
    %16 = vector.load %arg6[%c0_11, %c0_12] : memref<384x128xbf16, #tpu.memory_space<vmem>>, vector<384x128xbf16>
    %cst_13 = arith.constant dense<0.000000e+00> : vector<128x128xf32>
    %17 = tpu.matmul %15, %16, %cst_13 {dimension_numbers = #tpu.dot_dimension_numbers<[1], [0], [0], [1], [0, 0, 1, 1], [], []>} : vector<128x384xbf16>, vector<384x128xbf16>, vector<128x128xf32> -> vector<128x128xf32>
    %c0_14 = arith.constant 0 : index
    %c0_15 = arith.constant 0 : index
    %18 = vector.load %arg7[%c0_14, %c0_15] : memref<1x128xf32, #tpu.memory_space<vmem>>, vector<1x128xf32>
    %19 = vector.broadcast %18 : vector<1x128xf32> to vector<128x128xf32>
    %20 = arith.addf %17, %19 : vector<128x128xf32>
    %cst_16 = arith.constant dense<0xFF800000> : vector<128xf32>
    %21 = vector.multi_reduction <maximumf>, %20, %cst_16 [1] : vector<128x128xf32> to vector<128xf32>
    %22 = vector.shape_cast %21 : vector<128xf32> to vector<128x1xf32>
    %23 = vector.broadcast %22 : vector<128x1xf32> to vector<128x128xf32>
    %24 = arith.subf %20, %23 : vector<128x128xf32>
    %25 = math.exp %24 : vector<128x128xf32>
    %cst_17 = arith.constant dense<0.000000e+00> : vector<128xf32>
    %26 = vector.multi_reduction <add>, %25, %cst_17 [1] : vector<128x128xf32> to vector<128xf32>
    %27 = vector.shape_cast %26 : vector<128xf32> to vector<128x1xf32>
    %28 = vector.broadcast %27 : vector<128x1xf32> to vector<128x128xf32>
    %29 = arith.divf %25, %28 : vector<128x128xf32>
    %c0_18 = arith.constant 0 : index
    %c0_19 = arith.constant 0 : index
    %30 = vector.load %arg8[%c0_18, %c0_19] : memref<128x128xf32, #tpu.memory_space<vmem>>, vector<128x128xf32>
    tpu.vector_store %arg8[%c0_18, %c0_19], %29 {strides = array<i32>} : memref<128x128xf32, #tpu.memory_space<vmem>>, vector<128x128xf32>,
    return
  }
  func.func @transform_0(%arg0: i32) -> (i32, i32) {
    %c0_i32 = arith.constant 0 : i32
    %c0_i32_0 = arith.constant 0 : i32
    return %arg0, %c0_i32 : i32, i32
  }
  func.func @transform_1(%arg0: i32) -> (i32, i32) {
    %c0_i32 = arith.constant 0 : i32
    %c0_i32_0 = arith.constant 0 : i32
    %c0_i32_1 = arith.constant 0 : i32
    return %c0_i32, %c0_i32_0 : i32, i32
  }
  func.func @transform_2(%arg0: i32) -> (i32, i32) {
    %c0_i32 = arith.constant 0 : i32
    %c0_i32_0 = arith.constant 0 : i32
    %c0_i32_1 = arith.constant 0 : i32
    return %c0_i32, %c0_i32_0 : i32, i32
  }
  func.func @transform_3(%arg0: i32) -> (i32, i32) {
    %c0_i32 = arith.constant 0 : i32
    %c0_i32_0 = arith.constant 0 : i32
    %c0_i32_1 = arith.constant 0 : i32
    return %c0_i32, %c0_i32_0 : i32, i32
  }
  func.func @transform_4(%arg0: i32) -> (i32, i32) {
    %c0_i32 = arith.constant 0 : i32
    %c0_i32_0 = arith.constant 0 : i32
    %c0_i32_1 = arith.constant 0 : i32
    return %c0_i32, %c0_i32_0 : i32, i32
  }
  func.func @transform_5(%arg0: i32) -> (i32, i32) {
    %c0_i32 = arith.constant 0 : i32
    %c0_i32_0 = arith.constant 0 : i32
    %c0_i32_1 = arith.constant 0 : i32
    return %c0_i32, %c0_i32_0 : i32, i32
  }
  func.func @transform_6(%arg0: i32) -> (i32, i32) {
    %c0_i32 = arith.constant 0 : i32
    %c0_i32_0 = arith.constant 0 : i32
    %c0_i32_1 = arith.constant 0 : i32
    return %c0_i32, %c0_i32_0 : i32, i32
  }
  func.func @transform_7(%arg0: i32) -> (i32, i32) {
    %c0_i32 = arith.constant 0 : i32
    %c0_i32_0 = arith.constant 0 : i32
    return %arg0, %c0_i32 : i32, i32
  }
}

</mosaic_0001>

<llo_original>
// kernel: word2vec_forward.1
$region0: #{word2vec_forward.1}
  #allocation0 [shape = 'u32[]', space=smem, size = 0x4, offset = 0x4, fixed_abs, tag = 'smem constant byte address 0x4 - core index']
  #allocation1 [shape = 'u32[72,128]{1,0:T(1,128)}', space=vmem, size = 0x9000, scoped, tag = 'internal scratch']
  %s0 = inlined_call_operand.vmem [shape: bf16[512,768], index: 0, kind: input, shape index: {}]
  %s1 = inlined_call_operand.vmem [shape: bf16[768,512], index: 1, kind: input, shape index: {}]
  %s2 = inlined_call_operand.vmem [shape: f32[1,512], index: 2, kind: input, shape index: {}]
  %s3 = inlined_call_operand.vmem [shape: bf16[512,384], index: 3, kind: input, shape index: {}]
  %s4 = inlined_call_operand.vmem [shape: f32[1,384], index: 4, kind: input, shape index: {}]
  %s5 = inlined_call_operand.vmem [shape: bf16[384,128], index: 5, kind: input, shape index: {}]
  %s6 = inlined_call_operand.vmem [shape: f32[1,128], index: 6, kind: input, shape index: {}]
  %s7 = inlined_call_operand.vmem [shape: f32[512,128], index: 7, kind: output, shape index: {}]
  %s8 = sld [smem:[#allocation0]]
  $region61: #{word2vec_forward.1} parent=0
    _
  %s10 = ssub.s32 1, %s8
  %s11 = scalar_select 0, %s10, %s8
  loop: start=0, step=1, limit=6
  $region2: #{word2vec_forward.1} parent=0 // loop_pre_header
    _
  $region3: #{word2vec_forward.1} parent=0 // loop_header
    %s13 = sphi 0, %s17
    %p14 = scmp.ge.s32.totalorder %s13, 6
    %s23 = sphi 0, %s25
    %s26 = sphi 0, %s23
    %s27 = sphi 0, %s26
    %s43 = sphi 0, %s27
    %s47 = sphi 0, %s47
    %s49 = sphi 0, %s47
    %s50 = sphi 0, %s49
    %s64 = sphi 0, %s50
    %s68 = sphi 0, %s68
    %s70 = sphi 0, %s68
    %s71 = sphi 0, %s70
    %s85 = sphi 0, %s71
    %s89 = sphi 0, %s89
    %s91 = sphi 0, %s89
    %s92 = sphi 0, %s91
    %s106 = sphi 0, %s92
    %s110 = sphi 0, %s110
    %s112 = sphi 0, %s110
    %s113 = sphi 0, %s112
    %s127 = sphi 0, %s113
    %s131 = sphi 0, %s131
    %s133 = sphi 0, %s131
    %s134 = sphi 0, %s133
    %s148 = sphi 0, %s134
    %s152 = sphi 0, %s152
    %s154 = sphi 0, %s152
    %s155 = sphi 0, %s154
    %s169 = sphi 0, %s155
    %s175 = sphi 0, %s177
    %s178 = sphi 0, %s175
    %s179 = sphi 0, %s178
    %s195 = sphi 0, %s179
  $region4: #{word2vec_forward.1} parent=0 // loop_header_branch
    %16 = sbr.rel (%p14) target = $region8
  $region5: #{word2vec_forward.1} parent=0 // loop_body
    %s18 = ssub.s32 %s13, 1
    %s19 = ssub.s32 %s13, 2
    %s20 = sadd.s32 %s13, 1
    %s21 = ssub.s32 %s13, %s20
    %p22 = scmp.eq.s32.totalorder %s21, 0
    %s24 = sadd.s32 %s23, 1
    %s25 = scalar_select %p22, %s23, %s24
    %p28 = pneg %p22
    %p29 = scmp.eq.s32.totalorder %s13, 3
    %p30 = por %p28, %p29
    %p31 = scmp.ne.s32.totalorder %s23, %s26
    %p32 = scmp.eq.s32.totalorder %s13, 0
    %p33 = por %p31, %p32
    %p34 = scmp.ne.s32.totalorder %s23, %s26
    %p35 = scmp.eq.s32.totalorder %s18, 3
    %p36 = por %p34, %p35
    %p37 = scmp.ne.s32.totalorder %s26, %s27
    %p38 = scmp.eq.s32.totalorder %s18, 0
    %p39 = por %p37, %p38
    %p40 = scmp.ne.s32.totalorder %s26, %s27
    %p41 = scmp.eq.s32.totalorder %s19, 3
    %p42 = por %p40, %p41
    %p44 = scmp.ne.s32.totalorder %s27, %s43
    %p45 = scmp.eq.s32.totalorder %s19, 0
    %p46 = por %p44, %p45
    %s48 = sadd.s32 %s47, 1
    %p51 = scmp.eq.s32.totalorder %s13, 3
    %p52 = scmp.ne.s32.totalorder %s47, %s49
    %p53 = scmp.eq.s32.totalorder %s13, 0
    %p54 = por %p52, %p53
    %p55 = scmp.ne.s32.totalorder %s47, %s49
    %p56 = scmp.eq.s32.totalorder %s18, 3
    %p57 = por %p55, %p56
    %p58 = scmp.ne.s32.totalorder %s49, %s50
    %p59 = scmp.eq.s32.totalorder %s18, 0
    %p60 = por %p58, %p59
    %p61 = scmp.ne.s32.totalorder %s49, %s50
    %p62 = scmp.eq.s32.totalorder %s19, 3
    %p63 = por %p61, %p62
    %p65 = scmp.ne.s32.totalorder %s50, %s64
    %p66 = scmp.eq.s32.totalorder %s19, 0
    %p67 = por %p65, %p66
    %s69 = sadd.s32 %s68, 1
    %p72 = scmp.eq.s32.totalorder %s13, 3
    %p73 = scmp.ne.s32.totalorder %s68, %s70
    %p74 = scmp.eq.s32.totalorder %s13, 0
    %p75 = por %p73, %p74
    %p76 = scmp.ne.s32.totalorder %s68, %s70
    %p77 = scmp.eq.s32.totalorder %s18, 3
    %p78 = por %p76, %p77
    %p79 = scmp.ne.s32.totalorder %s70, %s71
    %p80 = scmp.eq.s32.totalorder %s18, 0
    %p81 = por %p79, %p80
    %p82 = scmp.ne.s32.totalorder %s70, %s71
    %p83 = scmp.eq.s32.totalorder %s19, 3
    %p84 = por %p82, %p83
    %p86 = scmp.ne.s32.totalorder %s71, %s85
    %p87 = scmp.eq.s32.totalorder %s19, 0
    %p88 = por %p86, %p87
    %s90 = sadd.s32 %s89, 1
    %p93 = scmp.eq.s32.totalorder %s13, 3
    %p94 = scmp.ne.s32.totalorder %s89, %s91
    %p95 = scmp.eq.s32.totalorder %s13, 0
    %p96 = por %p94, %p95
    %p97 = scmp.ne.s32.totalorder %s89, %s91
    %p98 = scmp.eq.s32.totalorder %s18, 3
    %p99 = por %p97, %p98
    %p100 = scmp.ne.s32.totalorder %s91, %s92
    %p101 = scmp.eq.s32.totalorder %s18, 0
    %p102 = por %p100, %p101
    %p103 = scmp.ne.s32.totalorder %s91, %s92
    %p104 = scmp.eq.s32.totalorder %s19, 3
    %p105 = por %p103, %p104
    %p107 = scmp.ne.s32.totalorder %s92, %s106
    %p108 = scmp.eq.s32.totalorder %s19, 0
    %p109 = por %p107, %p108
    %s111 = sadd.s32 %s110, 1
    %p114 = scmp.eq.s32.totalorder %s13, 3
    %p115 = scmp.ne.s32.totalorder %s110, %s112
    %p116 = scmp.eq.s32.totalorder %s13, 0
    %p117 = por %p115, %p116
    %p118 = scmp.ne.s32.totalorder %s110, %s112
    %p119 = scmp.eq.s32.totalorder %s18, 3
    %p120 = por %p118, %p119
    %p121 = scmp.ne.s32.totalorder %s112, %s113
    %p122 = scmp.eq.s32.totalorder %s18, 0
    %p123 = por %p121, %p122
    %p124 = scmp.ne.s32.totalorder %s112, %s113
    %p125 = scmp.eq.s32.totalorder %s19, 3
    %p126 = por %p124, %p125
    %p128 = scmp.ne.s32.totalorder %s113, %s127
    %p129 = scmp.eq.s32.totalorder %s19, 0
    %p130 = por %p128, %p129
    %s132 = sadd.s32 %s131, 1
    %p135 = scmp.eq.s32.totalorder %s13, 3
    %p136 = scmp.ne.s32.totalorder %s131, %s133
    %p137 = scmp.eq.s32.totalorder %s13, 0
    %p138 = por %p136, %p137
    %p139 = scmp.ne.s32.totalorder %s131, %s133
    %p140 = scmp.eq.s32.totalorder %s18, 3
    %p141 = por %p139, %p140
    %p142 = scmp.ne.s32.totalorder %s133, %s134
    %p143 = scmp.eq.s32.totalorder %s18, 0
    %p144 = por %p142, %p143
    %p145 = scmp.ne.s32.totalorder %s133, %s134
    %p146 = scmp.eq.s32.totalorder %s19, 3
    %p147 = por %p145, %p146
    %p149 = scmp.ne.s32.totalorder %s134, %s148
    %p150 = scmp.eq.s32.totalorder %s19, 0
    %p151 = por %p149, %p150
    %s153 = sadd.s32 %s152, 1
    %p156 = scmp.eq.s32.totalorder %s13, 3
    %p157 = scmp.ne.s32.totalorder %s152, %s154
    %p158 = scmp.eq.s32.totalorder %s13, 0
    %p159 = por %p157, %p158
    %p160 = scmp.ne.s32.totalorder %s152, %s154
    %p161 = scmp.eq.s32.totalorder %s18, 3
    %p162 = por %p160, %p161
    %p163 = scmp.ne.s32.totalorder %s154, %s155
    %p164 = scmp.eq.s32.totalorder %s18, 0
    %p165 = por %p163, %p164
    %p166 = scmp.ne.s32.totalorder %s154, %s155
    %p167 = scmp.eq.s32.totalorder %s19, 3
    %p168 = por %p166, %p167
    %p170 = scmp.ne.s32.totalorder %s155, %s169
    %p171 = scmp.eq.s32.totalorder %s19, 0
    %p172 = por %p170, %p171
    %s173 = ssub.s32 %s13, %s20
    %p174 = scmp.eq.s32.totalorder %s173, 0
    %s176 = sadd.s32 %s175, 1
    %s177 = scalar_select %p174, %s175, %s176
    %p180 = pneg %p174
    %p181 = scmp.eq.s32.totalorder %s13, 3
    %p182 = por %p180, %p181
    %p183 = scmp.ne.s32.totalorder %s175, %s178
    %p184 = scmp.eq.s32.totalorder %s13, 0
    %p185 = por %p183, %p184
    %p186 = scmp.ne.s32.totalorder %s175, %s178
    %p187 = scmp.eq.s32.totalorder %s18, 3
    %p188 = por %p186, %p187
    %p189 = scmp.ne.s32.totalorder %s178, %s179
    %p190 = scmp.eq.s32.totalorder %s18, 0
    %p191 = por %p189, %p190
    %p192 = scmp.ne.s32.totalorder %s178, %s179
    %p193 = scmp.eq.s32.totalorder %s19, 3
    %p194 = por %p192, %p193
    %p196 = scmp.ne.s32.totalorder %s179, %s195
    %p197 = scmp.eq.s32.totalorder %s19, 0
    %p198 = por %p196, %p197
    %p199 = scmp.le.s32.totalorder 1, %s13
    %p200 = scmp.lt.s32.totalorder %s13, 5
    %p201 = pnand %p199, %p200
    %p202 = pneg %p201
    // Predicated region
    $region9: #{word2vec_forward.1} parent=5 // pred_check
      _
    $region10: #{word2vec_forward.1} parent=5 // pred_check_branch
      %204 = sbr.rel (%p201) target = $region12
    $region11: #{word2vec_forward.1} parent=5 // pred_region
      %s205 = ssub.s32 %s13, 1
      // Predicated region
      $region13: #{word2vec_forward.1} parent=11 // pred_check
        %p206 = pneg %p60
      $region14: #{word2vec_forward.1} parent=11 // pred_check_branch
        %208 = sbr.rel (%p206) target = $region16
      $region15: #{word2vec_forward.1} parent=11 // pred_region
        _
      $region16: #{word2vec_forward.1} parent=11 // pred_fallthru
        _
      // Predicated region
      $region17: #{word2vec_forward.1} parent=11 // pred_check
        %p209 = pneg %p81
      $region18: #{word2vec_forward.1} parent=11 // pred_check_branch
        %211 = sbr.rel (%p209) target = $region20
      $region19: #{word2vec_forward.1} parent=11 // pred_region
        _
      $region20: #{word2vec_forward.1} parent=11 // pred_fallthru
        _
      // Predicated region
      $region21: #{word2vec_forward.1} parent=11 // pred_check
        %p212 = pneg %p102
      $region22: #{word2vec_forward.1} parent=11 // pred_check_branch
        %214 = sbr.rel (%p212) target = $region24
      $region23: #{word2vec_forward.1} parent=11 // pred_region
        _
      $region24: #{word2vec_forward.1} parent=11 // pred_fallthru
        _
      // Predicated region
      $region25: #{word2vec_forward.1} parent=11 // pred_check
        %p215 = pneg %p123
      $region26: #{word2vec_forward.1} parent=11 // pred_check_branch
        %217 = sbr.rel (%p215) target = $region28
      $region27: #{word2vec_forward.1} parent=11 // pred_region
        _
      $region28: #{word2vec_forward.1} parent=11 // pred_fallthru
        _
      // Predicated region
      $region29: #{word2vec_forward.1} parent=11 // pred_check
        %p218 = pneg %p144
      $region30: #{word2vec_forward.1} parent=11 // pred_check_branch
        %220 = sbr.rel (%p218) target = $region32
      $region31: #{word2vec_forward.1} parent=11 // pred_region
        _
      $region32: #{word2vec_forward.1} parent=11 // pred_fallthru
        _
      // Predicated region
      $region33: #{word2vec_forward.1} parent=11 // pred_check
        %p221 = pneg %p165
      $region34: #{word2vec_forward.1} parent=11 // pred_check_branch
        %223 = sbr.rel (%p221) target = $region36
      $region35: #{word2vec_forward.1} parent=11 // pred_region
        _
      $region36: #{word2vec_forward.1} parent=11 // pred_fallthru
        _
    $region12: #{word2vec_forward.1} parent=5 // pred_fallthru
      _
    %p224 = scmp.lt.s32.totalorder %s13, 4
    // Predicated region
    $region37: #{word2vec_forward.1} parent=5 // pred_check
      %p225 = pneg %p224
    $region38: #{word2vec_forward.1} parent=5 // pred_check_branch
      %227 = sbr.rel (%p225) target = $region40
    $region39: #{word2vec_forward.1} parent=5 // pred_region
      // Predicated region
      $region41: #{word2vec_forward.1} parent=39 // pred_check
        %p228 = pneg %p33
      $region42: #{word2vec_forward.1} parent=39 // pred_check_branch
        %230 = sbr.rel (%p228) target = $region44
      $region43: #{word2vec_forward.1} parent=39 // pred_region
        %s231 = smul.u32 16, %s13
        %p232 = scmp.lt.s32.totalorder %s231, 63
        %s233 = scalar_select %p232, %s231, 63
        %s234 = smul.addr %s233, 6
        %s235 = smul.addr %s234, 4
        %s236 = scalar_lea.vmem %s0, %s235
        %s237 = smul.u32 16, %s13
      $region44: #{word2vec_forward.1} parent=39 // pred_fallthru
        _
    $region40: #{word2vec_forward.1} parent=5 // pred_fallthru
      _
    %p238 = scmp.le.s32.totalorder 1, %s13
    %p239 = scmp.lt.s32.totalorder %s13, 5
    %p240 = pnand %p238, %p239
    %p241 = pneg %p240
    // Predicated region
    $region45: #{word2vec_forward.1} parent=5 // pred_check
      _
    $region46: #{word2vec_forward.1} parent=5 // pred_check_branch
      %243 = sbr.rel (%p240) target = $region48
    $region47: #{word2vec_forward.1} parent=5 // pred_region
      %s244 = ssub.s32 %s13, 1
      %s245 = smul.u32 16, %s18
      %p246 = scmp.lt.s32.totalorder %s245, 63
      %s247 = scalar_select %p246, %s245, 63
      %s248 = smul.addr %s247, 6
      %s249 = smul.addr %s248, 4
      %s250 = scalar_lea.vmem %s0, %s249
      %p251 = pneg %p39
      %p252 = pneg %p36
      %p253 = pneg %p60
      %p254 = pneg %p57
      %p255 = pneg %p81
      %p256 = pneg %p78
      %p257 = pneg %p102
      %p258 = pneg %p99
      %p259 = pneg %p123
      %p260 = pneg %p120
      %p261 = pneg %p144
      %p262 = pneg %p141
      %p263 = pneg %p165
      %p264 = pneg %p162
      %p265 = pneg %p191
      %p266 = pneg %p188
      %s267 = smul.u32 16, %s18
      %p268 = scmp.lt.s32.totalorder %s267, 63
      %s269 = scalar_select %p268, %s267, 63
      %s270 = smul.addr %s269, 8
      %s271 = scalar_lea.vmem %s7, %s270
      %s272 = smul.u32 16, %s18
      %p273 = scmp.lt.s32.totalorder %s272, 63
      %s274 = scalar_select %p273, %s272, 63
      %s275 = smul.addr %s274, 6
      %s276 = smul.addr %s275, 4
      %s277 = scalar_lea.vmem %s0, %s276
      %s278 = smul.u32 16, %s18
      %s279 = smul.u32 16, %s18
      %p280 = scmp.lt.s32.totalorder %s279, 63
      %s281 = scalar_select %p280, %s279, 63
      %s282 = smul.addr %s281, 8
      %s283 = scalar_lea.vmem %s7, %s282
      %s284 = smul.u32 16, %s18
      %v285 = vld [vmem:[%s277] sm:$0xff]
      %v286 = vld [vmem:[%s277 + $0x8] sm:$0xff]
      %v287 = vld [vmem:[%s277 + $0x10] sm:$0xff]
      %v288 = vld [vmem:[%s277 + $0x18] sm:$0xff]
      %v289 = vld [vmem:[%s277 + $0x20] sm:$0xff]
      %v290 = vld [vmem:[%s277 + $0x28] sm:$0xff]
      %v291 = vld [vmem:[%s277 + $0x30] sm:$0xff]
      %v292 = vld [vmem:[%s277 + $0x38] sm:$0xff]
      %v293 = vld [vmem:[%s277 + $0x40] sm:$0xff]
      %v294 = vld [vmem:[%s277 + $0x48] sm:$0xff]
      %v295 = vld [vmem:[%s277 + $0x50] sm:$0xff]
      %v296 = vld [vmem:[%s277 + $0x58] sm:$0xff]
      %v297 = vld [vmem:[%s277 + $0x60] sm:$0xff]
      %v298 = vld [vmem:[%s277 + $0x68] sm:$0xff]
      %v299 = vld [vmem:[%s277 + $0x70] sm:$0xff]
      %v300 = vld [vmem:[%s277 + $0x78] sm:$0xff]
      %v301 = vld [vmem:[%s277 + $0x80] sm:$0xff]
      %v302 = vld [vmem:[%s277 + $0x88] sm:$0xff]
      %v303 = vld [vmem:[%s277 + $0x90] sm:$0xff]
      %v304 = vld [vmem:[%s277 + $0x98] sm:$0xff]
      %v305 = vld [vmem:[%s277 + $0xa0] sm:$0xff]
      %v306 = vld [vmem:[%s277 + $0xa8] sm:$0xff]
      %v307 = vld [vmem:[%s277 + $0xb0] sm:$0xff]
      %v308 = vld [vmem:[%s277 + $0xb8] sm:$0xff]
      %v309 = vld [vmem:[%s277 + $0xc0] sm:$0xff]
      %v310 = vld [vmem:[%s277 + $0xc8] sm:$0xff]
      %v311 = vld [vmem:[%s277 + $0xd0] sm:$0xff]
      %v312 = vld [vmem:[%s277 + $0xd8] sm:$0xff]
      %v313 = vld [vmem:[%s277 + $0xe0] sm:$0xff]
      %v314 = vld [vmem:[%s277 + $0xe8] sm:$0xff]
      %v315 = vld [vmem:[%s277 + $0xf0] sm:$0xff]
      %v316 = vld [vmem:[%s277 + $0xf8] sm:$0xff]
      %v317 = vld [vmem:[%s277 + $0x100] sm:$0xff]
      %v318 = vld [vmem:[%s277 + $0x108] sm:$0xff]
      %v319 = vld [vmem:[%s277 + $0x110] sm:$0xff]
      %v320 = vld [vmem:[%s277 + $0x118] sm:$0xff]
      %v321 = vld [vmem:[%s277 + $0x120] sm:$0xff]
      %v322 = vld [vmem:[%s277 + $0x128] sm:$0xff]
      %v323 = vld [vmem:[%s277 + $0x130] sm:$0xff]
      %v324 = vld [vmem:[%s277 + $0x138] sm:$0xff]
      %v325 = vld [vmem:[%s277 + $0x140] sm:$0xff]
      %v326 = vld [vmem:[%s277 + $0x148] sm:$0xff]
      %v327 = vld [vmem:[%s277 + $0x150] sm:$0xff]
      %v328 = vld [vmem:[%s277 + $0x158] sm:$0xff]
      %v329 = vld [vmem:[%s277 + $0x160] sm:$0xff]
      %v330 = vld [vmem:[%s277 + $0x168] sm:$0xff]
      %v331 = vld [vmem:[%s277 + $0x170] sm:$0xff]
      %v332 = vld [vmem:[%s277 + $0x178] sm:$0xff]
      %v333 = vld [vmem:[%s1] sm:$0xff]
      %v334 = vld [vmem:[%s1 + $0x8] sm:$0xff]
      %v335 = vld [vmem:[%s1 + $0x10] sm:$0xff]
      %v336 = vld [vmem:[%s1 + $0x18] sm:$0xff]
      %v337 = vld [vmem:[%s1 + $0x20] sm:$0xff]
      %v338 = vld [vmem:[%s1 + $0x28] sm:$0xff]
      %v339 = vld [vmem:[%s1 + $0x30] sm:$0xff]
      %v340 = vld [vmem:[%s1 + $0x38] sm:$0xff]
      %v341 = vld [vmem:[%s1 + $0x40] sm:$0xff]
      %v342 = vld [vmem:[%s1 + $0x48] sm:$0xff]
      %v343 = vld [vmem:[%s1 + $0x50] sm:$0xff]
      %v344 = vld [vmem:[%s1 + $0x58] sm:$0xff]
      %v345 = vld [vmem:[%s1 + $0x60] sm:$0xff]
      %v346 = vld [vmem:[%s1 + $0x68] sm:$0xff]
      %v347 = vld [vmem:[%s1 + $0x70] sm:$0xff]
      %v348 = vld [vmem:[%s1 + $0x78] sm:$0xff]
      %v349 = vld [vmem:[%s1 + $0x80] sm:$0xff]
      %v350 = vld [vmem:[%s1 + $0x88] sm:$0xff]
      %v351 = vld [vmem:[%s1 + $0x90] sm:$0xff]
      %v352 = vld [vmem:[%s1 + $0x98] sm:$0xff]
      %v353 = vld [vmem:[%s1 + $0xa0] sm:$0xff]
      %v354 = vld [vmem:[%s1 + $0xa8] sm:$0xff]
      %v355 = vld [vmem:[%s1 + $0xb0] sm:$0xff]
      %v356 = vld [vmem:[%s1 + $0xb8] sm:$0xff]
      %v357 = vld [vmem:[%s1 + $0xc0] sm:$0xff]
      %v358 = vld [vmem:[%s1 + $0xc8] sm:$0xff]
      %v359 = vld [vmem:[%s1 + $0xd0] sm:$0xff]
      %v360 = vld [vmem:[%s1 + $0xd8] sm:$0xff]
      %v361 = vld [vmem:[%s1 + $0xe0] sm:$0xff]
      %v362 = vld [vmem:[%s1 + $0xe8] sm:$0xff]
      %v363 = vld [vmem:[%s1 + $0xf0] sm:$0xff]
      %v364 = vld [vmem:[%s1 + $0xf8] sm:$0xff]
      %v365 = vld [vmem:[%s1 + $0x100] sm:$0xff]
      %v366 = vld [vmem:[%s1 + $0x108] sm:$0xff]
      %v367 = vld [vmem:[%s1 + $0x110] sm:$0xff]
      %v368 = vld [vmem:[%s1 + $0x118] sm:$0xff]
      %v369 = vld [vmem:[%s1 + $0x120] sm:$0xff]
      %v370 = vld [vmem:[%s1 + $0x128] sm:$0xff]
      %v371 = vld [vmem:[%s1 + $0x130] sm:$0xff]
      %v372 = vld [vmem:[%s1 + $0x138] sm:$0xff]
      %v373 = vld [vmem:[%s1 + $0x140] sm:$0xff]
      %v374 = vld [vmem:[%s1 + $0x148] sm:$0xff]
      %v375 = vld [vmem:[%s1 + $0x150] sm:$0xff]
      %v376 = vld [vmem:[%s1 + $0x158] sm:$0xff]
      %v377 = vld [vmem:[%s1 + $0x160] sm:$0xff]
      %v378 = vld [vmem:[%s1 + $0x168] sm:$0xff]
      %v379 = vld [vmem:[%s1 + $0x170] sm:$0xff]
      %v380 = vld [vmem:[%s1 + $0x178] sm:$0xff]
      %v381 = vld [vmem:[%s1 + $0x180] sm:$0xff]
      %v382 = vld [vmem:[%s1 + $0x188] sm:$0xff]
      %v383 = vld [vmem:[%s1 + $0x190] sm:$0xff]
      %v384 = vld [vmem:[%s1 + $0x198] sm:$0xff]
      %v385 = vld [vmem:[%s1 + $0x1a0] sm:$0xff]
      %v386 = vld [vmem:[%s1 + $0x1a8] sm:$0xff]
      %v387 = vld [vmem:[%s1 + $0x1b0] sm:$0xff]
      %v388 = vld [vmem:[%s1 + $0x1b8] sm:$0xff]
      %v389 = vld [vmem:[%s1 + $0x1c0] sm:$0xff]
      %v390 = vld [vmem:[%s1 + $0x1c8] sm:$0xff]
      %v391 = vld [vmem:[%s1 + $0x1d0] sm:$0xff]
      %v392 = vld [vmem:[%s1 + $0x1d8] sm:$0xff]
      %v393 = vld [vmem:[%s1 + $0x1e0] sm:$0xff]
      %v394 = vld [vmem:[%s1 + $0x1e8] sm:$0xff]
      %v395 = vld [vmem:[%s1 + $0x1f0] sm:$0xff]
      %v396 = vld [vmem:[%s1 + $0x1f8] sm:$0xff]
      %v397 = vld [vmem:[%s1 + $0x200] sm:$0xff]
      %v398 = vld [vmem:[%s1 + $0x208] sm:$0xff]
      %v399 = vld [vmem:[%s1 + $0x210] sm:$0xff]
      %v400 = vld [vmem:[%s1 + $0x218] sm:$0xff]
      %v401 = vld [vmem:[%s1 + $0x220] sm:$0xff]
      %v402 = vld [vmem:[%s1 + $0x228] sm:$0xff]
      %v403 = vld [vmem:[%s1 + $0x230] sm:$0xff]
      %v404 = vld [vmem:[%s1 + $0x238] sm:$0xff]
      %v405 = vld [vmem:[%s1 + $0x240] sm:$0xff]
      %v406 = vld [vmem:[%s1 + $0x248] sm:$0xff]
      %v407 = vld [vmem:[%s1 + $0x250] sm:$0xff]
      %v408 = vld [vmem:[%s1 + $0x258] sm:$0xff]
      %v409 = vld [vmem:[%s1 + $0x260] sm:$0xff]
      %v410 = vld [vmem:[%s1 + $0x268] sm:$0xff]
      %v411 = vld [vmem:[%s1 + $0x270] sm:$0xff]
      %v412 = vld [vmem:[%s1 + $0x278] sm:$0xff]
      %v413 = vld [vmem:[%s1 + $0x280] sm:$0xff]
      %v414 = vld [vmem:[%s1 + $0x288] sm:$0xff]
      %v415 = vld [vmem:[%s1 + $0x290] sm:$0xff]
      %v416 = vld [vmem:[%s1 + $0x298] sm:$0xff]
      %v417 = vld [vmem:[%s1 + $0x2a0] sm:$0xff]
      %v418 = vld [vmem:[%s1 + $0x2a8] sm:$0xff]
      %v419 = vld [vmem:[%s1 + $0x2b0] sm:$0xff]
      %v420 = vld [vmem:[%s1 + $0x2b8] sm:$0xff]
      %v421 = vld [vmem:[%s1 + $0x2c0] sm:$0xff]
      %v422 = vld [vmem:[%s1 + $0x2c8] sm:$0xff]
      %v423 = vld [vmem:[%s1 + $0x2d0] sm:$0xff]
      %v424 = vld [vmem:[%s1 + $0x2d8] sm:$0xff]
      %v425 = vld [vmem:[%s1 + $0x2e0] sm:$0xff]
      %v426 = vld [vmem:[%s1 + $0x2e8] sm:$0xff]
      %v427 = vld [vmem:[%s1 + $0x2f0] sm:$0xff]
      %v428 = vld [vmem:[%s1 + $0x2f8] sm:$0xff]
      %v429 = vld [vmem:[%s1 + $0x300] sm:$0xff]
      %v430 = vld [vmem:[%s1 + $0x308] sm:$0xff]
      %v431 = vld [vmem:[%s1 + $0x310] sm:$0xff]
      %v432 = vld [vmem:[%s1 + $0x318] sm:$0xff]
      %v433 = vld [vmem:[%s1 + $0x320] sm:$0xff]
      %v434 = vld [vmem:[%s1 + $0x328] sm:$0xff]
      %v435 = vld [vmem:[%s1 + $0x330] sm:$0xff]
      %v436 = vld [vmem:[%s1 + $0x338] sm:$0xff]
      %v437 = vld [vmem:[%s1 + $0x340] sm:$0xff]
      %v438 = vld [vmem:[%s1 + $0x348] sm:$0xff]
      %v439 = vld [vmem:[%s1 + $0x350] sm:$0xff]
      %v440 = vld [vmem:[%s1 + $0x358] sm:$0xff]
      %v441 = vld [vmem:[%s1 + $0x360] sm:$0xff]
      %v442 = vld [vmem:[%s1 + $0x368] sm:$0xff]
      %v443 = vld [vmem:[%s1 + $0x370] sm:$0xff]
      %v444 = vld [vmem:[%s1 + $0x378] sm:$0xff]
      %v445 = vld [vmem:[%s1 + $0x380] sm:$0xff]
      %v446 = vld [vmem:[%s1 + $0x388] sm:$0xff]
      %v447 = vld [vmem:[%s1 + $0x390] sm:$0xff]
      %v448 = vld [vmem:[%s1 + $0x398] sm:$0xff]
      %v449 = vld [vmem:[%s1 + $0x3a0] sm:$0xff]
      %v450 = vld [vmem:[%s1 + $0x3a8] sm:$0xff]
      %v451 = vld [vmem:[%s1 + $0x3b0] sm:$0xff]
      %v452 = vld [vmem:[%s1 + $0x3b8] sm:$0xff]
      %v453 = vld [vmem:[%s1 + $0x3c0] sm:$0xff]
      %v454 = vld [vmem:[%s1 + $0x3c8] sm:$0xff]
      %v455 = vld [vmem:[%s1 + $0x3d0] sm:$0xff]
      %v456 = vld [vmem:[%s1 + $0x3d8] sm:$0xff]
      %v457 = vld [vmem:[%s1 + $0x3e0] sm:$0xff]
      %v458 = vld [vmem:[%s1 + $0x3e8] sm:$0xff]
      %v459 = vld [vmem:[%s1 + $0x3f0] sm:$0xff]
      %v460 = vld [vmem:[%s1 + $0x3f8] sm:$0xff]
      %v461 = vld [vmem:[%s1 + $0x400] sm:$0xff]
      %v462 = vld [vmem:[%s1 + $0x408] sm:$0xff]
      %v463 = vld [vmem:[%s1 + $0x410] sm:$0xff]
      %v464 = vld [vmem:[%s1 + $0x418] sm:$0xff]
      %v465 = vld [vmem:[%s1 + $0x420] sm:$0xff]
      %v466 = vld [vmem:[%s1 + $0x428] sm:$0xff]
      %v467 = vld [vmem:[%s1 + $0x430] sm:$0xff]
      %v468 = vld [vmem:[%s1 + $0x438] sm:$0xff]
      %v469 = vld [vmem:[%s1 + $0x440] sm:$0xff]
      %v470 = vld [vmem:[%s1 + $0x448] sm:$0xff]
      %v471 = vld [vmem:[%s1 + $0x450] sm:$0xff]
      %v472 = vld [vmem:[%s1 + $0x458] sm:$0xff]
      %v473 = vld [vmem:[%s1 + $0x460] sm:$0xff]
      %v474 = vld [vmem:[%s1 + $0x468] sm:$0xff]
      %v475 = vld [vmem:[%s1 + $0x470] sm:$0xff]
      %v476 = vld [vmem:[%s1 + $0x478] sm:$0xff]
      %v477 = vld [vmem:[%s1 + $0x480] sm:$0xff]
      %v478 = vld [vmem:[%s1 + $0x488] sm:$0xff]
      %v479 = vld [vmem:[%s1 + $0x490] sm:$0xff]
      %v480 = vld [vmem:[%s1 + $0x498] sm:$0xff]
      %v481 = vld [vmem:[%s1 + $0x4a0] sm:$0xff]
      %v482 = vld [vmem:[%s1 + $0x4a8] sm:$0xff]
      %v483 = vld [vmem:[%s1 + $0x4b0] sm:$0xff]
      %v484 = vld [vmem:[%s1 + $0x4b8] sm:$0xff]
      %v485 = vld [vmem:[%s1 + $0x4c0] sm:$0xff]
      %v486 = vld [vmem:[%s1 + $0x4c8] sm:$0xff]
      %v487 = vld [vmem:[%s1 + $0x4d0] sm:$0xff]
      %v488 = vld [vmem:[%s1 + $0x4d8] sm:$0xff]
      %v489 = vld [vmem:[%s1 + $0x4e0] sm:$0xff]
      %v490 = vld [vmem:[%s1 + $0x4e8] sm:$0xff]
      %v491 = vld [vmem:[%s1 + $0x4f0] sm:$0xff]
      %v492 = vld [vmem:[%s1 + $0x4f8] sm:$0xff]
      %v493 = vld [vmem:[%s1 + $0x500] sm:$0xff]
      %v494 = vld [vmem:[%s1 + $0x508] sm:$0xff]
      %v495 = vld [vmem:[%s1 + $0x510] sm:$0xff]
      %v496 = vld [vmem:[%s1 + $0x518] sm:$0xff]
      %v497 = vld [vmem:[%s1 + $0x520] sm:$0xff]
      %v498 = vld [vmem:[%s1 + $0x528] sm:$0xff]
      %v499 = vld [vmem:[%s1 + $0x530] sm:$0xff]
      %v500 = vld [vmem:[%s1 + $0x538] sm:$0xff]
      %v501 = vld [vmem:[%s1 + $0x540] sm:$0xff]
      %v502 = vld [vmem:[%s1 + $0x548] sm:$0xff]
      %v503 = vld [vmem:[%s1 + $0x550] sm:$0xff]
      %v504 = vld [vmem:[%s1 + $0x558] sm:$0xff]
      %v505 = vld [vmem:[%s1 + $0x560] sm:$0xff]
      %v506 = vld [vmem:[%s1 + $0x568] sm:$0xff]
      %v507 = vld [vmem:[%s1 + $0x570] sm:$0xff]
      %v508 = vld [vmem:[%s1 + $0x578] sm:$0xff]
      %v509 = vld [vmem:[%s1 + $0x580] sm:$0xff]
      %v510 = vld [vmem:[%s1 + $0x588] sm:$0xff]
      %v511 = vld [vmem:[%s1 + $0x590] sm:$0xff]
      %v512 = vld [vmem:[%s1 + $0x598] sm:$0xff]
      %v513 = vld [vmem:[%s1 + $0x5a0] sm:$0xff]
      %v514 = vld [vmem:[%s1 + $0x5a8] sm:$0xff]
      %v515 = vld [vmem:[%s1 + $0x5b0] sm:$0xff]
      %v516 = vld [vmem:[%s1 + $0x5b8] sm:$0xff]
      %v517 = vld [vmem:[%s1 + $0x5c0] sm:$0xff]
      %v518 = vld [vmem:[%s1 + $0x5c8] sm:$0xff]
      %v519 = vld [vmem:[%s1 + $0x5d0] sm:$0xff]
      %v520 = vld [vmem:[%s1 + $0x5d8] sm:$0xff]
      %v521 = vld [vmem:[%s1 + $0x5e0] sm:$0xff]
      %v522 = vld [vmem:[%s1 + $0x5e8] sm:$0xff]
      %v523 = vld [vmem:[%s1 + $0x5f0] sm:$0xff]
      %v524 = vld [vmem:[%s1 + $0x5f8] sm:$0xff]
      %v525 = vld [vmem:[%s2] sm:$0xf]
      %v527 = vperm.slane %v525, 0
      %v528 = vperm.slane %v525, 1
      %v529 = vperm.slane %v525, 2
      %v530 = vperm.slane %v525, 3
      %v583 = vunpack.c.l.b16 %v285
      %v584 = vunpack.c.h.b16 %v285
      %v585 = vunpack.c.l.b16 %v286
      %v586 = vunpack.c.h.b16 %v286
      %v587 = vunpack.c.l.b16 %v287
      %v588 = vunpack.c.h.b16 %v287
      %v589 = vunpack.c.l.b16 %v288
      %v590 = vunpack.c.h.b16 %v288
      %v591 = vunpack.c.l.b16 %v289
      %v592 = vunpack.c.h.b16 %v289
      %v593 = vunpack.c.l.b16 %v290
      %v594 = vunpack.c.h.b16 %v290
      %v595 = vunpack.c.l.b16 %v291
      %v596 = vunpack.c.h.b16 %v291
      %v597 = vunpack.c.l.b16 %v292
      %v598 = vunpack.c.h.b16 %v292
      %v599 = vunpack.c.l.b16 %v293
      %v600 = vunpack.c.h.b16 %v293
      %v601 = vunpack.c.l.b16 %v294
      %v602 = vunpack.c.h.b16 %v294
      %v603 = vunpack.c.l.b16 %v295
      %v604 = vunpack.c.h.b16 %v295
      %v605 = vunpack.c.l.b16 %v296
      %v606 = vunpack.c.h.b16 %v296
      %v607 = vunpack.c.l.b16 %v297
      %v608 = vunpack.c.h.b16 %v297
      %v609 = vunpack.c.l.b16 %v298
      %v610 = vunpack.c.h.b16 %v298
      %v611 = vunpack.c.l.b16 %v299
      %v612 = vunpack.c.h.b16 %v299
      %v613 = vunpack.c.l.b16 %v300
      %v614 = vunpack.c.h.b16 %v300
      %v615 = vunpack.c.l.b16 %v301
      %v616 = vunpack.c.h.b16 %v301
      %v617 = vunpack.c.l.b16 %v302
      %v618 = vunpack.c.h.b16 %v302
      %v619 = vunpack.c.l.b16 %v303
      %v620 = vunpack.c.h.b16 %v303
      %v621 = vunpack.c.l.b16 %v304
      %v622 = vunpack.c.h.b16 %v304
      %v623 = vunpack.c.l.b16 %v305
      %v624 = vunpack.c.h.b16 %v305
      %v625 = vunpack.c.l.b16 %v306
      %v626 = vunpack.c.h.b16 %v306
      %v627 = vunpack.c.l.b16 %v307
      %v628 = vunpack.c.h.b16 %v307
      %v629 = vunpack.c.l.b16 %v308
      %v630 = vunpack.c.h.b16 %v308
      %v631 = vunpack.c.l.b16 %v309
      %v632 = vunpack.c.h.b16 %v309
      %v633 = vunpack.c.l.b16 %v310
      %v634 = vunpack.c.h.b16 %v310
      %v635 = vunpack.c.l.b16 %v311
      %v636 = vunpack.c.h.b16 %v311
      %v637 = vunpack.c.l.b16 %v312
      %v638 = vunpack.c.h.b16 %v312
      %v639 = vunpack.c.l.b16 %v313
      %v640 = vunpack.c.h.b16 %v313
      %v641 = vunpack.c.l.b16 %v314
      %v642 = vunpack.c.h.b16 %v314
      %v643 = vunpack.c.l.b16 %v315
      %v644 = vunpack.c.h.b16 %v315
      %v645 = vunpack.c.l.b16 %v316
      %v646 = vunpack.c.h.b16 %v316
      %v647 = vunpack.c.l.b16 %v317
      %v648 = vunpack.c.h.b16 %v317
      %v649 = vunpack.c.l.b16 %v318
      %v650 = vunpack.c.h.b16 %v318
      %v651 = vunpack.c.l.b16 %v319
      %v652 = vunpack.c.h.b16 %v319
      %v653 = vunpack.c.l.b16 %v320
      %v654 = vunpack.c.h.b16 %v320
      %v655 = vunpack.c.l.b16 %v321
      %v656 = vunpack.c.h.b16 %v321
      %v657 = vunpack.c.l.b16 %v322
      %v658 = vunpack.c.h.b16 %v322
      %v659 = vunpack.c.l.b16 %v323
      %v660 = vunpack.c.h.b16 %v323
      %v661 = vunpack.c.l.b16 %v324
      %v662 = vunpack.c.h.b16 %v324
      %v663 = vunpack.c.l.b16 %v325
      %v664 = vunpack.c.h.b16 %v325
      %v665 = vunpack.c.l.b16 %v326
      %v666 = vunpack.c.h.b16 %v326
      %v667 = vunpack.c.l.b16 %v327
      %v668 = vunpack.c.h.b16 %v327
      %v669 = vunpack.c.l.b16 %v328
      %v670 = vunpack.c.h.b16 %v328
      %v671 = vunpack.c.l.b16 %v329
      %v672 = vunpack.c.h.b16 %v329
      %v673 = vunpack.c.l.b16 %v330
      %v674 = vunpack.c.h.b16 %v330
      %v675 = vunpack.c.l.b16 %v331
      %v676 = vunpack.c.h.b16 %v331
      %v677 = vunpack.c.l.b16 %v332
      %v678 = vunpack.c.h.b16 %v332
      %v679 = vpack.c.b16 %v589, %v583
      %v680 = vpack.c.b16 %v590, %v584
      %v681 = vpack.c.b16 %v591, %v585
      %v682 = vpack.c.b16 %v592, %v586
      %v683 = vpack.c.b16 %v593, %v587
      %v684 = vpack.c.b16 %v594, %v588
      %v685 = vpack.c.b16 %v601, %v595
      %v686 = vpack.c.b16 %v602, %v596
      %v687 = vpack.c.b16 %v603, %v597
      %v688 = vpack.c.b16 %v604, %v598
      %v689 = vpack.c.b16 %v605, %v599
      %v690 = vpack.c.b16 %v606, %v600
      %v691 = vpack.c.b16 %v613, %v607
      %v692 = vpack.c.b16 %v614, %v608
      %v693 = vpack.c.b16 %v615, %v609
      %v694 = vpack.c.b16 %v616, %v610
      %v695 = vpack.c.b16 %v617, %v611
      %v696 = vpack.c.b16 %v618, %v612
      %v697 = vpack.c.b16 %v625, %v619
      %v698 = vpack.c.b16 %v626, %v620
      %v699 = vpack.c.b16 %v627, %v621
      %v700 = vpack.c.b16 %v628, %v622
      %v701 = vpack.c.b16 %v629, %v623
      %v702 = vpack.c.b16 %v630, %v624
      %v703 = vpack.c.b16 %v637, %v631
      %v704 = vpack.c.b16 %v638, %v632
      %v705 = vpack.c.b16 %v639, %v633
      %v706 = vpack.c.b16 %v640, %v634
      %v707 = vpack.c.b16 %v641, %v635
      %v708 = vpack.c.b16 %v642, %v636
      %v709 = vpack.c.b16 %v649, %v643
      %v710 = vpack.c.b16 %v650, %v644
      %v711 = vpack.c.b16 %v651, %v645
      %v712 = vpack.c.b16 %v652, %v646
      %v713 = vpack.c.b16 %v653, %v647
      %v714 = vpack.c.b16 %v654, %v648
      %v715 = vpack.c.b16 %v661, %v655
      %v716 = vpack.c.b16 %v662, %v656
      %v717 = vpack.c.b16 %v663, %v657
      %v718 = vpack.c.b16 %v664, %v658
      %v719 = vpack.c.b16 %v665, %v659
      %v720 = vpack.c.b16 %v666, %v660
      %v721 = vpack.c.b16 %v673, %v667
      %v722 = vpack.c.b16 %v674, %v668
      %v723 = vpack.c.b16 %v675, %v669
      %v724 = vpack.c.b16 %v676, %v670
      %v725 = vpack.c.b16 %v677, %v671
      %v726 = vpack.c.b16 %v678, %v672
      %v967 = vunpack.c.l.b16 %v333
      %v968 = vunpack.c.h.b16 %v333
      %v969 = vunpack.c.l.b16 %v334
      %v970 = vunpack.c.h.b16 %v334
      %v971 = vunpack.c.l.b16 %v335
      %v972 = vunpack.c.h.b16 %v335
      %v973 = vunpack.c.l.b16 %v336
      %v974 = vunpack.c.h.b16 %v336
      %v975 = vunpack.c.l.b16 %v337
      %v976 = vunpack.c.h.b16 %v337
      %v977 = vunpack.c.l.b16 %v338
      %v978 = vunpack.c.h.b16 %v338
      %v979 = vunpack.c.l.b16 %v339
      %v980 = vunpack.c.h.b16 %v339
      %v981 = vunpack.c.l.b16 %v340
      %v982 = vunpack.c.h.b16 %v340
      %v983 = vunpack.c.l.b16 %v341
      %v984 = vunpack.c.h.b16 %v341
      %v985 = vunpack.c.l.b16 %v342
      %v986 = vunpack.c.h.b16 %v342
      %v987 = vunpack.c.l.b16 %v343
      %v988 = vunpack.c.h.b16 %v343
      %v989 = vunpack.c.l.b16 %v344
      %v990 = vunpack.c.h.b16 %v344
      %v991 = vunpack.c.l.b16 %v345
      %v992 = vunpack.c.h.b16 %v345
      %v993 = vunpack.c.l.b16 %v346
      %v994 = vunpack.c.h.b16 %v346
      %v995 = vunpack.c.l.b16 %v347
      %v996 = vunpack.c.h.b16 %v347
      %v997 = vunpack.c.l.b16 %v348
      %v998 = vunpack.c.h.b16 %v348
      %v999 = vunpack.c.l.b16 %v349
      %v1000 = vunpack.c.h.b16 %v349
      %v1001 = vunpack.c.l.b16 %v350
      %v1002 = vunpack.c.h.b16 %v350
      %v1003 = vunpack.c.l.b16 %v351
      %v1004 = vunpack.c.h.b16 %v351
      %v1005 = vunpack.c.l.b16 %v352
      %v1006 = vunpack.c.h.b16 %v352
      %v1007 = vunpack.c.l.b16 %v353
      %v1008 = vunpack.c.h.b16 %v353
      %v1009 = vunpack.c.l.b16 %v354
      %v1010 = vunpack.c.h.b16 %v354
      %v1011 = vunpack.c.l.b16 %v355
      %v1012 = vunpack.c.h.b16 %v355
      %v1013 = vunpack.c.l.b16 %v356
      %v1014 = vunpack.c.h.b16 %v356
      %v1015 = vunpack.c.l.b16 %v357
      %v1016 = vunpack.c.h.b16 %v357
      %v1017 = vunpack.c.l.b16 %v358
      %v1018 = vunpack.c.h.b16 %v358
      %v1019 = vunpack.c.l.b16 %v359
      %v1020 = vunpack.c.h.b16 %v359
      %v1021 = vunpack.c.l.b16 %v360
      %v1022 = vunpack.c.h.b16 %v360
      %v1023 = vunpack.c.l.b16 %v361
      %v1024 = vunpack.c.h.b16 %v361
      %v1025 = vunpack.c.l.b16 %v362
      %v1026 = vunpack.c.h.b16 %v362
      %v1027 = vunpack.c.l.b16 %v363
      %v1028 = vunpack.c.h.b16 %v363
      %v1029 = vunpack.c.l.b16 %v364
      %v1030 = vunpack.c.h.b16 %v364
      %v1031 = vunpack.c.l.b16 %v365
      %v1032 = vunpack.c.h.b16 %v365
      %v1033 = vunpack.c.l.b16 %v366
      %v1034 = vunpack.c.h.b16 %v366
      %v1035 = vunpack.c.l.b16 %v367
      %v1036 = vunpack.c.h.b16 %v367
      %v1037 = vunpack.c.l.b16 %v368
      %v1038 = vunpack.c.h.b16 %v368
      %v1039 = vunpack.c.l.b16 %v369
      %v1040 = vunpack.c.h.b16 %v369
      %v1041 = vunpack.c.l.b16 %v370
      %v1042 = vunpack.c.h.b16 %v370
      %v1043 = vunpack.c.l.b16 %v371
      %v1044 = vunpack.c.h.b16 %v371
      %v1045 = vunpack.c.l.b16 %v372
      %v1046 = vunpack.c.h.b16 %v372
      %v1047 = vunpack.c.l.b16 %v373
      %v1048 = vunpack.c.h.b16 %v373
      %v1049 = vunpack.c.l.b16 %v374
      %v1050 = vunpack.c.h.b16 %v374
      %v1051 = vunpack.c.l.b16 %v375
      %v1052 = vunpack.c.h.b16 %v375
      %v1053 = vunpack.c.l.b16 %v376
      %v1054 = vunpack.c.h.b16 %v376
      %v1055 = vunpack.c.l.b16 %v377
      %v1056 = vunpack.c.h.b16 %v377
      %v1057 = vunpack.c.l.b16 %v378
      %v1058 = vunpack.c.h.b16 %v378
      %v1059 = vunpack.c.l.b16 %v379
      %v1060 = vunpack.c.h.b16 %v379
      %v1061 = vunpack.c.l.b16 %v380
      %v1062 = vunpack.c.h.b16 %v380
      %v1063 = vunpack.c.l.b16 %v381
      %v1064 = vunpack.c.h.b16 %v381
      %v1065 = vunpack.c.l.b16 %v382
      %v1066 = vunpack.c.h.b16 %v382
      %v1067 = vunpack.c.l.b16 %v383
      %v1068 = vunpack.c.h.b16 %v383
      %v1069 = vunpack.c.l.b16 %v384
      %v1070 = vunpack.c.h.b16 %v384
      %v1071 = vunpack.c.l.b16 %v385
      %v1072 = vunpack.c.h.b16 %v385
      %v1073 = vunpack.c.l.b16 %v386
      %v1074 = vunpack.c.h.b16 %v386
      %v1075 = vunpack.c.l.b16 %v387
      %v1076 = vunpack.c.h.b16 %v387
      %v1077 = vunpack.c.l.b16 %v388
      %v1078 = vunpack.c.h.b16 %v388
      %v1079 = vunpack.c.l.b16 %v389
      %v1080 = vunpack.c.h.b16 %v389
      %v1081 = vunpack.c.l.b16 %v390
      %v1082 = vunpack.c.h.b16 %v390
      %v1083 = vunpack.c.l.b16 %v391
      %v1084 = vunpack.c.h.b16 %v391
      %v1085 = vunpack.c.l.b16 %v392
      %v1086 = vunpack.c.h.b16 %v392
      %v1087 = vunpack.c.l.b16 %v393
      %v1088 = vunpack.c.h.b16 %v393
      %v1089 = vunpack.c.l.b16 %v394
      %v1090 = vunpack.c.h.b16 %v394
      %v1091 = vunpack.c.l.b16 %v395
      %v1092 = vunpack.c.h.b16 %v395
      %v1093 = vunpack.c.l.b16 %v396
      %v1094 = vunpack.c.h.b16 %v396
      %v1095 = vunpack.c.l.b16 %v397
      %v1096 = vunpack.c.h.b16 %v397
      %v1097 = vunpack.c.l.b16 %v398
      %v1098 = vunpack.c.h.b16 %v398
      %v1099 = vunpack.c.l.b16 %v399
      %v1100 = vunpack.c.h.b16 %v399
      %v1101 = vunpack.c.l.b16 %v400
      %v1102 = vunpack.c.h.b16 %v400
      %v1103 = vunpack.c.l.b16 %v401
      %v1104 = vunpack.c.h.b16 %v401
      %v1105 = vunpack.c.l.b16 %v402
      %v1106 = vunpack.c.h.b16 %v402
      %v1107 = vunpack.c.l.b16 %v403
      %v1108 = vunpack.c.h.b16 %v403
      %v1109 = vunpack.c.l.b16 %v404
      %v1110 = vunpack.c.h.b16 %v404
      %v1111 = vunpack.c.l.b16 %v405
      %v1112 = vunpack.c.h.b16 %v405
      %v1113 = vunpack.c.l.b16 %v406
      %v1114 = vunpack.c.h.b16 %v406
      %v1115 = vunpack.c.l.b16 %v407
      %v1116 = vunpack.c.h.b16 %v407
      %v1117 = vunpack.c.l.b16 %v408
      %v1118 = vunpack.c.h.b16 %v408
      %v1119 = vunpack.c.l.b16 %v409
      %v1120 = vunpack.c.h.b16 %v409
      %v1121 = vunpack.c.l.b16 %v410
      %v1122 = vunpack.c.h.b16 %v410
      %v1123 = vunpack.c.l.b16 %v411
      %v1124 = vunpack.c.h.b16 %v411
      %v1125 = vunpack.c.l.b16 %v412
      %v1126 = vunpack.c.h.b16 %v412
      %v1127 = vunpack.c.l.b16 %v413
      %v1128 = vunpack.c.h.b16 %v413
      %v1129 = vunpack.c.l.b16 %v414
      %v1130 = vunpack.c.h.b16 %v414
      %v1131 = vunpack.c.l.b16 %v415
      %v1132 = vunpack.c.h.b16 %v415
      %v1133 = vunpack.c.l.b16 %v416
      %v1134 = vunpack.c.h.b16 %v416
      %v1135 = vunpack.c.l.b16 %v417
      %v1136 = vunpack.c.h.b16 %v417
      %v1137 = vunpack.c.l.b16 %v418
      %v1138 = vunpack.c.h.b16 %v418
      %v1139 = vunpack.c.l.b16 %v419
      %v1140 = vunpack.c.h.b16 %v419
      %v1141 = vunpack.c.l.b16 %v420
      %v1142 = vunpack.c.h.b16 %v420
      %v1143 = vunpack.c.l.b16 %v421
      %v1144 = vunpack.c.h.b16 %v421
      %v1145 = vunpack.c.l.b16 %v422
      %v1146 = vunpack.c.h.b16 %v422
      %v1147 = vunpack.c.l.b16 %v423
      %v1148 = vunpack.c.h.b16 %v423
      %v1149 = vunpack.c.l.b16 %v424
      %v1150 = vunpack.c.h.b16 %v424
      %v1151 = vunpack.c.l.b16 %v425
      %v1152 = vunpack.c.h.b16 %v425
      %v1153 = vunpack.c.l.b16 %v426
      %v1154 = vunpack.c.h.b16 %v426
      %v1155 = vunpack.c.l.b16 %v427
      %v1156 = vunpack.c.h.b16 %v427
      %v1157 = vunpack.c.l.b16 %v428
      %v1158 = vunpack.c.h.b16 %v428
      %v1159 = vunpack.c.l.b16 %v429
      %v1160 = vunpack.c.h.b16 %v429
      %v1161 = vunpack.c.l.b16 %v430
      %v1162 = vunpack.c.h.b16 %v430
      %v1163 = vunpack.c.l.b16 %v431
      %v1164 = vunpack.c.h.b16 %v431
      %v1165 = vunpack.c.l.b16 %v432
      %v1166 = vunpack.c.h.b16 %v432
      %v1167 = vunpack.c.l.b16 %v433
      %v1168 = vunpack.c.h.b16 %v433
      %v1169 = vunpack.c.l.b16 %v434
      %v1170 = vunpack.c.h.b16 %v434
      %v1171 = vunpack.c.l.b16 %v435
      %v1172 = vunpack.c.h.b16 %v435
      %v1173 = vunpack.c.l.b16 %v436
      %v1174 = vunpack.c.h.b16 %v436
      %v1175 = vunpack.c.l.b16 %v437
      %v1176 = vunpack.c.h.b16 %v437
      %v1177 = vunpack.c.l.b16 %v438
      %v1178 = vunpack.c.h.b16 %v438
      %v1179 = vunpack.c.l.b16 %v439
      %v1180 = vunpack.c.h.b16 %v439
      %v1181 = vunpack.c.l.b16 %v440
      %v1182 = vunpack.c.h.b16 %v440
      %v1183 = vunpack.c.l.b16 %v441
      %v1184 = vunpack.c.h.b16 %v441
      %v1185 = vunpack.c.l.b16 %v442
      %v1186 = vunpack.c.h.b16 %v442
      %v1187 = vunpack.c.l.b16 %v443
      %v1188 = vunpack.c.h.b16 %v443
      %v1189 = vunpack.c.l.b16 %v444
      %v1190 = vunpack.c.h.b16 %v444
      %v1191 = vunpack.c.l.b16 %v445
      %v1192 = vunpack.c.h.b16 %v445
      %v1193 = vunpack.c.l.b16 %v446
      %v1194 = vunpack.c.h.b16 %v446
      %v1195 = vunpack.c.l.b16 %v447
      %v1196 = vunpack.c.h.b16 %v447
      %v1197 = vunpack.c.l.b16 %v448
      %v1198 = vunpack.c.h.b16 %v448
      %v1199 = vunpack.c.l.b16 %v449
      %v1200 = vunpack.c.h.b16 %v449
      %v1201 = vunpack.c.l.b16 %v450
      %v1202 = vunpack.c.h.b16 %v450
      %v1203 = vunpack.c.l.b16 %v451
      %v1204 = vunpack.c.h.b16 %v451
      %v1205 = vunpack.c.l.b16 %v452
      %v1206 = vunpack.c.h.b16 %v452
      %v1207 = vunpack.c.l.b16 %v453
      %v1208 = vunpack.c.h.b16 %v453
      %v1209 = vunpack.c.l.b16 %v454
      %v1210 = vunpack.c.h.b16 %v454
      %v1211 = vunpack.c.l.b16 %v455
      %v1212 = vunpack.c.h.b16 %v455
      %v1213 = vunpack.c.l.b16 %v456
      %v1214 = vunpack.c.h.b16 %v456
      %v1215 = vunpack.c.l.b16 %v457
      %v1216 = vunpack.c.h.b16 %v457
      %v1217 = vunpack.c.l.b16 %v458
      %v1218 = vunpack.c.h.b16 %v458
      %v1219 = vunpack.c.l.b16 %v459
      %v1220 = vunpack.c.h.b16 %v459
      %v1221 = vunpack.c.l.b16 %v460
      %v1222 = vunpack.c.h.b16 %v460
      %v1223 = vunpack.c.l.b16 %v461
      %v1224 = vunpack.c.h.b16 %v461
      %v1225 = vunpack.c.l.b16 %v462
      %v1226 = vunpack.c.h.b16 %v462
      %v1227 = vunpack.c.l.b16 %v463
      %v1228 = vunpack.c.h.b16 %v463
      %v1229 = vunpack.c.l.b16 %v464
      %v1230 = vunpack.c.h.b16 %v464
      %v1231 = vunpack.c.l.b16 %v465
      %v1232 = vunpack.c.h.b16 %v465
      %v1233 = vunpack.c.l.b16 %v466
      %v1234 = vunpack.c.h.b16 %v466
      %v1235 = vunpack.c.l.b16 %v467
      %v1236 = vunpack.c.h.b16 %v467
      %v1237 = vunpack.c.l.b16 %v468
      %v1238 = vunpack.c.h.b16 %v468
      %v1239 = vunpack.c.l.b16 %v469
      %v1240 = vunpack.c.h.b16 %v469
      %v1241 = vunpack.c.l.b16 %v470
      %v1242 = vunpack.c.h.b16 %v470
      %v1243 = vunpack.c.l.b16 %v471
      %v1244 = vunpack.c.h.b16 %v471
      %v1245 = vunpack.c.l.b16 %v472
      %v1246 = vunpack.c.h.b16 %v472
      %v1247 = vunpack.c.l.b16 %v473
      %v1248 = vunpack.c.h.b16 %v473
      %v1249 = vunpack.c.l.b16 %v474
      %v1250 = vunpack.c.h.b16 %v474
      %v1251 = vunpack.c.l.b16 %v475
      %v1252 = vunpack.c.h.b16 %v475
      %v1253 = vunpack.c.l.b16 %v476
      %v1254 = vunpack.c.h.b16 %v476
      %v1255 = vunpack.c.l.b16 %v477
      %v1256 = vunpack.c.h.b16 %v477
      %v1257 = vunpack.c.l.b16 %v478
      %v1258 = vunpack.c.h.b16 %v478
      %v1259 = vunpack.c.l.b16 %v479
      %v1260 = vunpack.c.h.b16 %v479
      %v1261 = vunpack.c.l.b16 %v480
      %v1262 = vunpack.c.h.b16 %v480
      %v1263 = vunpack.c.l.b16 %v481
      %v1264 = vunpack.c.h.b16 %v481
      %v1265 = vunpack.c.l.b16 %v482
      %v1266 = vunpack.c.h.b16 %v482
      %v1267 = vunpack.c.l.b16 %v483
      %v1268 = vunpack.c.h.b16 %v483
      %v1269 = vunpack.c.l.b16 %v484
      %v1270 = vunpack.c.h.b16 %v484
      %v1271 = vunpack.c.l.b16 %v485
      %v1272 = vunpack.c.h.b16 %v485
      %v1273 = vunpack.c.l.b16 %v486
      %v1274 = vunpack.c.h.b16 %v486
      %v1275 = vunpack.c.l.b16 %v487
      %v1276 = vunpack.c.h.b16 %v487
      %v1277 = vunpack.c.l.b16 %v488
      %v1278 = vunpack.c.h.b16 %v488
      %v1279 = vunpack.c.l.b16 %v489
      %v1280 = vunpack.c.h.b16 %v489
      %v1281 = vunpack.c.l.b16 %v490
      %v1282 = vunpack.c.h.b16 %v490
      %v1283 = vunpack.c.l.b16 %v491
      %v1284 = vunpack.c.h.b16 %v491
      %v1285 = vunpack.c.l.b16 %v492
      %v1286 = vunpack.c.h.b16 %v492
      %v1287 = vunpack.c.l.b16 %v493
      %v1288 = vunpack.c.h.b16 %v493
      %v1289 = vunpack.c.l.b16 %v494
      %v1290 = vunpack.c.h.b16 %v494
      %v1291 = vunpack.c.l.b16 %v495
      %v1292 = vunpack.c.h.b16 %v495
      %v1293 = vunpack.c.l.b16 %v496
      %v1294 = vunpack.c.h.b16 %v496
      %v1295 = vunpack.c.l.b16 %v497
      %v1296 = vunpack.c.h.b16 %v497
      %v1297 = vunpack.c.l.b16 %v498
      %v1298 = vunpack.c.h.b16 %v498
      %v1299 = vunpack.c.l.b16 %v499
      %v1300 = vunpack.c.h.b16 %v499
      %v1301 = vunpack.c.l.b16 %v500
      %v1302 = vunpack.c.h.b16 %v500
      %v1303 = vunpack.c.l.b16 %v501
      %v1304 = vunpack.c.h.b16 %v501
      %v1305 = vunpack.c.l.b16 %v502
      %v1306 = vunpack.c.h.b16 %v502
      %v1307 = vunpack.c.l.b16 %v503
      %v1308 = vunpack.c.h.b16 %v503
      %v1309 = vunpack.c.l.b16 %v504
      %v1310 = vunpack.c.h.b16 %v504
      %v1311 = vunpack.c.l.b16 %v505
      %v1312 = vunpack.c.h.b16 %v505
      %v1313 = vunpack.c.l.b16 %v506
      %v1314 = vunpack.c.h.b16 %v506
      %v1315 = vunpack.c.l.b16 %v507
      %v1316 = vunpack.c.h.b16 %v507
      %v1317 = vunpack.c.l.b16 %v508
      %v1318 = vunpack.c.h.b16 %v508
      %v1319 = vunpack.c.l.b16 %v509
      %v1320 = vunpack.c.h.b16 %v509
      %v1321 = vunpack.c.l.b16 %v510
      %v1322 = vunpack.c.h.b16 %v510
      %v1323 = vunpack.c.l.b16 %v511
      %v1324 = vunpack.c.h.b16 %v511
      %v1325 = vunpack.c.l.b16 %v512
      %v1326 = vunpack.c.h.b16 %v512
      %v1327 = vunpack.c.l.b16 %v513
      %v1328 = vunpack.c.h.b16 %v513
      %v1329 = vunpack.c.l.b16 %v514
      %v1330 = vunpack.c.h.b16 %v514
      %v1331 = vunpack.c.l.b16 %v515
      %v1332 = vunpack.c.h.b16 %v515
      %v1333 = vunpack.c.l.b16 %v516
      %v1334 = vunpack.c.h.b16 %v516
      %v1335 = vunpack.c.l.b16 %v517
      %v1336 = vunpack.c.h.b16 %v517
      %v1337 = vunpack.c.l.b16 %v518
      %v1338 = vunpack.c.h.b16 %v518
      %v1339 = vunpack.c.l.b16 %v519
      %v1340 = vunpack.c.h.b16 %v519
      %v1341 = vunpack.c.l.b16 %v520
      %v1342 = vunpack.c.h.b16 %v520
      %v1343 = vunpack.c.l.b16 %v521
      %v1344 = vunpack.c.h.b16 %v521
      %v1345 = vunpack.c.l.b16 %v522
      %v1346 = vunpack.c.h.b16 %v522
      %v1347 = vunpack.c.l.b16 %v523
      %v1348 = vunpack.c.h.b16 %v523
      %v1349 = vunpack.c.l.b16 %v524
      %v1350 = vunpack.c.h.b16 %v524
      %v1351 = vpack.c.b16 %v971, %v967
      %v1352 = vpack.c.b16 %v972, %v968
      %v1353 = vpack.c.b16 %v973, %v969
      %v1354 = vpack.c.b16 %v974, %v970
      %v1355 = vpack.c.b16 %v979, %v975
      %v1356 = vpack.c.b16 %v980, %v976
      %v1357 = vpack.c.b16 %v981, %v977
      %v1358 = vpack.c.b16 %v982, %v978
      %v1359 = vpack.c.b16 %v987, %v983
      %v1360 = vpack.c.b16 %v988, %v984
      %v1361 = vpack.c.b16 %v989, %v985
      %v1362 = vpack.c.b16 %v990, %v986
      %v1363 = vpack.c.b16 %v995, %v991
      %v1364 = vpack.c.b16 %v996, %v992
      %v1365 = vpack.c.b16 %v997, %v993
      %v1366 = vpack.c.b16 %v998, %v994
      %v1367 = vpack.c.b16 %v1003, %v999
      %v1368 = vpack.c.b16 %v1004, %v1000
      %v1369 = vpack.c.b16 %v1005, %v1001
      %v1370 = vpack.c.b16 %v1006, %v1002
      %v1371 = vpack.c.b16 %v1011, %v1007
      %v1372 = vpack.c.b16 %v1012, %v1008
      %v1373 = vpack.c.b16 %v1013, %v1009
      %v1374 = vpack.c.b16 %v1014, %v1010
      %v1375 = vpack.c.b16 %v1019, %v1015
      %v1376 = vpack.c.b16 %v1020, %v1016
      %v1377 = vpack.c.b16 %v1021, %v1017
      %v1378 = vpack.c.b16 %v1022, %v1018
      %v1379 = vpack.c.b16 %v1027, %v1023
      %v1380 = vpack.c.b16 %v1028, %v1024
      %v1381 = vpack.c.b16 %v1029, %v1025
      %v1382 = vpack.c.b16 %v1030, %v1026
      %v1383 = vpack.c.b16 %v1035, %v1031
      %v1384 = vpack.c.b16 %v1036, %v1032
      %v1385 = vpack.c.b16 %v1037, %v1033
      %v1386 = vpack.c.b16 %v1038, %v1034
      %v1387 = vpack.c.b16 %v1043, %v1039
      %v1388 = vpack.c.b16 %v1044, %v1040
      %v1389 = vpack.c.b16 %v1045, %v1041
      %v1390 = vpack.c.b16 %v1046, %v1042
      %v1391 = vpack.c.b16 %v1051, %v1047
      %v1392 = vpack.c.b16 %v1052, %v1048
      %v1393 = vpack.c.b16 %v1053, %v1049
      %v1394 = vpack.c.b16 %v1054, %v1050
      %v1395 = vpack.c.b16 %v1059, %v1055
      %v1396 = vpack.c.b16 %v1060, %v1056
      %v1397 = vpack.c.b16 %v1061, %v1057
      %v1398 = vpack.c.b16 %v1062, %v1058
      %v1399 = vpack.c.b16 %v1067, %v1063
      %v1400 = vpack.c.b16 %v1068, %v1064
      %v1401 = vpack.c.b16 %v1069, %v1065
      %v1402 = vpack.c.b16 %v1070, %v1066
      %v1403 = vpack.c.b16 %v1075, %v1071
      %v1404 = vpack.c.b16 %v1076, %v1072
      %v1405 = vpack.c.b16 %v1077, %v1073
      %v1406 = vpack.c.b16 %v1078, %v1074
      %v1407 = vpack.c.b16 %v1083, %v1079
      %v1408 = vpack.c.b16 %v1084, %v1080
      %v1409 = vpack.c.b16 %v1085, %v1081
      %v1410 = vpack.c.b16 %v1086, %v1082
      %v1411 = vpack.c.b16 %v1091, %v1087
      %v1412 = vpack.c.b16 %v1092, %v1088
      %v1413 = vpack.c.b16 %v1093, %v1089
      %v1414 = vpack.c.b16 %v1094, %v1090
      %v1415 = vpack.c.b16 %v1099, %v1095
      %v1416 = vpack.c.b16 %v1100, %v1096
      %v1417 = vpack.c.b16 %v1101, %v1097
      %v1418 = vpack.c.b16 %v1102, %v1098
      %v1419 = vpack.c.b16 %v1107, %v1103
      %v1420 = vpack.c.b16 %v1108, %v1104
      %v1421 = vpack.c.b16 %v1109, %v1105
      %v1422 = vpack.c.b16 %v1110, %v1106
      %v1423 = vpack.c.b16 %v1115, %v1111
      %v1424 = vpack.c.b16 %v1116, %v1112
      %v1425 = vpack.c.b16 %v1117, %v1113
      %v1426 = vpack.c.b16 %v1118, %v1114
      %v1427 = vpack.c.b16 %v1123, %v1119
      %v1428 = vpack.c.b16 %v1124, %v1120
      %v1429 = vpack.c.b16 %v1125, %v1121
      %v1430 = vpack.c.b16 %v1126, %v1122
      %v1431 = vpack.c.b16 %v1131, %v1127
      %v1432 = vpack.c.b16 %v1132, %v1128
      %v1433 = vpack.c.b16 %v1133, %v1129
      %v1434 = vpack.c.b16 %v1134, %v1130
      %v1435 = vpack.c.b16 %v1139, %v1135
      %v1436 = vpack.c.b16 %v1140, %v1136
      %v1437 = vpack.c.b16 %v1141, %v1137
      %v1438 = vpack.c.b16 %v1142, %v1138
      %v1439 = vpack.c.b16 %v1147, %v1143
      %v1440 = vpack.c.b16 %v1148, %v1144
      %v1441 = vpack.c.b16 %v1149, %v1145
      %v1442 = vpack.c.b16 %v1150, %v1146
      %v1443 = vpack.c.b16 %v1155, %v1151
      %v1444 = vpack.c.b16 %v1156, %v1152
      %v1445 = vpack.c.b16 %v1157, %v1153
      %v1446 = vpack.c.b16 %v1158, %v1154
      %v1447 = vpack.c.b16 %v1163, %v1159
      %v1448 = vpack.c.b16 %v1164, %v1160
      %v1449 = vpack.c.b16 %v1165, %v1161
      %v1450 = vpack.c.b16 %v1166, %v1162
      %v1451 = vpack.c.b16 %v1171, %v1167
      %v1452 = vpack.c.b16 %v1172, %v1168
      %v1453 = vpack.c.b16 %v1173, %v1169
      %v1454 = vpack.c.b16 %v1174, %v1170
      %v1455 = vpack.c.b16 %v1179, %v1175
      %v1456 = vpack.c.b16 %v1180, %v1176
      %v1457 = vpack.c.b16 %v1181, %v1177
      %v1458 = vpack.c.b16 %v1182, %v1178
      %v1459 = vpack.c.b16 %v1187, %v1183
      %v1460 = vpack.c.b16 %v1188, %v1184
      %v1461 = vpack.c.b16 %v1189, %v1185
      %v1462 = vpack.c.b16 %v1190, %v1186
      %v1463 = vpack.c.b16 %v1195, %v1191
      %v1464 = vpack.c.b16 %v1196, %v1192
      %v1465 = vpack.c.b16 %v1197, %v1193
      %v1466 = vpack.c.b16 %v1198, %v1194
      %v1467 = vpack.c.b16 %v1203, %v1199
      %v1468 = vpack.c.b16 %v1204, %v1200
      %v1469 = vpack.c.b16 %v1205, %v1201
      %v1470 = vpack.c.b16 %v1206, %v1202
      %v1471 = vpack.c.b16 %v1211, %v1207
      %v1472 = vpack.c.b16 %v1212, %v1208
      %v1473 = vpack.c.b16 %v1213, %v1209
      %v1474 = vpack.c.b16 %v1214, %v1210
      %v1475 = vpack.c.b16 %v1219, %v1215
      %v1476 = vpack.c.b16 %v1220, %v1216
      %v1477 = vpack.c.b16 %v1221, %v1217
      %v1478 = vpack.c.b16 %v1222, %v1218
      %v1479 = vpack.c.b16 %v1227, %v1223
      %v1480 = vpack.c.b16 %v1228, %v1224
      %v1481 = vpack.c.b16 %v1229, %v1225
      %v1482 = vpack.c.b16 %v1230, %v1226
      %v1483 = vpack.c.b16 %v1235, %v1231
      %v1484 = vpack.c.b16 %v1236, %v1232
      %v1485 = vpack.c.b16 %v1237, %v1233
      %v1486 = vpack.c.b16 %v1238, %v1234
      %v1487 = vpack.c.b16 %v1243, %v1239
      %v1488 = vpack.c.b16 %v1244, %v1240
      %v1489 = vpack.c.b16 %v1245, %v1241
      %v1490 = vpack.c.b16 %v1246, %v1242
      %v1491 = vpack.c.b16 %v1251, %v1247
      %v1492 = vpack.c.b16 %v1252, %v1248
      %v1493 = vpack.c.b16 %v1253, %v1249
      %v1494 = vpack.c.b16 %v1254, %v1250
      %v1495 = vpack.c.b16 %v1259, %v1255
      %v1496 = vpack.c.b16 %v1260, %v1256
      %v1497 = vpack.c.b16 %v1261, %v1257
      %v1498 = vpack.c.b16 %v1262, %v1258
      %v1499 = vpack.c.b16 %v1267, %v1263
      %v1500 = vpack.c.b16 %v1268, %v1264
      %v1501 = vpack.c.b16 %v1269, %v1265
      %v1502 = vpack.c.b16 %v1270, %v1266
      %v1503 = vpack.c.b16 %v1275, %v1271
      %v1504 = vpack.c.b16 %v1276, %v1272
      %v1505 = vpack.c.b16 %v1277, %v1273
      %v1506 = vpack.c.b16 %v1278, %v1274
      %v1507 = vpack.c.b16 %v1283, %v1279
      %v1508 = vpack.c.b16 %v1284, %v1280
      %v1509 = vpack.c.b16 %v1285, %v1281
      %v1510 = vpack.c.b16 %v1286, %v1282
      %v1511 = vpack.c.b16 %v1291, %v1287
      %v1512 = vpack.c.b16 %v1292, %v1288
      %v1513 = vpack.c.b16 %v1293, %v1289
      %v1514 = vpack.c.b16 %v1294, %v1290
      %v1515 = vpack.c.b16 %v1299, %v1295
      %v1516 = vpack.c.b16 %v1300, %v1296
      %v1517 = vpack.c.b16 %v1301, %v1297
      %v1518 = vpack.c.b16 %v1302, %v1298
      %v1519 = vpack.c.b16 %v1307, %v1303
      %v1520 = vpack.c.b16 %v1308, %v1304
      %v1521 = vpack.c.b16 %v1309, %v1305
      %v1522 = vpack.c.b16 %v1310, %v1306
      %v1523 = vpack.c.b16 %v1315, %v1311
      %v1524 = vpack.c.b16 %v1316, %v1312
      %v1525 = vpack.c.b16 %v1317, %v1313
      %v1526 = vpack.c.b16 %v1318, %v1314
      %v1527 = vpack.c.b16 %v1323, %v1319
      %v1528 = vpack.c.b16 %v1324, %v1320
      %v1529 = vpack.c.b16 %v1325, %v1321
      %v1530 = vpack.c.b16 %v1326, %v1322
      %v1531 = vpack.c.b16 %v1331, %v1327
      %v1532 = vpack.c.b16 %v1332, %v1328
      %v1533 = vpack.c.b16 %v1333, %v1329
      %v1534 = vpack.c.b16 %v1334, %v1330
      %v1535 = vpack.c.b16 %v1339, %v1335
      %v1536 = vpack.c.b16 %v1340, %v1336
      %v1537 = vpack.c.b16 %v1341, %v1337
      %v1538 = vpack.c.b16 %v1342, %v1338
      %v1539 = vpack.c.b16 %v1347, %v1343
      %v1540 = vpack.c.b16 %v1348, %v1344
      %v1541 = vpack.c.b16 %v1349, %v1345
      %v1542 = vpack.c.b16 %v1350, %v1346
      %1735 = vmatpush.bf16.msra.mxu0 %v1379
      %1736 = vmatpush.bf16.msra.mxu0 %v1375
      %1737 = vmatpush.bf16.msra.mxu0 %v1371
      %1738 = vmatpush.bf16.msra.mxu0 %v1367
      %1739 = vmatpush.bf16.msra.mxu0 %v1363
      %1740 = vmatpush.bf16.msra.mxu0 %v1359
      %1741 = vmatpush.bf16.msra.mxu0 %v1355
      %1742 = vmatpush.bf16.msra.mxu0 %v1351
      %1743 = vmatmul.bf16.gmra.mxu0 %v679
      %v1744 = vpop.f32.mrf.mxu0
      %v1745 = vadd.f32 %v527, %v1744
      %v1746 = vpop.f32.mrf.mxu0
      %v1747 = vadd.f32 %v527, %v1746
      %1748 = vmatmul.bf16.gmra.mxu0 %v685
      %v1749 = vpop.f32.mrf.mxu0
      %v1750 = vadd.f32 %v527, %v1749
      %v1751 = vpop.f32.mrf.mxu0
      %v1752 = vadd.f32 %v527, %v1751
      %1753 = vmatmul.bf16.gmra.mxu0 %v691
      %v1754 = vpop.f32.mrf.mxu0
      %v1755 = vadd.f32 %v527, %v1754
      %v1756 = vpop.f32.mrf.mxu0
      %v1757 = vadd.f32 %v527, %v1756
      %1758 = vmatmul.bf16.gmra.mxu0 %v697
      %v1759 = vpop.f32.mrf.mxu0
      %v1760 = vadd.f32 %v527, %v1759
      %v1761 = vpop.f32.mrf.mxu0
      %v1762 = vadd.f32 %v527, %v1761
      %1763 = vmatmul.bf16.gmra.mxu0 %v703
      %v1764 = vpop.f32.mrf.mxu0
      %v1765 = vadd.f32 %v527, %v1764
      %v1766 = vpop.f32.mrf.mxu0
      %v1767 = vadd.f32 %v527, %v1766
      %1768 = vmatmul.bf16.gmra.mxu0 %v709
      %v1769 = vpop.f32.mrf.mxu0
      %v1770 = vadd.f32 %v527, %v1769
      %v1771 = vpop.f32.mrf.mxu0
      %v1772 = vadd.f32 %v527, %v1771
      %1773 = vmatmul.bf16.gmra.mxu0 %v715
      %v1774 = vpop.f32.mrf.mxu0
      %v1775 = vadd.f32 %v527, %v1774
      %v1776 = vpop.f32.mrf.mxu0
      %v1777 = vadd.f32 %v527, %v1776
      %1778 = vmatmul.bf16.gmra.mxu0 %v721
      %v1779 = vpop.f32.mrf.mxu0
      %v1780 = vadd.f32 %v527, %v1779
      %v1781 = vpop.f32.mrf.mxu0
      %v1782 = vadd.f32 %v527, %v1781
      %1783 = vdwg.mxu0
      %1784 = vmatpush.bf16.msra.mxu0 %v1411
      %1785 = vmatpush.bf16.msra.mxu0 %v1407
      %1786 = vmatpush.bf16.msra.mxu0 %v1403
      %1787 = vmatpush.bf16.msra.mxu0 %v1399
      %1788 = vmatpush.bf16.msra.mxu0 %v1395
      %1789 = vmatpush.bf16.msra.mxu0 %v1391
      %1790 = vmatpush.bf16.msra.mxu0 %v1387
      %1791 = vmatpush.bf16.msra.mxu0 %v1383
      %1792 = vmatmul.bf16.gmra.mxu0 %v680
      %v1793 = vpop.f32.mrf.mxu0
      %v1794 = vadd.f32 %v1745, %v1793
      %v1795 = vpop.f32.mrf.mxu0
      %v1796 = vadd.f32 %v1747, %v1795
      %1797 = vmatmul.bf16.gmra.mxu0 %v686
      %v1798 = vpop.f32.mrf.mxu0
      %v1799 = vadd.f32 %v1750, %v1798
      %v1800 = vpop.f32.mrf.mxu0
      %v1801 = vadd.f32 %v1752, %v1800
      %1802 = vmatmul.bf16.gmra.mxu0 %v692
      %v1803 = vpop.f32.mrf.mxu0
      %v1804 = vadd.f32 %v1755, %v1803
      %v1805 = vpop.f32.mrf.mxu0
      %v1806 = vadd.f32 %v1757, %v1805
      %1807 = vmatmul.bf16.gmra.mxu0 %v698
      %v1808 = vpop.f32.mrf.mxu0
      %v1809 = vadd.f32 %v1760, %v1808
      %v1810 = vpop.f32.mrf.mxu0
      %v1811 = vadd.f32 %v1762, %v1810
      %1812 = vmatmul.bf16.gmra.mxu0 %v704
      %v1813 = vpop.f32.mrf.mxu0
      %v1814 = vadd.f32 %v1765, %v1813
      %v1815 = vpop.f32.mrf.mxu0
      %v1816 = vadd.f32 %v1767, %v1815
      %1817 = vmatmul.bf16.gmra.mxu0 %v710
      %v1818 = vpop.f32.mrf.mxu0
      %v1819 = vadd.f32 %v1770, %v1818
      %v1820 = vpop.f32.mrf.mxu0
      %v1821 = vadd.f32 %v1772, %v1820
      %1822 = vmatmul.bf16.gmra.mxu0 %v716
      %v1823 = vpop.f32.mrf.mxu0
      %v1824 = vadd.f32 %v1775, %v1823
      %v1825 = vpop.f32.mrf.mxu0
      %v1826 = vadd.f32 %v1777, %v1825
      %1827 = vmatmul.bf16.gmra.mxu0 %v722
      %v1828 = vpop.f32.mrf.mxu0
      %v1829 = vadd.f32 %v1780, %v1828
      %v1830 = vpop.f32.mrf.mxu0
      %v1831 = vadd.f32 %v1782, %v1830
      %1832 = vdwg.mxu0
      %1833 = vmatpush.bf16.msra.mxu0 %v1443
      %1834 = vmatpush.bf16.msra.mxu0 %v1439
      %1835 = vmatpush.bf16.msra.mxu0 %v1435
      %1836 = vmatpush.bf16.msra.mxu0 %v1431
      %1837 = vmatpush.bf16.msra.mxu0 %v1427
      %1838 = vmatpush.bf16.msra.mxu0 %v1423
      %1839 = vmatpush.bf16.msra.mxu0 %v1419
      %1840 = vmatpush.bf16.msra.mxu0 %v1415
      %1841 = vmatmul.bf16.gmra.mxu0 %v681
      %v1842 = vpop.f32.mrf.mxu0
      %v1843 = vadd.f32 %v1794, %v1842
      %v1844 = vpop.f32.mrf.mxu0
      %v1845 = vadd.f32 %v1796, %v1844
      %1846 = vmatmul.bf16.gmra.mxu0 %v687
      %v1847 = vpop.f32.mrf.mxu0
      %v1848 = vadd.f32 %v1799, %v1847
      %v1849 = vpop.f32.mrf.mxu0
      %v1850 = vadd.f32 %v1801, %v1849
      %1851 = vmatmul.bf16.gmra.mxu0 %v693
      %v1852 = vpop.f32.mrf.mxu0
      %v1853 = vadd.f32 %v1804, %v1852
      %v1854 = vpop.f32.mrf.mxu0
      %v1855 = vadd.f32 %v1806, %v1854
      %1856 = vmatmul.bf16.gmra.mxu0 %v699
      %v1857 = vpop.f32.mrf.mxu0
      %v1858 = vadd.f32 %v1809, %v1857
      %v1859 = vpop.f32.mrf.mxu0
      %v1860 = vadd.f32 %v1811, %v1859
      %1861 = vmatmul.bf16.gmra.mxu0 %v705
      %v1862 = vpop.f32.mrf.mxu0
      %v1863 = vadd.f32 %v1814, %v1862
      %v1864 = vpop.f32.mrf.mxu0
      %v1865 = vadd.f32 %v1816, %v1864
      %1866 = vmatmul.bf16.gmra.mxu0 %v711
      %v1867 = vpop.f32.mrf.mxu0
      %v1868 = vadd.f32 %v1819, %v1867
      %v1869 = vpop.f32.mrf.mxu0
      %v1870 = vadd.f32 %v1821, %v1869
      %1871 = vmatmul.bf16.gmra.mxu0 %v717
      %v1872 = vpop.f32.mrf.mxu0
      %v1873 = vadd.f32 %v1824, %v1872
      %v1874 = vpop.f32.mrf.mxu0
      %v1875 = vadd.f32 %v1826, %v1874
      %1876 = vmatmul.bf16.gmra.mxu0 %v723
      %v1877 = vpop.f32.mrf.mxu0
      %v1878 = vadd.f32 %v1829, %v1877
      %v1879 = vpop.f32.mrf.mxu0
      %v1880 = vadd.f32 %v1831, %v1879
      %1881 = vdwg.mxu0
      %1882 = vmatpush.bf16.msra.mxu0 %v1475
      %1883 = vmatpush.bf16.msra.mxu0 %v1471
      %1884 = vmatpush.bf16.msra.mxu0 %v1467
      %1885 = vmatpush.bf16.msra.mxu0 %v1463
      %1886 = vmatpush.bf16.msra.mxu0 %v1459
      %1887 = vmatpush.bf16.msra.mxu0 %v1455
      %1888 = vmatpush.bf16.msra.mxu0 %v1451
      %1889 = vmatpush.bf16.msra.mxu0 %v1447
      %1890 = vmatmul.bf16.gmra.mxu0 %v682
      %v1891 = vpop.f32.mrf.mxu0
      %v1892 = vadd.f32 %v1843, %v1891
      %v1893 = vpop.f32.mrf.mxu0
      %v1894 = vadd.f32 %v1845, %v1893
      %1895 = vmatmul.bf16.gmra.mxu0 %v688
      %v1896 = vpop.f32.mrf.mxu0
      %v1897 = vadd.f32 %v1848, %v1896
      %v1898 = vpop.f32.mrf.mxu0
      %v1899 = vadd.f32 %v1850, %v1898
      %1900 = vmatmul.bf16.gmra.mxu0 %v694
      %v1901 = vpop.f32.mrf.mxu0
      %v1902 = vadd.f32 %v1853, %v1901
      %v1903 = vpop.f32.mrf.mxu0
      %v1904 = vadd.f32 %v1855, %v1903
      %1905 = vmatmul.bf16.gmra.mxu0 %v700
      %v1906 = vpop.f32.mrf.mxu0
      %v1907 = vadd.f32 %v1858, %v1906
      %v1908 = vpop.f32.mrf.mxu0
      %v1909 = vadd.f32 %v1860, %v1908
      %1910 = vmatmul.bf16.gmra.mxu0 %v706
      %v1911 = vpop.f32.mrf.mxu0
      %v1912 = vadd.f32 %v1863, %v1911
      %v1913 = vpop.f32.mrf.mxu0
      %v1914 = vadd.f32 %v1865, %v1913
      %1915 = vmatmul.bf16.gmra.mxu0 %v712
      %v1916 = vpop.f32.mrf.mxu0
      %v1917 = vadd.f32 %v1868, %v1916
      %v1918 = vpop.f32.mrf.mxu0
      %v1919 = vadd.f32 %v1870, %v1918
      %1920 = vmatmul.bf16.gmra.mxu0 %v718
      %v1921 = vpop.f32.mrf.mxu0
      %v1922 = vadd.f32 %v1873, %v1921
      %v1923 = vpop.f32.mrf.mxu0
      %v1924 = vadd.f32 %v1875, %v1923
      %1925 = vmatmul.bf16.gmra.mxu0 %v724
      %v1926 = vpop.f32.mrf.mxu0
      %v1927 = vadd.f32 %v1878, %v1926
      %v1928 = vpop.f32.mrf.mxu0
      %v1929 = vadd.f32 %v1880, %v1928
      %1930 = vdwg.mxu0
      %1931 = vmatpush.bf16.msra.mxu0 %v1507
      %1932 = vmatpush.bf16.msra.mxu0 %v1503
      %1933 = vmatpush.bf16.msra.mxu0 %v1499
      %1934 = vmatpush.bf16.msra.mxu0 %v1495
      %1935 = vmatpush.bf16.msra.mxu0 %v1491
      %1936 = vmatpush.bf16.msra.mxu0 %v1487
      %1937 = vmatpush.bf16.msra.mxu0 %v1483
      %1938 = vmatpush.bf16.msra.mxu0 %v1479
      %1939 = vmatmul.bf16.gmra.mxu0 %v683
      %v1940 = vpop.f32.mrf.mxu0
      %v1941 = vadd.f32 %v1892, %v1940
      %v1942 = vpop.f32.mrf.mxu0
      %v1943 = vadd.f32 %v1894, %v1942
      %1944 = vmatmul.bf16.gmra.mxu0 %v689
      %v1945 = vpop.f32.mrf.mxu0
      %v1946 = vadd.f32 %v1897, %v1945
      %v1947 = vpop.f32.mrf.mxu0
      %v1948 = vadd.f32 %v1899, %v1947
      %1949 = vmatmul.bf16.gmra.mxu0 %v695
      %v1950 = vpop.f32.mrf.mxu0
      %v1951 = vadd.f32 %v1902, %v1950
      %v1952 = vpop.f32.mrf.mxu0
      %v1953 = vadd.f32 %v1904, %v1952
      %1954 = vmatmul.bf16.gmra.mxu0 %v701
      %v1955 = vpop.f32.mrf.mxu0
      %v1956 = vadd.f32 %v1907, %v1955
      %v1957 = vpop.f32.mrf.mxu0
      %v1958 = vadd.f32 %v1909, %v1957
      %1959 = vmatmul.bf16.gmra.mxu0 %v707
      %v1960 = vpop.f32.mrf.mxu0
      %v1961 = vadd.f32 %v1912, %v1960
      %v1962 = vpop.f32.mrf.mxu0
      %v1963 = vadd.f32 %v1914, %v1962
      %1964 = vmatmul.bf16.gmra.mxu0 %v713
      %v1965 = vpop.f32.mrf.mxu0
      %v1966 = vadd.f32 %v1917, %v1965
      %v1967 = vpop.f32.mrf.mxu0
      %v1968 = vadd.f32 %v1919, %v1967
      %1969 = vmatmul.bf16.gmra.mxu0 %v719
      %v1970 = vpop.f32.mrf.mxu0
      %v1971 = vadd.f32 %v1922, %v1970
      %v1972 = vpop.f32.mrf.mxu0
      %v1973 = vadd.f32 %v1924, %v1972
      %1974 = vmatmul.bf16.gmra.mxu0 %v725
      %v1975 = vpop.f32.mrf.mxu0
      %v1976 = vadd.f32 %v1927, %v1975
      %v1977 = vpop.f32.mrf.mxu0
      %v1978 = vadd.f32 %v1929, %v1977
      %1979 = vdwg.mxu0
      %1980 = vmatpush.bf16.msra.mxu0 %v1539
      %1981 = vmatpush.bf16.msra.mxu0 %v1535
      %1982 = vmatpush.bf16.msra.mxu0 %v1531
      %1983 = vmatpush.bf16.msra.mxu0 %v1527
      %1984 = vmatpush.bf16.msra.mxu0 %v1523
      %1985 = vmatpush.bf16.msra.mxu0 %v1519
      %1986 = vmatpush.bf16.msra.mxu0 %v1515
      %1987 = vmatpush.bf16.msra.mxu0 %v1511
      %1988 = vmatmul.bf16.gmra.mxu0 %v684
      %v1989 = vpop.f32.mrf.mxu0
      %v1990 = vadd.f32 %v1941, %v1989
      %v1991 = vpop.f32.mrf.mxu0
      %v1992 = vadd.f32 %v1943, %v1991
      %1993 = vmatmul.bf16.gmra.mxu0 %v690
      %v1994 = vpop.f32.mrf.mxu0
      %v1995 = vadd.f32 %v1946, %v1994
      %v1996 = vpop.f32.mrf.mxu0
      %v1997 = vadd.f32 %v1948, %v1996
      %1998 = vmatmul.bf16.gmra.mxu0 %v696
      %v1999 = vpop.f32.mrf.mxu0
      %v2000 = vadd.f32 %v1951, %v1999
      %v2001 = vpop.f32.mrf.mxu0
      %v2002 = vadd.f32 %v1953, %v2001
      %2003 = vmatmul.bf16.gmra.mxu0 %v702
      %v2004 = vpop.f32.mrf.mxu0
      %v2005 = vadd.f32 %v1956, %v2004
      %v2006 = vpop.f32.mrf.mxu0
      %v2007 = vadd.f32 %v1958, %v2006
      %2008 = vmatmul.bf16.gmra.mxu0 %v708
      %v2009 = vpop.f32.mrf.mxu0
      %v2010 = vadd.f32 %v1961, %v2009
      %v2011 = vpop.f32.mrf.mxu0
      %v2012 = vadd.f32 %v1963, %v2011
      %2013 = vmatmul.bf16.gmra.mxu0 %v714
      %v2014 = vpop.f32.mrf.mxu0
      %v2015 = vadd.f32 %v1966, %v2014
      %v2016 = vpop.f32.mrf.mxu0
      %v2017 = vadd.f32 %v1968, %v2016
      %2018 = vmatmul.bf16.gmra.mxu0 %v720
      %v2019 = vpop.f32.mrf.mxu0
      %v2020 = vadd.f32 %v1971, %v2019
      %v2021 = vpop.f32.mrf.mxu0
      %v2022 = vadd.f32 %v1973, %v2021
      %2023 = vmatmul.bf16.gmra.mxu0 %v726
      %v2024 = vpop.f32.mrf.mxu0
      %v2025 = vadd.f32 %v1976, %v2024
      %v2026 = vpop.f32.mrf.mxu0
      %v2027 = vadd.f32 %v1978, %v2026
      %2028 = vdwg.mxu0
      %2029 = vmatpush.bf16.msra.mxu0 %v1380
      %2030 = vmatpush.bf16.msra.mxu0 %v1376
      %2031 = vmatpush.bf16.msra.mxu0 %v1372
      %2032 = vmatpush.bf16.msra.mxu0 %v1368
      %2033 = vmatpush.bf16.msra.mxu0 %v1364
      %2034 = vmatpush.bf16.msra.mxu0 %v1360
      %2035 = vmatpush.bf16.msra.mxu0 %v1356
      %2036 = vmatpush.bf16.msra.mxu0 %v1352
      %2037 = vmatmul.bf16.gmra.mxu0 %v679
      %v2038 = vpop.f32.mrf.mxu0
      %v2039 = vadd.f32 %v528, %v2038
      %v2040 = vpop.f32.mrf.mxu0
      %v2041 = vadd.f32 %v528, %v2040
      %2042 = vmatmul.bf16.gmra.mxu0 %v685
      %v2043 = vpop.f32.mrf.mxu0
      %v2044 = vadd.f32 %v528, %v2043
      %v2045 = vpop.f32.mrf.mxu0
      %v2046 = vadd.f32 %v528, %v2045
      %2047 = vmatmul.bf16.gmra.mxu0 %v691
      %v2048 = vpop.f32.mrf.mxu0
      %v2049 = vadd.f32 %v528, %v2048
      %v2050 = vpop.f32.mrf.mxu0
      %v2051 = vadd.f32 %v528, %v2050
      %2052 = vmatmul.bf16.gmra.mxu0 %v697
      %v2053 = vpop.f32.mrf.mxu0
      %v2054 = vadd.f32 %v528, %v2053
      %v2055 = vpop.f32.mrf.mxu0
      %v2056 = vadd.f32 %v528, %v2055
      %2057 = vmatmul.bf16.gmra.mxu0 %v703
      %v2058 = vpop.f32.mrf.mxu0
      %v2059 = vadd.f32 %v528, %v2058
      %v2060 = vpop.f32.mrf.mxu0
      %v2061 = vadd.f32 %v528, %v2060
      %2062 = vmatmul.bf16.gmra.mxu0 %v709
      %v2063 = vpop.f32.mrf.mxu0
      %v2064 = vadd.f32 %v528, %v2063
      %v2065 = vpop.f32.mrf.mxu0
      %v2066 = vadd.f32 %v528, %v2065
      %2067 = vmatmul.bf16.gmra.mxu0 %v715
      %v2068 = vpop.f32.mrf.mxu0
      %v2069 = vadd.f32 %v528, %v2068
      %v2070 = vpop.f32.mrf.mxu0
      %v2071 = vadd.f32 %v528, %v2070
      %2072 = vmatmul.bf16.gmra.mxu0 %v721
      %v2073 = vpop.f32.mrf.mxu0
      %v2074 = vadd.f32 %v528, %v2073
      %v2075 = vpop.f32.mrf.mxu0
      %v2076 = vadd.f32 %v528, %v2075
      %2077 = vdwg.mxu0
      %2078 = vmatpush.bf16.msra.mxu0 %v1412
      %2079 = vmatpush.bf16.msra.mxu0 %v1408
      %2080 = vmatpush.bf16.msra.mxu0 %v1404
      %2081 = vmatpush.bf16.msra.mxu0 %v1400
      %2082 = vmatpush.bf16.msra.mxu0 %v1396
      %2083 = vmatpush.bf16.msra.mxu0 %v1392
      %2084 = vmatpush.bf16.msra.mxu0 %v1388
      %2085 = vmatpush.bf16.msra.mxu0 %v1384
      %2086 = vmatmul.bf16.gmra.mxu0 %v680
      %v2087 = vpop.f32.mrf.mxu0
      %v2088 = vadd.f32 %v2039, %v2087
      %v2089 = vpop.f32.mrf.mxu0
      %v2090 = vadd.f32 %v2041, %v2089
      %2091 = vmatmul.bf16.gmra.mxu0 %v686
      %v2092 = vpop.f32.mrf.mxu0
      %v2093 = vadd.f32 %v2044, %v2092
      %v2094 = vpop.f32.mrf.mxu0
      %v2095 = vadd.f32 %v2046, %v2094
      %2096 = vmatmul.bf16.gmra.mxu0 %v692
      %v2097 = vpop.f32.mrf.mxu0
      %v2098 = vadd.f32 %v2049, %v2097
      %v2099 = vpop.f32.mrf.mxu0
      %v2100 = vadd.f32 %v2051, %v2099
      %2101 = vmatmul.bf16.gmra.mxu0 %v698
      %v2102 = vpop.f32.mrf.mxu0
      %v2103 = vadd.f32 %v2054, %v2102
      %v2104 = vpop.f32.mrf.mxu0
      %v2105 = vadd.f32 %v2056, %v2104
      %2106 = vmatmul.bf16.gmra.mxu0 %v704
      %v2107 = vpop.f32.mrf.mxu0
      %v2108 = vadd.f32 %v2059, %v2107
      %v2109 = vpop.f32.mrf.mxu0
      %v2110 = vadd.f32 %v2061, %v2109
      %2111 = vmatmul.bf16.gmra.mxu0 %v710
      %v2112 = vpop.f32.mrf.mxu0
      %v2113 = vadd.f32 %v2064, %v2112
      %v2114 = vpop.f32.mrf.mxu0
      %v2115 = vadd.f32 %v2066, %v2114
      %2116 = vmatmul.bf16.gmra.mxu0 %v716
      %v2117 = vpop.f32.mrf.mxu0
      %v2118 = vadd.f32 %v2069, %v2117
      %v2119 = vpop.f32.mrf.mxu0
      %v2120 = vadd.f32 %v2071, %v2119
      %2121 = vmatmul.bf16.gmra.mxu0 %v722
      %v2122 = vpop.f32.mrf.mxu0
      %v2123 = vadd.f32 %v2074, %v2122
      %v2124 = vpop.f32.mrf.mxu0
      %v2125 = vadd.f32 %v2076, %v2124
      %2126 = vdwg.mxu0
      %2127 = vmatpush.bf16.msra.mxu0 %v1444
      %2128 = vmatpush.bf16.msra.mxu0 %v1440
      %2129 = vmatpush.bf16.msra.mxu0 %v1436
      %2130 = vmatpush.bf16.msra.mxu0 %v1432
      %2131 = vmatpush.bf16.msra.mxu0 %v1428
      %2132 = vmatpush.bf16.msra.mxu0 %v1424
      %2133 = vmatpush.bf16.msra.mxu0 %v1420
      %2134 = vmatpush.bf16.msra.mxu0 %v1416
      %2135 = vmatmul.bf16.gmra.mxu0 %v681
      %v2136 = vpop.f32.mrf.mxu0
      %v2137 = vadd.f32 %v2088, %v2136
      %v2138 = vpop.f32.mrf.mxu0
      %v2139 = vadd.f32 %v2090, %v2138
      %2140 = vmatmul.bf16.gmra.mxu0 %v687
      %v2141 = vpop.f32.mrf.mxu0
      %v2142 = vadd.f32 %v2093, %v2141
      %v2143 = vpop.f32.mrf.mxu0
      %v2144 = vadd.f32 %v2095, %v2143
      %2145 = vmatmul.bf16.gmra.mxu0 %v693
      %v2146 = vpop.f32.mrf.mxu0
      %v2147 = vadd.f32 %v2098, %v2146
      %v2148 = vpop.f32.mrf.mxu0
      %v2149 = vadd.f32 %v2100, %v2148
      %2150 = vmatmul.bf16.gmra.mxu0 %v699
      %v2151 = vpop.f32.mrf.mxu0
      %v2152 = vadd.f32 %v2103, %v2151
      %v2153 = vpop.f32.mrf.mxu0
      %v2154 = vadd.f32 %v2105, %v2153
      %2155 = vmatmul.bf16.gmra.mxu0 %v705
      %v2156 = vpop.f32.mrf.mxu0
      %v2157 = vadd.f32 %v2108, %v2156
      %v2158 = vpop.f32.mrf.mxu0
      %v2159 = vadd.f32 %v2110, %v2158
      %2160 = vmatmul.bf16.gmra.mxu0 %v711
      %v2161 = vpop.f32.mrf.mxu0
      %v2162 = vadd.f32 %v2113, %v2161
      %v2163 = vpop.f32.mrf.mxu0
      %v2164 = vadd.f32 %v2115, %v2163
      %2165 = vmatmul.bf16.gmra.mxu0 %v717
      %v2166 = vpop.f32.mrf.mxu0
      %v2167 = vadd.f32 %v2118, %v2166
      %v2168 = vpop.f32.mrf.mxu0
      %v2169 = vadd.f32 %v2120, %v2168
      %2170 = vmatmul.bf16.gmra.mxu0 %v723
      %v2171 = vpop.f32.mrf.mxu0
      %v2172 = vadd.f32 %v2123, %v2171
      %v2173 = vpop.f32.mrf.mxu0
      %v2174 = vadd.f32 %v2125, %v2173
      %2175 = vdwg.mxu0
      %2176 = vmatpush.bf16.msra.mxu0 %v1476
      %2177 = vmatpush.bf16.msra.mxu0 %v1472
      %2178 = vmatpush.bf16.msra.mxu0 %v1468
      %2179 = vmatpush.bf16.msra.mxu0 %v1464
      %2180 = vmatpush.bf16.msra.mxu0 %v1460
      %2181 = vmatpush.bf16.msra.mxu0 %v1456
      %2182 = vmatpush.bf16.msra.mxu0 %v1452
      %2183 = vmatpush.bf16.msra.mxu0 %v1448
      %2184 = vmatmul.bf16.gmra.mxu0 %v682
      %v2185 = vpop.f32.mrf.mxu0
      %v2186 = vadd.f32 %v2137, %v2185
      %v2187 = vpop.f32.mrf.mxu0
      %v2188 = vadd.f32 %v2139, %v2187
      %2189 = vmatmul.bf16.gmra.mxu0 %v688
      %v2190 = vpop.f32.mrf.mxu0
      %v2191 = vadd.f32 %v2142, %v2190
      %v2192 = vpop.f32.mrf.mxu0
      %v2193 = vadd.f32 %v2144, %v2192
      %2194 = vmatmul.bf16.gmra.mxu0 %v694
      %v2195 = vpop.f32.mrf.mxu0
      %v2196 = vadd.f32 %v2147, %v2195
      %v2197 = vpop.f32.mrf.mxu0
      %v2198 = vadd.f32 %v2149, %v2197
      %2199 = vmatmul.bf16.gmra.mxu0 %v700
      %v2200 = vpop.f32.mrf.mxu0
      %v2201 = vadd.f32 %v2152, %v2200
      %v2202 = vpop.f32.mrf.mxu0
      %v2203 = vadd.f32 %v2154, %v2202
      %2204 = vmatmul.bf16.gmra.mxu0 %v706
      %v2205 = vpop.f32.mrf.mxu0
      %v2206 = vadd.f32 %v2157, %v2205
      %v2207 = vpop.f32.mrf.mxu0
      %v2208 = vadd.f32 %v2159, %v2207
      %2209 = vmatmul.bf16.gmra.mxu0 %v712
      %v2210 = vpop.f32.mrf.mxu0
      %v2211 = vadd.f32 %v2162, %v2210
      %v2212 = vpop.f32.mrf.mxu0
      %v2213 = vadd.f32 %v2164, %v2212
      %2214 = vmatmul.bf16.gmra.mxu0 %v718
      %v2215 = vpop.f32.mrf.mxu0
      %v2216 = vadd.f32 %v2167, %v2215
      %v2217 = vpop.f32.mrf.mxu0
      %v2218 = vadd.f32 %v2169, %v2217
      %2219 = vmatmul.bf16.gmra.mxu0 %v724
      %v2220 = vpop.f32.mrf.mxu0
      %v2221 = vadd.f32 %v2172, %v2220
      %v2222 = vpop.f32.mrf.mxu0
      %v2223 = vadd.f32 %v2174, %v2222
      %2224 = vdwg.mxu0
      %2225 = vmatpush.bf16.msra.mxu0 %v1508
      %2226 = vmatpush.bf16.msra.mxu0 %v1504
      %2227 = vmatpush.bf16.msra.mxu0 %v1500
      %2228 = vmatpush.bf16.msra.mxu0 %v1496
      %2229 = vmatpush.bf16.msra.mxu0 %v1492
      %2230 = vmatpush.bf16.msra.mxu0 %v1488
      %2231 = vmatpush.bf16.msra.mxu0 %v1484
      %2232 = vmatpush.bf16.msra.mxu0 %v1480
      %2233 = vmatmul.bf16.gmra.mxu0 %v683
      %v2234 = vpop.f32.mrf.mxu0
      %v2235 = vadd.f32 %v2186, %v2234
      %v2236 = vpop.f32.mrf.mxu0
      %v2237 = vadd.f32 %v2188, %v2236
      %2238 = vmatmul.bf16.gmra.mxu0 %v689
      %v2239 = vpop.f32.mrf.mxu0
      %v2240 = vadd.f32 %v2191, %v2239
      %v2241 = vpop.f32.mrf.mxu0
      %v2242 = vadd.f32 %v2193, %v2241
      %2243 = vmatmul.bf16.gmra.mxu0 %v695
      %v2244 = vpop.f32.mrf.mxu0
      %v2245 = vadd.f32 %v2196, %v2244
      %v2246 = vpop.f32.mrf.mxu0
      %v2247 = vadd.f32 %v2198, %v2246
      %2248 = vmatmul.bf16.gmra.mxu0 %v701
      %v2249 = vpop.f32.mrf.mxu0
      %v2250 = vadd.f32 %v2201, %v2249
      %v2251 = vpop.f32.mrf.mxu0
      %v2252 = vadd.f32 %v2203, %v2251
      %2253 = vmatmul.bf16.gmra.mxu0 %v707
      %v2254 = vpop.f32.mrf.mxu0
      %v2255 = vadd.f32 %v2206, %v2254
      %v2256 = vpop.f32.mrf.mxu0
      %v2257 = vadd.f32 %v2208, %v2256
      %2258 = vmatmul.bf16.gmra.mxu0 %v713
      %v2259 = vpop.f32.mrf.mxu0
      %v2260 = vadd.f32 %v2211, %v2259
      %v2261 = vpop.f32.mrf.mxu0
      %v2262 = vadd.f32 %v2213, %v2261
      %2263 = vmatmul.bf16.gmra.mxu0 %v719
      %v2264 = vpop.f32.mrf.mxu0
      %v2265 = vadd.f32 %v2216, %v2264
      %v2266 = vpop.f32.mrf.mxu0
      %v2267 = vadd.f32 %v2218, %v2266
      %2268 = vmatmul.bf16.gmra.mxu0 %v725
      %v2269 = vpop.f32.mrf.mxu0
      %v2270 = vadd.f32 %v2221, %v2269
      %v2271 = vpop.f32.mrf.mxu0
      %v2272 = vadd.f32 %v2223, %v2271
      %2273 = vdwg.mxu0
      %2274 = vmatpush.bf16.msra.mxu0 %v1540
      %2275 = vmatpush.bf16.msra.mxu0 %v1536
      %2276 = vmatpush.bf16.msra.mxu0 %v1532
      %2277 = vmatpush.bf16.msra.mxu0 %v1528
      %2278 = vmatpush.bf16.msra.mxu0 %v1524
      %2279 = vmatpush.bf16.msra.mxu0 %v1520
      %2280 = vmatpush.bf16.msra.mxu0 %v1516
      %2281 = vmatpush.bf16.msra.mxu0 %v1512
      %2282 = vmatmul.bf16.gmra.mxu0 %v684
      %v2283 = vpop.f32.mrf.mxu0
      %v2284 = vadd.f32 %v2235, %v2283
      %v2285 = vpop.f32.mrf.mxu0
      %v2286 = vadd.f32 %v2237, %v2285
      %2287 = vmatmul.bf16.gmra.mxu0 %v690
      %v2288 = vpop.f32.mrf.mxu0
      %v2289 = vadd.f32 %v2240, %v2288
      %v2290 = vpop.f32.mrf.mxu0
      %v2291 = vadd.f32 %v2242, %v2290
      %2292 = vmatmul.bf16.gmra.mxu0 %v696
      %v2293 = vpop.f32.mrf.mxu0
      %v2294 = vadd.f32 %v2245, %v2293
      %v2295 = vpop.f32.mrf.mxu0
      %v2296 = vadd.f32 %v2247, %v2295
      %2297 = vmatmul.bf16.gmra.mxu0 %v702
      %v2298 = vpop.f32.mrf.mxu0
      %v2299 = vadd.f32 %v2250, %v2298
      %v2300 = vpop.f32.mrf.mxu0
      %v2301 = vadd.f32 %v2252, %v2300
      %2302 = vmatmul.bf16.gmra.mxu0 %v708
      %v2303 = vpop.f32.mrf.mxu0
      %v2304 = vadd.f32 %v2255, %v2303
      %v2305 = vpop.f32.mrf.mxu0
      %v2306 = vadd.f32 %v2257, %v2305
      %2307 = vmatmul.bf16.gmra.mxu0 %v714
      %v2308 = vpop.f32.mrf.mxu0
      %v2309 = vadd.f32 %v2260, %v2308
      %v2310 = vpop.f32.mrf.mxu0
      %v2311 = vadd.f32 %v2262, %v2310
      %2312 = vmatmul.bf16.gmra.mxu0 %v720
      %v2313 = vpop.f32.mrf.mxu0
      %v2314 = vadd.f32 %v2265, %v2313
      %v2315 = vpop.f32.mrf.mxu0
      %v2316 = vadd.f32 %v2267, %v2315
      %2317 = vmatmul.bf16.gmra.mxu0 %v726
      %v2318 = vpop.f32.mrf.mxu0
      %v2319 = vadd.f32 %v2270, %v2318
      %v2320 = vpop.f32.mrf.mxu0
      %v2321 = vadd.f32 %v2272, %v2320
      %2322 = vdwg.mxu0
      %2323 = vmatpush.bf16.msra.mxu0 %v1381
      %2324 = vmatpush.bf16.msra.mxu0 %v1377
      %2325 = vmatpush.bf16.msra.mxu0 %v1373
      %2326 = vmatpush.bf16.msra.mxu0 %v1369
      %2327 = vmatpush.bf16.msra.mxu0 %v1365
      %2328 = vmatpush.bf16.msra.mxu0 %v1361
      %2329 = vmatpush.bf16.msra.mxu0 %v1357
      %2330 = vmatpush.bf16.msra.mxu0 %v1353
      %2331 = vmatmul.bf16.gmra.mxu0 %v679
      %v2332 = vpop.f32.mrf.mxu0
      %v2333 = vadd.f32 %v529, %v2332
      %v2334 = vpop.f32.mrf.mxu0
      %v2335 = vadd.f32 %v529, %v2334
      %2336 = vmatmul.bf16.gmra.mxu0 %v685
      %v2337 = vpop.f32.mrf.mxu0
      %v2338 = vadd.f32 %v529, %v2337
      %v2339 = vpop.f32.mrf.mxu0
      %v2340 = vadd.f32 %v529, %v2339
      %2341 = vmatmul.bf16.gmra.mxu0 %v691
      %v2342 = vpop.f32.mrf.mxu0
      %v2343 = vadd.f32 %v529, %v2342
      %v2344 = vpop.f32.mrf.mxu0
      %v2345 = vadd.f32 %v529, %v2344
      %2346 = vmatmul.bf16.gmra.mxu0 %v697
      %v2347 = vpop.f32.mrf.mxu0
      %v2348 = vadd.f32 %v529, %v2347
      %v2349 = vpop.f32.mrf.mxu0
      %v2350 = vadd.f32 %v529, %v2349
      %2351 = vmatmul.bf16.gmra.mxu0 %v703
      %v2352 = vpop.f32.mrf.mxu0
      %v2353 = vadd.f32 %v529, %v2352
      %v2354 = vpop.f32.mrf.mxu0
      %v2355 = vadd.f32 %v529, %v2354
      %2356 = vmatmul.bf16.gmra.mxu0 %v709
      %v2357 = vpop.f32.mrf.mxu0
      %v2358 = vadd.f32 %v529, %v2357
      %v2359 = vpop.f32.mrf.mxu0
      %v2360 = vadd.f32 %v529, %v2359
      %2361 = vmatmul.bf16.gmra.mxu0 %v715
      %v2362 = vpop.f32.mrf.mxu0
      %v2363 = vadd.f32 %v529, %v2362
      %v2364 = vpop.f32.mrf.mxu0
      %v2365 = vadd.f32 %v529, %v2364
      %2366 = vmatmul.bf16.gmra.mxu0 %v721
      %v2367 = vpop.f32.mrf.mxu0
      %v2368 = vadd.f32 %v529, %v2367
      %v2369 = vpop.f32.mrf.mxu0
      %v2370 = vadd.f32 %v529, %v2369
      %2371 = vdwg.mxu0
      %2372 = vmatpush.bf16.msra.mxu0 %v1413
      %2373 = vmatpush.bf16.msra.mxu0 %v1409
      %2374 = vmatpush.bf16.msra.mxu0 %v1405
      %2375 = vmatpush.bf16.msra.mxu0 %v1401
      %2376 = vmatpush.bf16.msra.mxu0 %v1397
      %2377 = vmatpush.bf16.msra.mxu0 %v1393
      %2378 = vmatpush.bf16.msra.mxu0 %v1389
      %2379 = vmatpush.bf16.msra.mxu0 %v1385
      %2380 = vmatmul.bf16.gmra.mxu0 %v680
      %v2381 = vpop.f32.mrf.mxu0
      %v2382 = vadd.f32 %v2333, %v2381
      %v2383 = vpop.f32.mrf.mxu0
      %v2384 = vadd.f32 %v2335, %v2383
      %2385 = vmatmul.bf16.gmra.mxu0 %v686
      %v2386 = vpop.f32.mrf.mxu0
      %v2387 = vadd.f32 %v2338, %v2386
      %v2388 = vpop.f32.mrf.mxu0
      %v2389 = vadd.f32 %v2340, %v2388
      %2390 = vmatmul.bf16.gmra.mxu0 %v692
      %v2391 = vpop.f32.mrf.mxu0
      %v2392 = vadd.f32 %v2343, %v2391
      %v2393 = vpop.f32.mrf.mxu0
      %v2394 = vadd.f32 %v2345, %v2393
      %2395 = vmatmul.bf16.gmra.mxu0 %v698
      %v2396 = vpop.f32.mrf.mxu0
      %v2397 = vadd.f32 %v2348, %v2396
      %v2398 = vpop.f32.mrf.mxu0
      %v2399 = vadd.f32 %v2350, %v2398
      %2400 = vmatmul.bf16.gmra.mxu0 %v704
      %v2401 = vpop.f32.mrf.mxu0
      %v2402 = vadd.f32 %v2353, %v2401
      %v2403 = vpop.f32.mrf.mxu0
      %v2404 = vadd.f32 %v2355, %v2403
      %2405 = vmatmul.bf16.gmra.mxu0 %v710
      %v2406 = vpop.f32.mrf.mxu0
      %v2407 = vadd.f32 %v2358, %v2406
      %v2408 = vpop.f32.mrf.mxu0
      %v2409 = vadd.f32 %v2360, %v2408
      %2410 = vmatmul.bf16.gmra.mxu0 %v716
      %v2411 = vpop.f32.mrf.mxu0
      %v2412 = vadd.f32 %v2363, %v2411
      %v2413 = vpop.f32.mrf.mxu0
      %v2414 = vadd.f32 %v2365, %v2413
      %2415 = vmatmul.bf16.gmra.mxu0 %v722
      %v2416 = vpop.f32.mrf.mxu0
      %v2417 = vadd.f32 %v2368, %v2416
      %v2418 = vpop.f32.mrf.mxu0
      %v2419 = vadd.f32 %v2370, %v2418
      %2420 = vdwg.mxu0
      %2421 = vmatpush.bf16.msra.mxu0 %v1445
      %2422 = vmatpush.bf16.msra.mxu0 %v1441
      %2423 = vmatpush.bf16.msra.mxu0 %v1437
      %2424 = vmatpush.bf16.msra.mxu0 %v1433
      %2425 = vmatpush.bf16.msra.mxu0 %v1429
      %2426 = vmatpush.bf16.msra.mxu0 %v1425
      %2427 = vmatpush.bf16.msra.mxu0 %v1421
      %2428 = vmatpush.bf16.msra.mxu0 %v1417
      %2429 = vmatmul.bf16.gmra.mxu0 %v681
      %v2430 = vpop.f32.mrf.mxu0
      %v2431 = vadd.f32 %v2382, %v2430
      %v2432 = vpop.f32.mrf.mxu0
      %v2433 = vadd.f32 %v2384, %v2432
      %2434 = vmatmul.bf16.gmra.mxu0 %v687
      %v2435 = vpop.f32.mrf.mxu0
      %v2436 = vadd.f32 %v2387, %v2435
      %v2437 = vpop.f32.mrf.mxu0
      %v2438 = vadd.f32 %v2389, %v2437
      %2439 = vmatmul.bf16.gmra.mxu0 %v693
      %v2440 = vpop.f32.mrf.mxu0
      %v2441 = vadd.f32 %v2392, %v2440
      %v2442 = vpop.f32.mrf.mxu0
      %v2443 = vadd.f32 %v2394, %v2442
      %2444 = vmatmul.bf16.gmra.mxu0 %v699
      %v2445 = vpop.f32.mrf.mxu0
      %v2446 = vadd.f32 %v2397, %v2445
      %v2447 = vpop.f32.mrf.mxu0
      %v2448 = vadd.f32 %v2399, %v2447
      %2449 = vmatmul.bf16.gmra.mxu0 %v705
      %v2450 = vpop.f32.mrf.mxu0
      %v2451 = vadd.f32 %v2402, %v2450
      %v2452 = vpop.f32.mrf.mxu0
      %v2453 = vadd.f32 %v2404, %v2452
      %2454 = vmatmul.bf16.gmra.mxu0 %v711
      %v2455 = vpop.f32.mrf.mxu0
      %v2456 = vadd.f32 %v2407, %v2455
      %v2457 = vpop.f32.mrf.mxu0
      %v2458 = vadd.f32 %v2409, %v2457
      %2459 = vmatmul.bf16.gmra.mxu0 %v717
      %v2460 = vpop.f32.mrf.mxu0
      %v2461 = vadd.f32 %v2412, %v2460
      %v2462 = vpop.f32.mrf.mxu0
      %v2463 = vadd.f32 %v2414, %v2462
      %2464 = vmatmul.bf16.gmra.mxu0 %v723
      %v2465 = vpop.f32.mrf.mxu0
      %v2466 = vadd.f32 %v2417, %v2465
      %v2467 = vpop.f32.mrf.mxu0
      %v2468 = vadd.f32 %v2419, %v2467
      %2469 = vdwg.mxu0
      %2470 = vmatpush.bf16.msra.mxu0 %v1477
      %2471 = vmatpush.bf16.msra.mxu0 %v1473
      %2472 = vmatpush.bf16.msra.mxu0 %v1469
      %2473 = vmatpush.bf16.msra.mxu0 %v1465
      %2474 = vmatpush.bf16.msra.mxu0 %v1461
      %2475 = vmatpush.bf16.msra.mxu0 %v1457
      %2476 = vmatpush.bf16.msra.mxu0 %v1453
      %2477 = vmatpush.bf16.msra.mxu0 %v1449
      %2478 = vmatmul.bf16.gmra.mxu0 %v682
      %v2479 = vpop.f32.mrf.mxu0
      %v2480 = vadd.f32 %v2431, %v2479
      %v2481 = vpop.f32.mrf.mxu0
      %v2482 = vadd.f32 %v2433, %v2481
      %2483 = vmatmul.bf16.gmra.mxu0 %v688
      %v2484 = vpop.f32.mrf.mxu0
      %v2485 = vadd.f32 %v2436, %v2484
      %v2486 = vpop.f32.mrf.mxu0
      %v2487 = vadd.f32 %v2438, %v2486
      %2488 = vmatmul.bf16.gmra.mxu0 %v694
      %v2489 = vpop.f32.mrf.mxu0
      %v2490 = vadd.f32 %v2441, %v2489
      %v2491 = vpop.f32.mrf.mxu0
      %v2492 = vadd.f32 %v2443, %v2491
      %2493 = vmatmul.bf16.gmra.mxu0 %v700
      %v2494 = vpop.f32.mrf.mxu0
      %v2495 = vadd.f32 %v2446, %v2494
      %v2496 = vpop.f32.mrf.mxu0
      %v2497 = vadd.f32 %v2448, %v2496
      %2498 = vmatmul.bf16.gmra.mxu0 %v706
      %v2499 = vpop.f32.mrf.mxu0
      %v2500 = vadd.f32 %v2451, %v2499
      %v2501 = vpop.f32.mrf.mxu0
      %v2502 = vadd.f32 %v2453, %v2501
      %2503 = vmatmul.bf16.gmra.mxu0 %v712
      %v2504 = vpop.f32.mrf.mxu0
      %v2505 = vadd.f32 %v2456, %v2504
      %v2506 = vpop.f32.mrf.mxu0
      %v2507 = vadd.f32 %v2458, %v2506
      %2508 = vmatmul.bf16.gmra.mxu0 %v718
      %v2509 = vpop.f32.mrf.mxu0
      %v2510 = vadd.f32 %v2461, %v2509
      %v2511 = vpop.f32.mrf.mxu0
      %v2512 = vadd.f32 %v2463, %v2511
      %2513 = vmatmul.bf16.gmra.mxu0 %v724
      %v2514 = vpop.f32.mrf.mxu0
      %v2515 = vadd.f32 %v2466, %v2514
      %v2516 = vpop.f32.mrf.mxu0
      %v2517 = vadd.f32 %v2468, %v2516
      %2518 = vdwg.mxu0
      %2519 = vmatpush.bf16.msra.mxu0 %v1509
      %2520 = vmatpush.bf16.msra.mxu0 %v1505
      %2521 = vmatpush.bf16.msra.mxu0 %v1501
      %2522 = vmatpush.bf16.msra.mxu0 %v1497
      %2523 = vmatpush.bf16.msra.mxu0 %v1493
      %2524 = vmatpush.bf16.msra.mxu0 %v1489
      %2525 = vmatpush.bf16.msra.mxu0 %v1485
      %2526 = vmatpush.bf16.msra.mxu0 %v1481
      %2527 = vmatmul.bf16.gmra.mxu0 %v683
      %v2528 = vpop.f32.mrf.mxu0
      %v2529 = vadd.f32 %v2480, %v2528
      %v2530 = vpop.f32.mrf.mxu0
      %v2531 = vadd.f32 %v2482, %v2530
      %2532 = vmatmul.bf16.gmra.mxu0 %v689
      %v2533 = vpop.f32.mrf.mxu0
      %v2534 = vadd.f32 %v2485, %v2533
      %v2535 = vpop.f32.mrf.mxu0
      %v2536 = vadd.f32 %v2487, %v2535
      %2537 = vmatmul.bf16.gmra.mxu0 %v695
      %v2538 = vpop.f32.mrf.mxu0
      %v2539 = vadd.f32 %v2490, %v2538
      %v2540 = vpop.f32.mrf.mxu0
      %v2541 = vadd.f32 %v2492, %v2540
      %2542 = vmatmul.bf16.gmra.mxu0 %v701
      %v2543 = vpop.f32.mrf.mxu0
      %v2544 = vadd.f32 %v2495, %v2543
      %v2545 = vpop.f32.mrf.mxu0
      %v2546 = vadd.f32 %v2497, %v2545
      %2547 = vmatmul.bf16.gmra.mxu0 %v707
      %v2548 = vpop.f32.mrf.mxu0
      %v2549 = vadd.f32 %v2500, %v2548
      %v2550 = vpop.f32.mrf.mxu0
      %v2551 = vadd.f32 %v2502, %v2550
      %2552 = vmatmul.bf16.gmra.mxu0 %v713
      %v2553 = vpop.f32.mrf.mxu0
      %v2554 = vadd.f32 %v2505, %v2553
      %v2555 = vpop.f32.mrf.mxu0
      %v2556 = vadd.f32 %v2507, %v2555
      %2557 = vmatmul.bf16.gmra.mxu0 %v719
      %v2558 = vpop.f32.mrf.mxu0
      %v2559 = vadd.f32 %v2510, %v2558
      %v2560 = vpop.f32.mrf.mxu0
      %v2561 = vadd.f32 %v2512, %v2560
      %2562 = vmatmul.bf16.gmra.mxu0 %v725
      %v2563 = vpop.f32.mrf.mxu0
      %v2564 = vadd.f32 %v2515, %v2563
      %v2565 = vpop.f32.mrf.mxu0
      %v2566 = vadd.f32 %v2517, %v2565
      %2567 = vdwg.mxu0
      %2568 = vmatpush.bf16.msra.mxu0 %v1541
      %2569 = vmatpush.bf16.msra.mxu0 %v1537
      %2570 = vmatpush.bf16.msra.mxu0 %v1533
      %2571 = vmatpush.bf16.msra.mxu0 %v1529
      %2572 = vmatpush.bf16.msra.mxu0 %v1525
      %2573 = vmatpush.bf16.msra.mxu0 %v1521
      %2574 = vmatpush.bf16.msra.mxu0 %v1517
      %2575 = vmatpush.bf16.msra.mxu0 %v1513
      %2576 = vmatmul.bf16.gmra.mxu0 %v684
      %v2577 = vpop.f32.mrf.mxu0
      %v2578 = vadd.f32 %v2529, %v2577
      %v2579 = vpop.f32.mrf.mxu0
      %v2580 = vadd.f32 %v2531, %v2579
      %2581 = vmatmul.bf16.gmra.mxu0 %v690
      %v2582 = vpop.f32.mrf.mxu0
      %v2583 = vadd.f32 %v2534, %v2582
      %v2584 = vpop.f32.mrf.mxu0
      %v2585 = vadd.f32 %v2536, %v2584
      %2586 = vmatmul.bf16.gmra.mxu0 %v696
      %v2587 = vpop.f32.mrf.mxu0
      %v2588 = vadd.f32 %v2539, %v2587
      %v2589 = vpop.f32.mrf.mxu0
      %v2590 = vadd.f32 %v2541, %v2589
      %2591 = vmatmul.bf16.gmra.mxu0 %v702
      %v2592 = vpop.f32.mrf.mxu0
      %v2593 = vadd.f32 %v2544, %v2592
      %v2594 = vpop.f32.mrf.mxu0
      %v2595 = vadd.f32 %v2546, %v2594
      %2596 = vmatmul.bf16.gmra.mxu0 %v708
      %v2597 = vpop.f32.mrf.mxu0
      %v2598 = vadd.f32 %v2549, %v2597
      %v2599 = vpop.f32.mrf.mxu0
      %v2600 = vadd.f32 %v2551, %v2599
      %2601 = vmatmul.bf16.gmra.mxu0 %v714
      %v2602 = vpop.f32.mrf.mxu0
      %v2603 = vadd.f32 %v2554, %v2602
      %v2604 = vpop.f32.mrf.mxu0
      %v2605 = vadd.f32 %v2556, %v2604
      %2606 = vmatmul.bf16.gmra.mxu0 %v720
      %v2607 = vpop.f32.mrf.mxu0
      %v2608 = vadd.f32 %v2559, %v2607
      %v2609 = vpop.f32.mrf.mxu0
      %v2610 = vadd.f32 %v2561, %v2609
      %2611 = vmatmul.bf16.gmra.mxu0 %v726
      %v2612 = vpop.f32.mrf.mxu0
      %v2613 = vadd.f32 %v2564, %v2612
      %v2614 = vpop.f32.mrf.mxu0
      %v2615 = vadd.f32 %v2566, %v2614
      %2616 = vdwg.mxu0
      %2617 = vmatpush.bf16.msra.mxu0 %v1382
      %2618 = vmatpush.bf16.msra.mxu0 %v1378
      %2619 = vmatpush.bf16.msra.mxu0 %v1374
      %2620 = vmatpush.bf16.msra.mxu0 %v1370
      %2621 = vmatpush.bf16.msra.mxu0 %v1366
      %2622 = vmatpush.bf16.msra.mxu0 %v1362
      %2623 = vmatpush.bf16.msra.mxu0 %v1358
      %2624 = vmatpush.bf16.msra.mxu0 %v1354
      %2625 = vmatmul.bf16.gmra.mxu0 %v679
      %v2626 = vpop.f32.mrf.mxu0
      %v2627 = vadd.f32 %v530, %v2626
      %v2628 = vpop.f32.mrf.mxu0
      %v2629 = vadd.f32 %v530, %v2628
      %2630 = vmatmul.bf16.gmra.mxu0 %v685
      %v2631 = vpop.f32.mrf.mxu0
      %v2632 = vadd.f32 %v530, %v2631
      %v2633 = vpop.f32.mrf.mxu0
      %v2634 = vadd.f32 %v530, %v2633
      %2635 = vmatmul.bf16.gmra.mxu0 %v691
      %v2636 = vpop.f32.mrf.mxu0
      %v2637 = vadd.f32 %v530, %v2636
      %v2638 = vpop.f32.mrf.mxu0
      %v2639 = vadd.f32 %v530, %v2638
      %2640 = vmatmul.bf16.gmra.mxu0 %v697
      %v2641 = vpop.f32.mrf.mxu0
      %v2642 = vadd.f32 %v530, %v2641
      %v2643 = vpop.f32.mrf.mxu0
      %v2644 = vadd.f32 %v530, %v2643
      %2645 = vmatmul.bf16.gmra.mxu0 %v703
      %v2646 = vpop.f32.mrf.mxu0
      %v2647 = vadd.f32 %v530, %v2646
      %v2648 = vpop.f32.mrf.mxu0
      %v2649 = vadd.f32 %v530, %v2648
      %2650 = vmatmul.bf16.gmra.mxu0 %v709
      %v2651 = vpop.f32.mrf.mxu0
      %v2652 = vadd.f32 %v530, %v2651
      %v2653 = vpop.f32.mrf.mxu0
      %v2654 = vadd.f32 %v530, %v2653
      %2655 = vmatmul.bf16.gmra.mxu0 %v715
      %v2656 = vpop.f32.mrf.mxu0
      %v2657 = vadd.f32 %v530, %v2656
      %v2658 = vpop.f32.mrf.mxu0
      %v2659 = vadd.f32 %v530, %v2658
      %2660 = vmatmul.bf16.gmra.mxu0 %v721
      %v2661 = vpop.f32.mrf.mxu0
      %v2662 = vadd.f32 %v530, %v2661
      %v2663 = vpop.f32.mrf.mxu0
      %v2664 = vadd.f32 %v530, %v2663
      %2665 = vdwg.mxu0
      %2666 = vmatpush.bf16.msra.mxu0 %v1414
      %2667 = vmatpush.bf16.msra.mxu0 %v1410
      %2668 = vmatpush.bf16.msra.mxu0 %v1406
      %2669 = vmatpush.bf16.msra.mxu0 %v1402
      %2670 = vmatpush.bf16.msra.mxu0 %v1398
      %2671 = vmatpush.bf16.msra.mxu0 %v1394
      %2672 = vmatpush.bf16.msra.mxu0 %v1390
      %2673 = vmatpush.bf16.msra.mxu0 %v1386
      %2674 = vmatmul.bf16.gmra.mxu0 %v680
      %v2675 = vpop.f32.mrf.mxu0
      %v2676 = vadd.f32 %v2627, %v2675
      %v2677 = vpop.f32.mrf.mxu0
      %v2678 = vadd.f32 %v2629, %v2677
      %2679 = vmatmul.bf16.gmra.mxu0 %v686
      %v2680 = vpop.f32.mrf.mxu0
      %v2681 = vadd.f32 %v2632, %v2680
      %v2682 = vpop.f32.mrf.mxu0
      %v2683 = vadd.f32 %v2634, %v2682
      %2684 = vmatmul.bf16.gmra.mxu0 %v692
      %v2685 = vpop.f32.mrf.mxu0
      %v2686 = vadd.f32 %v2637, %v2685
      %v2687 = vpop.f32.mrf.mxu0
      %v2688 = vadd.f32 %v2639, %v2687
      %2689 = vmatmul.bf16.gmra.mxu0 %v698
      %v2690 = vpop.f32.mrf.mxu0
      %v2691 = vadd.f32 %v2642, %v2690
      %v2692 = vpop.f32.mrf.mxu0
      %v2693 = vadd.f32 %v2644, %v2692
      %2694 = vmatmul.bf16.gmra.mxu0 %v704
      %v2695 = vpop.f32.mrf.mxu0
      %v2696 = vadd.f32 %v2647, %v2695
      %v2697 = vpop.f32.mrf.mxu0
      %v2698 = vadd.f32 %v2649, %v2697
      %2699 = vmatmul.bf16.gmra.mxu0 %v710
      %v2700 = vpop.f32.mrf.mxu0
      %v2701 = vadd.f32 %v2652, %v2700
      %v2702 = vpop.f32.mrf.mxu0
      %v2703 = vadd.f32 %v2654, %v2702
      %2704 = vmatmul.bf16.gmra.mxu0 %v716
      %v2705 = vpop.f32.mrf.mxu0
      %v2706 = vadd.f32 %v2657, %v2705
      %v2707 = vpop.f32.mrf.mxu0
      %v2708 = vadd.f32 %v2659, %v2707
      %2709 = vmatmul.bf16.gmra.mxu0 %v722
      %v2710 = vpop.f32.mrf.mxu0
      %v2711 = vadd.f32 %v2662, %v2710
      %v2712 = vpop.f32.mrf.mxu0
      %v2713 = vadd.f32 %v2664, %v2712
      %2714 = vdwg.mxu0
      %2715 = vmatpush.bf16.msra.mxu0 %v1446
      %2716 = vmatpush.bf16.msra.mxu0 %v1442
      %2717 = vmatpush.bf16.msra.mxu0 %v1438
      %2718 = vmatpush.bf16.msra.mxu0 %v1434
      %2719 = vmatpush.bf16.msra.mxu0 %v1430
      %2720 = vmatpush.bf16.msra.mxu0 %v1426
      %2721 = vmatpush.bf16.msra.mxu0 %v1422
      %2722 = vmatpush.bf16.msra.mxu0 %v1418
      %2723 = vmatmul.bf16.gmra.mxu0 %v681
      %v2724 = vpop.f32.mrf.mxu0
      %v2725 = vadd.f32 %v2676, %v2724
      %v2726 = vpop.f32.mrf.mxu0
      %v2727 = vadd.f32 %v2678, %v2726
      %2728 = vmatmul.bf16.gmra.mxu0 %v687
      %v2729 = vpop.f32.mrf.mxu0
      %v2730 = vadd.f32 %v2681, %v2729
      %v2731 = vpop.f32.mrf.mxu0
      %v2732 = vadd.f32 %v2683, %v2731
      %2733 = vmatmul.bf16.gmra.mxu0 %v693
      %v2734 = vpop.f32.mrf.mxu0
      %v2735 = vadd.f32 %v2686, %v2734
      %v2736 = vpop.f32.mrf.mxu0
      %v2737 = vadd.f32 %v2688, %v2736
      %2738 = vmatmul.bf16.gmra.mxu0 %v699
      %v2739 = vpop.f32.mrf.mxu0
      %v2740 = vadd.f32 %v2691, %v2739
      %v2741 = vpop.f32.mrf.mxu0
      %v2742 = vadd.f32 %v2693, %v2741
      %2743 = vmatmul.bf16.gmra.mxu0 %v705
      %v2744 = vpop.f32.mrf.mxu0
      %v2745 = vadd.f32 %v2696, %v2744
      %v2746 = vpop.f32.mrf.mxu0
      %v2747 = vadd.f32 %v2698, %v2746
      %2748 = vmatmul.bf16.gmra.mxu0 %v711
      %v2749 = vpop.f32.mrf.mxu0
      %v2750 = vadd.f32 %v2701, %v2749
      %v2751 = vpop.f32.mrf.mxu0
      %v2752 = vadd.f32 %v2703, %v2751
      %2753 = vmatmul.bf16.gmra.mxu0 %v717
      %v2754 = vpop.f32.mrf.mxu0
      %v2755 = vadd.f32 %v2706, %v2754
      %v2756 = vpop.f32.mrf.mxu0
      %v2757 = vadd.f32 %v2708, %v2756
      %2758 = vmatmul.bf16.gmra.mxu0 %v723
      %v2759 = vpop.f32.mrf.mxu0
      %v2760 = vadd.f32 %v2711, %v2759
      %v2761 = vpop.f32.mrf.mxu0
      %v2762 = vadd.f32 %v2713, %v2761
      %2763 = vdwg.mxu0
      %2764 = vmatpush.bf16.msra.mxu0 %v1478
      %2765 = vmatpush.bf16.msra.mxu0 %v1474
      %2766 = vmatpush.bf16.msra.mxu0 %v1470
      %2767 = vmatpush.bf16.msra.mxu0 %v1466
      %2768 = vmatpush.bf16.msra.mxu0 %v1462
      %2769 = vmatpush.bf16.msra.mxu0 %v1458
      %2770 = vmatpush.bf16.msra.mxu0 %v1454
      %2771 = vmatpush.bf16.msra.mxu0 %v1450
      %2772 = vmatmul.bf16.gmra.mxu0 %v682
      %v2773 = vpop.f32.mrf.mxu0
      %v2774 = vadd.f32 %v2725, %v2773
      %v2775 = vpop.f32.mrf.mxu0
      %v2776 = vadd.f32 %v2727, %v2775
      %2777 = vmatmul.bf16.gmra.mxu0 %v688
      %v2778 = vpop.f32.mrf.mxu0
      %v2779 = vadd.f32 %v2730, %v2778
      %v2780 = vpop.f32.mrf.mxu0
      %v2781 = vadd.f32 %v2732, %v2780
      %2782 = vmatmul.bf16.gmra.mxu0 %v694
      %v2783 = vpop.f32.mrf.mxu0
      %v2784 = vadd.f32 %v2735, %v2783
      %v2785 = vpop.f32.mrf.mxu0
      %v2786 = vadd.f32 %v2737, %v2785
      %2787 = vmatmul.bf16.gmra.mxu0 %v700
      %v2788 = vpop.f32.mrf.mxu0
      %v2789 = vadd.f32 %v2740, %v2788
      %v2790 = vpop.f32.mrf.mxu0
      %v2791 = vadd.f32 %v2742, %v2790
      %2792 = vmatmul.bf16.gmra.mxu0 %v706
      %v2793 = vpop.f32.mrf.mxu0
      %v2794 = vadd.f32 %v2745, %v2793
      %v2795 = vpop.f32.mrf.mxu0
      %v2796 = vadd.f32 %v2747, %v2795
      %2797 = vmatmul.bf16.gmra.mxu0 %v712
      %v2798 = vpop.f32.mrf.mxu0
      %v2799 = vadd.f32 %v2750, %v2798
      %v2800 = vpop.f32.mrf.mxu0
      %v2801 = vadd.f32 %v2752, %v2800
      %2802 = vmatmul.bf16.gmra.mxu0 %v718
      %v2803 = vpop.f32.mrf.mxu0
      %v2804 = vadd.f32 %v2755, %v2803
      %v2805 = vpop.f32.mrf.mxu0
      %v2806 = vadd.f32 %v2757, %v2805
      %2807 = vmatmul.bf16.gmra.mxu0 %v724
      %v2808 = vpop.f32.mrf.mxu0
      %v2809 = vadd.f32 %v2760, %v2808
      %v2810 = vpop.f32.mrf.mxu0
      %v2811 = vadd.f32 %v2762, %v2810
      %2812 = vdwg.mxu0
      %2813 = vmatpush.bf16.msra.mxu0 %v1510
      %2814 = vmatpush.bf16.msra.mxu0 %v1506
      %2815 = vmatpush.bf16.msra.mxu0 %v1502
      %2816 = vmatpush.bf16.msra.mxu0 %v1498
      %2817 = vmatpush.bf16.msra.mxu0 %v1494
      %2818 = vmatpush.bf16.msra.mxu0 %v1490
      %2819 = vmatpush.bf16.msra.mxu0 %v1486
      %2820 = vmatpush.bf16.msra.mxu0 %v1482
      %2821 = vmatmul.bf16.gmra.mxu0 %v683
      %v2822 = vpop.f32.mrf.mxu0
      %v2823 = vadd.f32 %v2774, %v2822
      %v2824 = vpop.f32.mrf.mxu0
      %v2825 = vadd.f32 %v2776, %v2824
      %2826 = vmatmul.bf16.gmra.mxu0 %v689
      %v2827 = vpop.f32.mrf.mxu0
      %v2828 = vadd.f32 %v2779, %v2827
      %v2829 = vpop.f32.mrf.mxu0
      %v2830 = vadd.f32 %v2781, %v2829
      %2831 = vmatmul.bf16.gmra.mxu0 %v695
      %v2832 = vpop.f32.mrf.mxu0
      %v2833 = vadd.f32 %v2784, %v2832
      %v2834 = vpop.f32.mrf.mxu0
      %v2835 = vadd.f32 %v2786, %v2834
      %2836 = vmatmul.bf16.gmra.mxu0 %v701
      %v2837 = vpop.f32.mrf.mxu0
      %v2838 = vadd.f32 %v2789, %v2837
      %v2839 = vpop.f32.mrf.mxu0
      %v2840 = vadd.f32 %v2791, %v2839
      %2841 = vmatmul.bf16.gmra.mxu0 %v707
      %v2842 = vpop.f32.mrf.mxu0
      %v2843 = vadd.f32 %v2794, %v2842
      %v2844 = vpop.f32.mrf.mxu0
      %v2845 = vadd.f32 %v2796, %v2844
      %2846 = vmatmul.bf16.gmra.mxu0 %v713
      %v2847 = vpop.f32.mrf.mxu0
      %v2848 = vadd.f32 %v2799, %v2847
      %v2849 = vpop.f32.mrf.mxu0
      %v2850 = vadd.f32 %v2801, %v2849
      %2851 = vmatmul.bf16.gmra.mxu0 %v719
      %v2852 = vpop.f32.mrf.mxu0
      %v2853 = vadd.f32 %v2804, %v2852
      %v2854 = vpop.f32.mrf.mxu0
      %v2855 = vadd.f32 %v2806, %v2854
      %2856 = vmatmul.bf16.gmra.mxu0 %v725
      %v2857 = vpop.f32.mrf.mxu0
      %v2858 = vadd.f32 %v2809, %v2857
      %v2859 = vpop.f32.mrf.mxu0
      %v2860 = vadd.f32 %v2811, %v2859
      %2861 = vdwg.mxu0
      %2862 = vmatpush.bf16.msra.mxu0 %v1542
      %2863 = vmatpush.bf16.msra.mxu0 %v1538
      %2864 = vmatpush.bf16.msra.mxu0 %v1534
      %2865 = vmatpush.bf16.msra.mxu0 %v1530
      %2866 = vmatpush.bf16.msra.mxu0 %v1526
      %2867 = vmatpush.bf16.msra.mxu0 %v1522
      %2868 = vmatpush.bf16.msra.mxu0 %v1518
      %2869 = vmatpush.bf16.msra.mxu0 %v1514
      %2870 = vmatmul.bf16.gmra.mxu0 %v684
      %v2871 = vpop.f32.mrf.mxu0
      %v2872 = vadd.f32 %v2823, %v2871
      %v2873 = vpop.f32.mrf.mxu0
      %v2874 = vadd.f32 %v2825, %v2873
      %2875 = vmatmul.bf16.gmra.mxu0 %v690
      %v2876 = vpop.f32.mrf.mxu0
      %v2877 = vadd.f32 %v2828, %v2876
      %v2878 = vpop.f32.mrf.mxu0
      %v2879 = vadd.f32 %v2830, %v2878
      %2880 = vmatmul.bf16.gmra.mxu0 %v696
      %v2881 = vpop.f32.mrf.mxu0
      %v2882 = vadd.f32 %v2833, %v2881
      %v2883 = vpop.f32.mrf.mxu0
      %v2884 = vadd.f32 %v2835, %v2883
      %2885 = vmatmul.bf16.gmra.mxu0 %v702
      %v2886 = vpop.f32.mrf.mxu0
      %v2887 = vadd.f32 %v2838, %v2886
      %v2888 = vpop.f32.mrf.mxu0
      %v2889 = vadd.f32 %v2840, %v2888
      %2890 = vmatmul.bf16.gmra.mxu0 %v708
      %v2891 = vpop.f32.mrf.mxu0
      %v2892 = vadd.f32 %v2843, %v2891
      %v2893 = vpop.f32.mrf.mxu0
      %v2894 = vadd.f32 %v2845, %v2893
      %2895 = vmatmul.bf16.gmra.mxu0 %v714
      %v2896 = vpop.f32.mrf.mxu0
      %v2897 = vadd.f32 %v2848, %v2896
      %v2898 = vpop.f32.mrf.mxu0
      %v2899 = vadd.f32 %v2850, %v2898
      %2900 = vmatmul.bf16.gmra.mxu0 %v720
      %v2901 = vpop.f32.mrf.mxu0
      %v2902 = vadd.f32 %v2853, %v2901
      %v2903 = vpop.f32.mrf.mxu0
      %v2904 = vadd.f32 %v2855, %v2903
      %2905 = vmatmul.bf16.gmra.mxu0 %v726
      %v2906 = vpop.f32.mrf.mxu0
      %v2907 = vadd.f32 %v2858, %v2906
      %v2908 = vpop.f32.mrf.mxu0
      %v2909 = vadd.f32 %v2860, %v2908
      %2910 = vdwg.mxu0
      %v2911 = vmax.f32 %v1990, 0.0
      %v2912 = vmax.f32 %v2284, 0.0
      %v2913 = vmax.f32 %v2578, 0.0
      %v2914 = vmax.f32 %v2872, 0.0
      %v2915 = vmax.f32 %v1992, 0.0
      %v2916 = vmax.f32 %v2286, 0.0
      %v2917 = vmax.f32 %v2580, 0.0
      %v2918 = vmax.f32 %v2874, 0.0
      %v2919 = vmax.f32 %v1995, 0.0
      %v2920 = vmax.f32 %v2289, 0.0
      %v2921 = vmax.f32 %v2583, 0.0
      %v2922 = vmax.f32 %v2877, 0.0
      %v2923 = vmax.f32 %v1997, 0.0
      %v2924 = vmax.f32 %v2291, 0.0
      %v2925 = vmax.f32 %v2585, 0.0
      %v2926 = vmax.f32 %v2879, 0.0
      %v2927 = vmax.f32 %v2000, 0.0
      %v2928 = vmax.f32 %v2294, 0.0
      %v2929 = vmax.f32 %v2588, 0.0
      %v2930 = vmax.f32 %v2882, 0.0
      %v2931 = vmax.f32 %v2002, 0.0
      %v2932 = vmax.f32 %v2296, 0.0
      %v2933 = vmax.f32 %v2590, 0.0
      %v2934 = vmax.f32 %v2884, 0.0
      %v2935 = vmax.f32 %v2005, 0.0
      %v2936 = vmax.f32 %v2299, 0.0
      %v2937 = vmax.f32 %v2593, 0.0
      %v2938 = vmax.f32 %v2887, 0.0
      %v2939 = vmax.f32 %v2007, 0.0
      %v2940 = vmax.f32 %v2301, 0.0
      %v2941 = vmax.f32 %v2595, 0.0
      %v2942 = vmax.f32 %v2889, 0.0
      %v2943 = vmax.f32 %v2010, 0.0
      %v2944 = vmax.f32 %v2304, 0.0
      %v2945 = vmax.f32 %v2598, 0.0
      %v2946 = vmax.f32 %v2892, 0.0
      %v2947 = vmax.f32 %v2012, 0.0
      %v2948 = vmax.f32 %v2306, 0.0
      %v2949 = vmax.f32 %v2600, 0.0
      %v2950 = vmax.f32 %v2894, 0.0
      %v2951 = vmax.f32 %v2015, 0.0
      %v2952 = vmax.f32 %v2309, 0.0
      %v2953 = vmax.f32 %v2603, 0.0
      %v2954 = vmax.f32 %v2897, 0.0
      %v2955 = vmax.f32 %v2017, 0.0
      %v2956 = vmax.f32 %v2311, 0.0
      %v2957 = vmax.f32 %v2605, 0.0
      %v2958 = vmax.f32 %v2899, 0.0
      %v2959 = vmax.f32 %v2020, 0.0
      %v2960 = vmax.f32 %v2314, 0.0
      %v2961 = vmax.f32 %v2608, 0.0
      %v2962 = vmax.f32 %v2902, 0.0
      %v2963 = vmax.f32 %v2022, 0.0
      %v2964 = vmax.f32 %v2316, 0.0
      %v2965 = vmax.f32 %v2610, 0.0
      %v2966 = vmax.f32 %v2904, 0.0
      %v2967 = vmax.f32 %v2025, 0.0
      %v2968 = vmax.f32 %v2319, 0.0
      %v2969 = vmax.f32 %v2613, 0.0
      %v2970 = vmax.f32 %v2907, 0.0
      %v2971 = vmax.f32 %v2027, 0.0
      %v2972 = vmax.f32 %v2321, 0.0
      %v2973 = vmax.f32 %v2615, 0.0
      %v2974 = vmax.f32 %v2909, 0.0
      %v2975 = vpack.c.bf16 %v2915, %v2911
      %v2976 = vpack.c.bf16 %v2916, %v2912
      %v2977 = vpack.c.bf16 %v2917, %v2913
      %v2978 = vpack.c.bf16 %v2918, %v2914
      %v2979 = vpack.c.bf16 %v2923, %v2919
      %v2980 = vpack.c.bf16 %v2924, %v2920
      %v2981 = vpack.c.bf16 %v2925, %v2921
      %v2982 = vpack.c.bf16 %v2926, %v2922
      %v2983 = vpack.c.bf16 %v2931, %v2927
      %v2984 = vpack.c.bf16 %v2932, %v2928
      %v2985 = vpack.c.bf16 %v2933, %v2929
      %v2986 = vpack.c.bf16 %v2934, %v2930
      %v2987 = vpack.c.bf16 %v2939, %v2935
      %v2988 = vpack.c.bf16 %v2940, %v2936
      %v2989 = vpack.c.bf16 %v2941, %v2937
      %v2990 = vpack.c.bf16 %v2942, %v2938
      %v2991 = vpack.c.bf16 %v2947, %v2943
      %v2992 = vpack.c.bf16 %v2948, %v2944
      %v2993 = vpack.c.bf16 %v2949, %v2945
      %v2994 = vpack.c.bf16 %v2950, %v2946
      %v2995 = vpack.c.bf16 %v2955, %v2951
      %v2996 = vpack.c.bf16 %v2956, %v2952
      %v2997 = vpack.c.bf16 %v2957, %v2953
      %v2998 = vpack.c.bf16 %v2958, %v2954
      %v2999 = vpack.c.bf16 %v2963, %v2959
      %v3000 = vpack.c.bf16 %v2964, %v2960
      %v3001 = vpack.c.bf16 %v2965, %v2961
      %v3002 = vpack.c.bf16 %v2966, %v2962
      %v3003 = vpack.c.bf16 %v2971, %v2967
      %v3004 = vpack.c.bf16 %v2972, %v2968
      %v3005 = vpack.c.bf16 %v2973, %v2969
      %v3006 = vpack.c.bf16 %v2974, %v2970
      %v3007 = vld [vmem:[%s3] sm:$0xff]
      %v3008 = vld [vmem:[%s3 + $0x8] sm:$0xf]
      %v3009 = vld [vmem:[%s3 + $0xc] sm:$0xff]
      %v3010 = vld [vmem:[%s3 + $0x14] sm:$0xf]
      %v3011 = vld [vmem:[%s3 + $0x18] sm:$0xff]
      %v3012 = vld [vmem:[%s3 + $0x20] sm:$0xf]
      %v3013 = vld [vmem:[%s3 + $0x24] sm:$0xff]
      %v3014 = vld [vmem:[%s3 + $0x2c] sm:$0xf]
      %v3015 = vld [vmem:[%s3 + $0x30] sm:$0xff]
      %v3016 = vld [vmem:[%s3 + $0x38] sm:$0xf]
      %v3017 = vld [vmem:[%s3 + $0x3c] sm:$0xff]
      %v3018 = vld [vmem:[%s3 + $0x44] sm:$0xf]
      %v3019 = vld [vmem:[%s3 + $0x48] sm:$0xff]
      %v3020 = vld [vmem:[%s3 + $0x50] sm:$0xf]
      %v3021 = vld [vmem:[%s3 + $0x54] sm:$0xff]
      %v3022 = vld [vmem:[%s3 + $0x5c] sm:$0xf]
      %v3023 = vld [vmem:[%s3 + $0x60] sm:$0xff]
      %v3024 = vld [vmem:[%s3 + $0x68] sm:$0xf]
      %v3025 = vld [vmem:[%s3 + $0x6c] sm:$0xff]
      %v3026 = vld [vmem:[%s3 + $0x74] sm:$0xf]
      %v3027 = vld [vmem:[%s3 + $0x78] sm:$0xff]
      %v3028 = vld [vmem:[%s3 + $0x80] sm:$0xf]
      %v3029 = vld [vmem:[%s3 + $0x84] sm:$0xff]
      %v3030 = vld [vmem:[%s3 + $0x8c] sm:$0xf]
      %v3031 = vld [vmem:[%s3 + $0x90] sm:$0xff]
      %v3032 = vld [vmem:[%s3 + $0x98] sm:$0xf]
      %v3033 = vld [vmem:[%s3 + $0x9c] sm:$0xff]
      %v3034 = vld [vmem:[%s3 + $0xa4] sm:$0xf]
      %v3035 = vld [vmem:[%s3 + $0xa8] sm:$0xff]
      %v3036 = vld [vmem:[%s3 + $0xb0] sm:$0xf]
      %v3037 = vld [vmem:[%s3 + $0xb4] sm:$0xff]
      %v3038 = vld [vmem:[%s3 + $0xbc] sm:$0xf]
      %v3039 = vld [vmem:[%s3 + $0xc0] sm:$0xff]
      %v3040 = vld [vmem:[%s3 + $0xc8] sm:$0xf]
      %v3041 = vld [vmem:[%s3 + $0xcc] sm:$0xff]
      %v3042 = vld [vmem:[%s3 + $0xd4] sm:$0xf]
      %v3043 = vld [vmem:[%s3 + $0xd8] sm:$0xff]
      %v3044 = vld [vmem:[%s3 + $0xe0] sm:$0xf]
      %v3045 = vld [vmem:[%s3 + $0xe4] sm:$0xff]
      %v3046 = vld [vmem:[%s3 + $0xec] sm:$0xf]
      %v3047 = vld [vmem:[%s3 + $0xf0] sm:$0xff]
      %v3048 = vld [vmem:[%s3 + $0xf8] sm:$0xf]
      %v3049 = vld [vmem:[%s3 + $0xfc] sm:$0xff]
      %v3050 = vld [vmem:[%s3 + $0x104] sm:$0xf]
      %v3051 = vld [vmem:[%s3 + $0x108] sm:$0xff]
      %v3052 = vld [vmem:[%s3 + $0x110] sm:$0xf]
      %v3053 = vld [vmem:[%s3 + $0x114] sm:$0xff]
      %v3054 = vld [vmem:[%s3 + $0x11c] sm:$0xf]
      %v3055 = vld [vmem:[%s3 + $0x120] sm:$0xff]
      %v3056 = vld [vmem:[%s3 + $0x128] sm:$0xf]
      %v3057 = vld [vmem:[%s3 + $0x12c] sm:$0xff]
      %v3058 = vld [vmem:[%s3 + $0x134] sm:$0xf]
      %v3059 = vld [vmem:[%s3 + $0x138] sm:$0xff]
      %v3060 = vld [vmem:[%s3 + $0x140] sm:$0xf]
      %v3061 = vld [vmem:[%s3 + $0x144] sm:$0xff]
      %v3062 = vld [vmem:[%s3 + $0x14c] sm:$0xf]
      %v3063 = vld [vmem:[%s3 + $0x150] sm:$0xff]
      %v3064 = vld [vmem:[%s3 + $0x158] sm:$0xf]
      %v3065 = vld [vmem:[%s3 + $0x15c] sm:$0xff]
      %v3066 = vld [vmem:[%s3 + $0x164] sm:$0xf]
      %v3067 = vld [vmem:[%s3 + $0x168] sm:$0xff]
      %v3068 = vld [vmem:[%s3 + $0x170] sm:$0xf]
      %v3069 = vld [vmem:[%s3 + $0x174] sm:$0xff]
      %v3070 = vld [vmem:[%s3 + $0x17c] sm:$0xf]
      %v3071 = vld [vmem:[%s3 + $0x180] sm:$0xff]
      %v3072 = vld [vmem:[%s3 + $0x188] sm:$0xf]
      %v3073 = vld [vmem:[%s3 + $0x18c] sm:$0xff]
      %v3074 = vld [vmem:[%s3 + $0x194] sm:$0xf]
      %v3075 = vld [vmem:[%s3 + $0x198] sm:$0xff]
      %v3076 = vld [vmem:[%s3 + $0x1a0] sm:$0xf]
      %v3077 = vld [vmem:[%s3 + $0x1a4] sm:$0xff]
      %v3078 = vld [vmem:[%s3 + $0x1ac] sm:$0xf]
      %v3079 = vld [vmem:[%s3 + $0x1b0] sm:$0xff]
      %v3080 = vld [vmem:[%s3 + $0x1b8] sm:$0xf]
      %v3081 = vld [vmem:[%s3 + $0x1bc] sm:$0xff]
      %v3082 = vld [vmem:[%s3 + $0x1c4] sm:$0xf]
      %v3083 = vld [vmem:[%s3 + $0x1c8] sm:$0xff]
      %v3084 = vld [vmem:[%s3 + $0x1d0] sm:$0xf]
      %v3085 = vld [vmem:[%s3 + $0x1d4] sm:$0xff]
      %v3086 = vld [vmem:[%s3 + $0x1dc] sm:$0xf]
      %v3087 = vld [vmem:[%s3 + $0x1e0] sm:$0xff]
      %v3088 = vld [vmem:[%s3 + $0x1e8] sm:$0xf]
      %v3089 = vld [vmem:[%s3 + $0x1ec] sm:$0xff]
      %v3090 = vld [vmem:[%s3 + $0x1f4] sm:$0xf]
      %v3091 = vld [vmem:[%s3 + $0x1f8] sm:$0xff]
      %v3092 = vld [vmem:[%s3 + $0x200] sm:$0xf]
      %v3093 = vld [vmem:[%s3 + $0x204] sm:$0xff]
      %v3094 = vld [vmem:[%s3 + $0x20c] sm:$0xf]
      %v3095 = vld [vmem:[%s3 + $0x210] sm:$0xff]
      %v3096 = vld [vmem:[%s3 + $0x218] sm:$0xf]
      %v3097 = vld [vmem:[%s3 + $0x21c] sm:$0xff]
      %v3098 = vld [vmem:[%s3 + $0x224] sm:$0xf]
      %v3099 = vld [vmem:[%s3 + $0x228] sm:$0xff]
      %v3100 = vld [vmem:[%s3 + $0x230] sm:$0xf]
      %v3101 = vld [vmem:[%s3 + $0x234] sm:$0xff]
      %v3102 = vld [vmem:[%s3 + $0x23c] sm:$0xf]
      %v3103 = vld [vmem:[%s3 + $0x240] sm:$0xff]
      %v3104 = vld [vmem:[%s3 + $0x248] sm:$0xf]
      %v3105 = vld [vmem:[%s3 + $0x24c] sm:$0xff]
      %v3106 = vld [vmem:[%s3 + $0x254] sm:$0xf]
      %v3107 = vld [vmem:[%s3 + $0x258] sm:$0xff]
      %v3108 = vld [vmem:[%s3 + $0x260] sm:$0xf]
      %v3109 = vld [vmem:[%s3 + $0x264] sm:$0xff]
      %v3110 = vld [vmem:[%s3 + $0x26c] sm:$0xf]
      %v3111 = vld [vmem:[%s3 + $0x270] sm:$0xff]
      %v3112 = vld [vmem:[%s3 + $0x278] sm:$0xf]
      %v3113 = vld [vmem:[%s3 + $0x27c] sm:$0xff]
      %v3114 = vld [vmem:[%s3 + $0x284] sm:$0xf]
      %v3115 = vld [vmem:[%s3 + $0x288] sm:$0xff]
      %v3116 = vld [vmem:[%s3 + $0x290] sm:$0xf]
      %v3117 = vld [vmem:[%s3 + $0x294] sm:$0xff]
      %v3118 = vld [vmem:[%s3 + $0x29c] sm:$0xf]
      %v3119 = vld [vmem:[%s3 + $0x2a0] sm:$0xff]
      %v3120 = vld [vmem:[%s3 + $0x2a8] sm:$0xf]
      %v3121 = vld [vmem:[%s3 + $0x2ac] sm:$0xff]
      %v3122 = vld [vmem:[%s3 + $0x2b4] sm:$0xf]
      %v3123 = vld [vmem:[%s3 + $0x2b8] sm:$0xff]
      %v3124 = vld [vmem:[%s3 + $0x2c0] sm:$0xf]
      %v3125 = vld [vmem:[%s3 + $0x2c4] sm:$0xff]
      %v3126 = vld [vmem:[%s3 + $0x2cc] sm:$0xf]
      %v3127 = vld [vmem:[%s3 + $0x2d0] sm:$0xff]
      %v3128 = vld [vmem:[%s3 + $0x2d8] sm:$0xf]
      %v3129 = vld [vmem:[%s3 + $0x2dc] sm:$0xff]
      %v3130 = vld [vmem:[%s3 + $0x2e4] sm:$0xf]
      %v3131 = vld [vmem:[%s3 + $0x2e8] sm:$0xff]
      %v3132 = vld [vmem:[%s3 + $0x2f0] sm:$0xf]
      %v3133 = vld [vmem:[%s3 + $0x2f4] sm:$0xff]
      %v3134 = vld [vmem:[%s3 + $0x2fc] sm:$0xf]
      %v3135 = vld [vmem:[%s4] sm:$0x7]
      %v3137 = vperm.slane %v3135, 0
      %v3138 = vperm.slane %v3135, 1
      %v3139 = vperm.slane %v3135, 2
      %v3271 = vunpack.c.l.b16 %v3007
      %v3272 = vunpack.c.h.b16 %v3007
      %v3273 = vunpack.c.l.b16 %v3008
      %v3274 = vunpack.c.l.b16 %v3009
      %v3275 = vunpack.c.h.b16 %v3009
      %v3276 = vunpack.c.l.b16 %v3010
      %v3277 = vunpack.c.l.b16 %v3011
      %v3278 = vunpack.c.h.b16 %v3011
      %v3279 = vunpack.c.l.b16 %v3012
      %v3280 = vunpack.c.l.b16 %v3013
      %v3281 = vunpack.c.h.b16 %v3013
      %v3282 = vunpack.c.l.b16 %v3014
      %v3283 = vunpack.c.l.b16 %v3015
      %v3284 = vunpack.c.h.b16 %v3015
      %v3285 = vunpack.c.l.b16 %v3016
      %v3286 = vunpack.c.l.b16 %v3017
      %v3287 = vunpack.c.h.b16 %v3017
      %v3288 = vunpack.c.l.b16 %v3018
      %v3289 = vunpack.c.l.b16 %v3019
      %v3290 = vunpack.c.h.b16 %v3019
      %v3291 = vunpack.c.l.b16 %v3020
      %v3292 = vunpack.c.l.b16 %v3021
      %v3293 = vunpack.c.h.b16 %v3021
      %v3294 = vunpack.c.l.b16 %v3022
      %v3295 = vunpack.c.l.b16 %v3023
      %v3296 = vunpack.c.h.b16 %v3023
      %v3297 = vunpack.c.l.b16 %v3024
      %v3298 = vunpack.c.l.b16 %v3025
      %v3299 = vunpack.c.h.b16 %v3025
      %v3300 = vunpack.c.l.b16 %v3026
      %v3301 = vunpack.c.l.b16 %v3027
      %v3302 = vunpack.c.h.b16 %v3027
      %v3303 = vunpack.c.l.b16 %v3028
      %v3304 = vunpack.c.l.b16 %v3029
      %v3305 = vunpack.c.h.b16 %v3029
      %v3306 = vunpack.c.l.b16 %v3030
      %v3307 = vunpack.c.l.b16 %v3031
      %v3308 = vunpack.c.h.b16 %v3031
      %v3309 = vunpack.c.l.b16 %v3032
      %v3310 = vunpack.c.l.b16 %v3033
      %v3311 = vunpack.c.h.b16 %v3033
      %v3312 = vunpack.c.l.b16 %v3034
      %v3313 = vunpack.c.l.b16 %v3035
      %v3314 = vunpack.c.h.b16 %v3035
      %v3315 = vunpack.c.l.b16 %v3036
      %v3316 = vunpack.c.l.b16 %v3037
      %v3317 = vunpack.c.h.b16 %v3037
      %v3318 = vunpack.c.l.b16 %v3038
      %v3319 = vunpack.c.l.b16 %v3039
      %v3320 = vunpack.c.h.b16 %v3039
      %v3321 = vunpack.c.l.b16 %v3040
      %v3322 = vunpack.c.l.b16 %v3041
      %v3323 = vunpack.c.h.b16 %v3041
      %v3324 = vunpack.c.l.b16 %v3042
      %v3325 = vunpack.c.l.b16 %v3043
      %v3326 = vunpack.c.h.b16 %v3043
      %v3327 = vunpack.c.l.b16 %v3044
      %v3328 = vunpack.c.l.b16 %v3045
      %v3329 = vunpack.c.h.b16 %v3045
      %v3330 = vunpack.c.l.b16 %v3046
      %v3331 = vunpack.c.l.b16 %v3047
      %v3332 = vunpack.c.h.b16 %v3047
      %v3333 = vunpack.c.l.b16 %v3048
      %v3334 = vunpack.c.l.b16 %v3049
      %v3335 = vunpack.c.h.b16 %v3049
      %v3336 = vunpack.c.l.b16 %v3050
      %v3337 = vunpack.c.l.b16 %v3051
      %v3338 = vunpack.c.h.b16 %v3051
      %v3339 = vunpack.c.l.b16 %v3052
      %v3340 = vunpack.c.l.b16 %v3053
      %v3341 = vunpack.c.h.b16 %v3053
      %v3342 = vunpack.c.l.b16 %v3054
      %v3343 = vunpack.c.l.b16 %v3055
      %v3344 = vunpack.c.h.b16 %v3055
      %v3345 = vunpack.c.l.b16 %v3056
      %v3346 = vunpack.c.l.b16 %v3057
      %v3347 = vunpack.c.h.b16 %v3057
      %v3348 = vunpack.c.l.b16 %v3058
      %v3349 = vunpack.c.l.b16 %v3059
      %v3350 = vunpack.c.h.b16 %v3059
      %v3351 = vunpack.c.l.b16 %v3060
      %v3352 = vunpack.c.l.b16 %v3061
      %v3353 = vunpack.c.h.b16 %v3061
      %v3354 = vunpack.c.l.b16 %v3062
      %v3355 = vunpack.c.l.b16 %v3063
      %v3356 = vunpack.c.h.b16 %v3063
      %v3357 = vunpack.c.l.b16 %v3064
      %v3358 = vunpack.c.l.b16 %v3065
      %v3359 = vunpack.c.h.b16 %v3065
      %v3360 = vunpack.c.l.b16 %v3066
      %v3361 = vunpack.c.l.b16 %v3067
      %v3362 = vunpack.c.h.b16 %v3067
      %v3363 = vunpack.c.l.b16 %v3068
      %v3364 = vunpack.c.l.b16 %v3069
      %v3365 = vunpack.c.h.b16 %v3069
      %v3366 = vunpack.c.l.b16 %v3070
      %v3367 = vunpack.c.l.b16 %v3071
      %v3368 = vunpack.c.h.b16 %v3071
      %v3369 = vunpack.c.l.b16 %v3072
      %v3370 = vunpack.c.l.b16 %v3073
      %v3371 = vunpack.c.h.b16 %v3073
      %v3372 = vunpack.c.l.b16 %v3074
      %v3373 = vunpack.c.l.b16 %v3075
      %v3374 = vunpack.c.h.b16 %v3075
      %v3375 = vunpack.c.l.b16 %v3076
      %v3376 = vunpack.c.l.b16 %v3077
      %v3377 = vunpack.c.h.b16 %v3077
      %v3378 = vunpack.c.l.b16 %v3078
      %v3379 = vunpack.c.l.b16 %v3079
      %v3380 = vunpack.c.h.b16 %v3079
      %v3381 = vunpack.c.l.b16 %v3080
      %v3382 = vunpack.c.l.b16 %v3081
      %v3383 = vunpack.c.h.b16 %v3081
      %v3384 = vunpack.c.l.b16 %v3082
      %v3385 = vunpack.c.l.b16 %v3083
      %v3386 = vunpack.c.h.b16 %v3083
      %v3387 = vunpack.c.l.b16 %v3084
      %v3388 = vunpack.c.l.b16 %v3085
      %v3389 = vunpack.c.h.b16 %v3085
      %v3390 = vunpack.c.l.b16 %v3086
      %v3391 = vunpack.c.l.b16 %v3087
      %v3392 = vunpack.c.h.b16 %v3087
      %v3393 = vunpack.c.l.b16 %v3088
      %v3394 = vunpack.c.l.b16 %v3089
      %v3395 = vunpack.c.h.b16 %v3089
      %v3396 = vunpack.c.l.b16 %v3090
      %v3397 = vunpack.c.l.b16 %v3091
      %v3398 = vunpack.c.h.b16 %v3091
      %v3399 = vunpack.c.l.b16 %v3092
      %v3400 = vunpack.c.l.b16 %v3093
      %v3401 = vunpack.c.h.b16 %v3093
      %v3402 = vunpack.c.l.b16 %v3094
      %v3403 = vunpack.c.l.b16 %v3095
      %v3404 = vunpack.c.h.b16 %v3095
      %v3405 = vunpack.c.l.b16 %v3096
      %v3406 = vunpack.c.l.b16 %v3097
      %v3407 = vunpack.c.h.b16 %v3097
      %v3408 = vunpack.c.l.b16 %v3098
      %v3409 = vunpack.c.l.b16 %v3099
      %v3410 = vunpack.c.h.b16 %v3099
      %v3411 = vunpack.c.l.b16 %v3100
      %v3412 = vunpack.c.l.b16 %v3101
      %v3413 = vunpack.c.h.b16 %v3101
      %v3414 = vunpack.c.l.b16 %v3102
      %v3415 = vunpack.c.l.b16 %v3103
      %v3416 = vunpack.c.h.b16 %v3103
      %v3417 = vunpack.c.l.b16 %v3104
      %v3418 = vunpack.c.l.b16 %v3105
      %v3419 = vunpack.c.h.b16 %v3105
      %v3420 = vunpack.c.l.b16 %v3106
      %v3421 = vunpack.c.l.b16 %v3107
      %v3422 = vunpack.c.h.b16 %v3107
      %v3423 = vunpack.c.l.b16 %v3108
      %v3424 = vunpack.c.l.b16 %v3109
      %v3425 = vunpack.c.h.b16 %v3109
      %v3426 = vunpack.c.l.b16 %v3110
      %v3427 = vunpack.c.l.b16 %v3111
      %v3428 = vunpack.c.h.b16 %v3111
      %v3429 = vunpack.c.l.b16 %v3112
      %v3430 = vunpack.c.l.b16 %v3113
      %v3431 = vunpack.c.h.b16 %v3113
      %v3432 = vunpack.c.l.b16 %v3114
      %v3433 = vunpack.c.l.b16 %v3115
      %v3434 = vunpack.c.h.b16 %v3115
      %v3435 = vunpack.c.l.b16 %v3116
      %v3436 = vunpack.c.l.b16 %v3117
      %v3437 = vunpack.c.h.b16 %v3117
      %v3438 = vunpack.c.l.b16 %v3118
      %v3439 = vunpack.c.l.b16 %v3119
      %v3440 = vunpack.c.h.b16 %v3119
      %v3441 = vunpack.c.l.b16 %v3120
      %v3442 = vunpack.c.l.b16 %v3121
      %v3443 = vunpack.c.h.b16 %v3121
      %v3444 = vunpack.c.l.b16 %v3122
      %v3445 = vunpack.c.l.b16 %v3123
      %v3446 = vunpack.c.h.b16 %v3123
      %v3447 = vunpack.c.l.b16 %v3124
      %v3448 = vunpack.c.l.b16 %v3125
      %v3449 = vunpack.c.h.b16 %v3125
      %v3450 = vunpack.c.l.b16 %v3126
      %v3451 = vunpack.c.l.b16 %v3127
      %v3452 = vunpack.c.h.b16 %v3127
      %v3453 = vunpack.c.l.b16 %v3128
      %v3454 = vunpack.c.l.b16 %v3129
      %v3455 = vunpack.c.h.b16 %v3129
      %v3456 = vunpack.c.l.b16 %v3130
      %v3457 = vunpack.c.l.b16 %v3131
      %v3458 = vunpack.c.h.b16 %v3131
      %v3459 = vunpack.c.l.b16 %v3132
      %v3460 = vunpack.c.l.b16 %v3133
      %v3461 = vunpack.c.h.b16 %v3133
      %v3462 = vunpack.c.l.b16 %v3134
      %v3463 = vpack.c.b16 %v3274, %v3271
      %v3464 = vpack.c.b16 %v3275, %v3272
      %v3465 = vpack.c.b16 %v3276, %v3273
      %v3466 = vpack.c.b16 %v3280, %v3277
      %v3467 = vpack.c.b16 %v3281, %v3278
      %v3468 = vpack.c.b16 %v3282, %v3279
      %v3469 = vpack.c.b16 %v3286, %v3283
      %v3470 = vpack.c.b16 %v3287, %v3284
      %v3471 = vpack.c.b16 %v3288, %v3285
      %v3472 = vpack.c.b16 %v3292, %v3289
      %v3473 = vpack.c.b16 %v3293, %v3290
      %v3474 = vpack.c.b16 %v3294, %v3291
      %v3475 = vpack.c.b16 %v3298, %v3295
      %v3476 = vpack.c.b16 %v3299, %v3296
      %v3477 = vpack.c.b16 %v3300, %v3297
      %v3478 = vpack.c.b16 %v3304, %v3301
      %v3479 = vpack.c.b16 %v3305, %v3302
      %v3480 = vpack.c.b16 %v3306, %v3303
      %v3481 = vpack.c.b16 %v3310, %v3307
      %v3482 = vpack.c.b16 %v3311, %v3308
      %v3483 = vpack.c.b16 %v3312, %v3309
      %v3484 = vpack.c.b16 %v3316, %v3313
      %v3485 = vpack.c.b16 %v3317, %v3314
      %v3486 = vpack.c.b16 %v3318, %v3315
      %v3487 = vpack.c.b16 %v3322, %v3319
      %v3488 = vpack.c.b16 %v3323, %v3320
      %v3489 = vpack.c.b16 %v3324, %v3321
      %v3490 = vpack.c.b16 %v3328, %v3325
      %v3491 = vpack.c.b16 %v3329, %v3326
      %v3492 = vpack.c.b16 %v3330, %v3327
      %v3493 = vpack.c.b16 %v3334, %v3331
      %v3494 = vpack.c.b16 %v3335, %v3332
      %v3495 = vpack.c.b16 %v3336, %v3333
      %v3496 = vpack.c.b16 %v3340, %v3337
      %v3497 = vpack.c.b16 %v3341, %v3338
      %v3498 = vpack.c.b16 %v3342, %v3339
      %v3499 = vpack.c.b16 %v3346, %v3343
      %v3500 = vpack.c.b16 %v3347, %v3344
      %v3501 = vpack.c.b16 %v3348, %v3345
      %v3502 = vpack.c.b16 %v3352, %v3349
      %v3503 = vpack.c.b16 %v3353, %v3350
      %v3504 = vpack.c.b16 %v3354, %v3351
      %v3505 = vpack.c.b16 %v3358, %v3355
      %v3506 = vpack.c.b16 %v3359, %v3356
      %v3507 = vpack.c.b16 %v3360, %v3357
      %v3508 = vpack.c.b16 %v3364, %v3361
      %v3509 = vpack.c.b16 %v3365, %v3362
      %v3510 = vpack.c.b16 %v3366, %v3363
      %v3511 = vpack.c.b16 %v3370, %v3367
      %v3512 = vpack.c.b16 %v3371, %v3368
      %v3513 = vpack.c.b16 %v3372, %v3369
      %v3514 = vpack.c.b16 %v3376, %v3373
      %v3515 = vpack.c.b16 %v3377, %v3374
      %v3516 = vpack.c.b16 %v3378, %v3375
      %v3517 = vpack.c.b16 %v3382, %v3379
      %v3518 = vpack.c.b16 %v3383, %v3380
      %v3519 = vpack.c.b16 %v3384, %v3381
      %v3520 = vpack.c.b16 %v3388, %v3385
      %v3521 = vpack.c.b16 %v3389, %v3386
      %v3522 = vpack.c.b16 %v3390, %v3387
      %v3523 = vpack.c.b16 %v3394, %v3391
      %v3524 = vpack.c.b16 %v3395, %v3392
      %v3525 = vpack.c.b16 %v3396, %v3393
      %v3526 = vpack.c.b16 %v3400, %v3397
      %v3527 = vpack.c.b16 %v3401, %v3398
      %v3528 = vpack.c.b16 %v3402, %v3399
      %v3529 = vpack.c.b16 %v3406, %v3403
      %v3530 = vpack.c.b16 %v3407, %v3404
      %v3531 = vpack.c.b16 %v3408, %v3405
      %v3532 = vpack.c.b16 %v3412, %v3409
      %v3533 = vpack.c.b16 %v3413, %v3410
      %v3534 = vpack.c.b16 %v3414, %v3411
      %v3535 = vpack.c.b16 %v3418, %v3415
      %v3536 = vpack.c.b16 %v3419, %v3416
      %v3537 = vpack.c.b16 %v3420, %v3417
      %v3538 = vpack.c.b16 %v3424, %v3421
      %v3539 = vpack.c.b16 %v3425, %v3422
      %v3540 = vpack.c.b16 %v3426, %v3423
      %v3541 = vpack.c.b16 %v3430, %v3427
      %v3542 = vpack.c.b16 %v3431, %v3428
      %v3543 = vpack.c.b16 %v3432, %v3429
      %v3544 = vpack.c.b16 %v3436, %v3433
      %v3545 = vpack.c.b16 %v3437, %v3434
      %v3546 = vpack.c.b16 %v3438, %v3435
      %v3547 = vpack.c.b16 %v3442, %v3439
      %v3548 = vpack.c.b16 %v3443, %v3440
      %v3549 = vpack.c.b16 %v3444, %v3441
      %v3550 = vpack.c.b16 %v3448, %v3445
      %v3551 = vpack.c.b16 %v3449, %v3446
      %v3552 = vpack.c.b16 %v3450, %v3447
      %v3553 = vpack.c.b16 %v3454, %v3451
      %v3554 = vpack.c.b16 %v3455, %v3452
      %v3555 = vpack.c.b16 %v3456, %v3453
      %v3556 = vpack.c.b16 %v3460, %v3457
      %v3557 = vpack.c.b16 %v3461, %v3458
      %v3558 = vpack.c.b16 %v3462, %v3459
      %3655 = vmatpush.bf16.msra.mxu0 %v3484
      %3656 = vmatpush.bf16.msra.mxu0 %v3481
      %3657 = vmatpush.bf16.msra.mxu0 %v3478
      %3658 = vmatpush.bf16.msra.mxu0 %v3475
      %3659 = vmatpush.bf16.msra.mxu0 %v3472
      %3660 = vmatpush.bf16.msra.mxu0 %v3469
      %3661 = vmatpush.bf16.msra.mxu0 %v3466
      %3662 = vmatpush.bf16.msra.mxu0 %v3463
      %3663 = vmatmul.bf16.gmra.mxu0 %v2975
      %v3664 = vpop.f32.mrf.mxu0
      %v3665 = vadd.f32 %v3137, %v3664
      %v3666 = vpop.f32.mrf.mxu0
      %v3667 = vadd.f32 %v3137, %v3666
      %3668 = vmatmul.bf16.gmra.mxu0 %v2979
      %v3669 = vpop.f32.mrf.mxu0
      %v3670 = vadd.f32 %v3137, %v3669
      %v3671 = vpop.f32.mrf.mxu0
      %v3672 = vadd.f32 %v3137, %v3671
      %3673 = vmatmul.bf16.gmra.mxu0 %v2983
      %v3674 = vpop.f32.mrf.mxu0
      %v3675 = vadd.f32 %v3137, %v3674
      %v3676 = vpop.f32.mrf.mxu0
      %v3677 = vadd.f32 %v3137, %v3676
      %3678 = vmatmul.bf16.gmra.mxu0 %v2987
      %v3679 = vpop.f32.mrf.mxu0
      %v3680 = vadd.f32 %v3137, %v3679
      %v3681 = vpop.f32.mrf.mxu0
      %v3682 = vadd.f32 %v3137, %v3681
      %3683 = vmatmul.bf16.gmra.mxu0 %v2991
      %v3684 = vpop.f32.mrf.mxu0
      %v3685 = vadd.f32 %v3137, %v3684
      %v3686 = vpop.f32.mrf.mxu0
      %v3687 = vadd.f32 %v3137, %v3686
      %3688 = vmatmul.bf16.gmra.mxu0 %v2995
      %v3689 = vpop.f32.mrf.mxu0
      %v3690 = vadd.f32 %v3137, %v3689
      %v3691 = vpop.f32.mrf.mxu0
      %v3692 = vadd.f32 %v3137, %v3691
      %3693 = vmatmul.bf16.gmra.mxu0 %v2999
      %v3694 = vpop.f32.mrf.mxu0
      %v3695 = vadd.f32 %v3137, %v3694
      %v3696 = vpop.f32.mrf.mxu0
      %v3697 = vadd.f32 %v3137, %v3696
      %3698 = vmatmul.bf16.gmra.mxu0 %v3003
      %v3699 = vpop.f32.mrf.mxu0
      %v3700 = vadd.f32 %v3137, %v3699
      %v3701 = vpop.f32.mrf.mxu0
      %v3702 = vadd.f32 %v3137, %v3701
      %3703 = vdwg.mxu0
      %3704 = vmatpush.bf16.msra.mxu0 %v3508
      %3705 = vmatpush.bf16.msra.mxu0 %v3505
      %3706 = vmatpush.bf16.msra.mxu0 %v3502
      %3707 = vmatpush.bf16.msra.mxu0 %v3499
      %3708 = vmatpush.bf16.msra.mxu0 %v3496
      %3709 = vmatpush.bf16.msra.mxu0 %v3493
      %3710 = vmatpush.bf16.msra.mxu0 %v3490
      %3711 = vmatpush.bf16.msra.mxu0 %v3487
      %3712 = vmatmul.bf16.gmra.mxu0 %v2976
      %v3713 = vpop.f32.mrf.mxu0
      %v3714 = vadd.f32 %v3665, %v3713
      %v3715 = vpop.f32.mrf.mxu0
      %v3716 = vadd.f32 %v3667, %v3715
      %3717 = vmatmul.bf16.gmra.mxu0 %v2980
      %v3718 = vpop.f32.mrf.mxu0
      %v3719 = vadd.f32 %v3670, %v3718
      %v3720 = vpop.f32.mrf.mxu0
      %v3721 = vadd.f32 %v3672, %v3720
      %3722 = vmatmul.bf16.gmra.mxu0 %v2984
      %v3723 = vpop.f32.mrf.mxu0
      %v3724 = vadd.f32 %v3675, %v3723
      %v3725 = vpop.f32.mrf.mxu0
      %v3726 = vadd.f32 %v3677, %v3725
      %3727 = vmatmul.bf16.gmra.mxu0 %v2988
      %v3728 = vpop.f32.mrf.mxu0
      %v3729 = vadd.f32 %v3680, %v3728
      %v3730 = vpop.f32.mrf.mxu0
      %v3731 = vadd.f32 %v3682, %v3730
      %3732 = vmatmul.bf16.gmra.mxu0 %v2992
      %v3733 = vpop.f32.mrf.mxu0
      %v3734 = vadd.f32 %v3685, %v3733
      %v3735 = vpop.f32.mrf.mxu0
      %v3736 = vadd.f32 %v3687, %v3735
      %3737 = vmatmul.bf16.gmra.mxu0 %v2996
      %v3738 = vpop.f32.mrf.mxu0
      %v3739 = vadd.f32 %v3690, %v3738
      %v3740 = vpop.f32.mrf.mxu0
      %v3741 = vadd.f32 %v3692, %v3740
      %3742 = vmatmul.bf16.gmra.mxu0 %v3000
      %v3743 = vpop.f32.mrf.mxu0
      %v3744 = vadd.f32 %v3695, %v3743
      %v3745 = vpop.f32.mrf.mxu0
      %v3746 = vadd.f32 %v3697, %v3745
      %3747 = vmatmul.bf16.gmra.mxu0 %v3004
      %v3748 = vpop.f32.mrf.mxu0
      %v3749 = vadd.f32 %v3700, %v3748
      %v3750 = vpop.f32.mrf.mxu0
      %v3751 = vadd.f32 %v3702, %v3750
      %3752 = vdwg.mxu0
      %3753 = vmatpush.bf16.msra.mxu0 %v3532
      %3754 = vmatpush.bf16.msra.mxu0 %v3529
      %3755 = vmatpush.bf16.msra.mxu0 %v3526
      %3756 = vmatpush.bf16.msra.mxu0 %v3523
      %3757 = vmatpush.bf16.msra.mxu0 %v3520
      %3758 = vmatpush.bf16.msra.mxu0 %v3517
      %3759 = vmatpush.bf16.msra.mxu0 %v3514
      %3760 = vmatpush.bf16.msra.mxu0 %v3511
      %3761 = vmatmul.bf16.gmra.mxu0 %v2977
      %v3762 = vpop.f32.mrf.mxu0
      %v3763 = vadd.f32 %v3714, %v3762
      %v3764 = vpop.f32.mrf.mxu0
      %v3765 = vadd.f32 %v3716, %v3764
      %3766 = vmatmul.bf16.gmra.mxu0 %v2981
      %v3767 = vpop.f32.mrf.mxu0
      %v3768 = vadd.f32 %v3719, %v3767
      %v3769 = vpop.f32.mrf.mxu0
      %v3770 = vadd.f32 %v3721, %v3769
      %3771 = vmatmul.bf16.gmra.mxu0 %v2985
      %v3772 = vpop.f32.mrf.mxu0
      %v3773 = vadd.f32 %v3724, %v3772
      %v3774 = vpop.f32.mrf.mxu0
      %v3775 = vadd.f32 %v3726, %v3774
      %3776 = vmatmul.bf16.gmra.mxu0 %v2989
      %v3777 = vpop.f32.mrf.mxu0
      %v3778 = vadd.f32 %v3729, %v3777
      %v3779 = vpop.f32.mrf.mxu0
      %v3780 = vadd.f32 %v3731, %v3779
      %3781 = vmatmul.bf16.gmra.mxu0 %v2993
      %v3782 = vpop.f32.mrf.mxu0
      %v3783 = vadd.f32 %v3734, %v3782
      %v3784 = vpop.f32.mrf.mxu0
      %v3785 = vadd.f32 %v3736, %v3784
      %3786 = vmatmul.bf16.gmra.mxu0 %v2997
      %v3787 = vpop.f32.mrf.mxu0
      %v3788 = vadd.f32 %v3739, %v3787
      %v3789 = vpop.f32.mrf.mxu0
      %v3790 = vadd.f32 %v3741, %v3789
      %3791 = vmatmul.bf16.gmra.mxu0 %v3001
      %v3792 = vpop.f32.mrf.mxu0
      %v3793 = vadd.f32 %v3744, %v3792
      %v3794 = vpop.f32.mrf.mxu0
      %v3795 = vadd.f32 %v3746, %v3794
      %3796 = vmatmul.bf16.gmra.mxu0 %v3005
      %v3797 = vpop.f32.mrf.mxu0
      %v3798 = vadd.f32 %v3749, %v3797
      %v3799 = vpop.f32.mrf.mxu0
      %v3800 = vadd.f32 %v3751, %v3799
      %3801 = vdwg.mxu0
      %3802 = vmatpush.bf16.msra.mxu0 %v3556
      %3803 = vmatpush.bf16.msra.mxu0 %v3553
      %3804 = vmatpush.bf16.msra.mxu0 %v3550
      %3805 = vmatpush.bf16.msra.mxu0 %v3547
      %3806 = vmatpush.bf16.msra.mxu0 %v3544
      %3807 = vmatpush.bf16.msra.mxu0 %v3541
      %3808 = vmatpush.bf16.msra.mxu0 %v3538
      %3809 = vmatpush.bf16.msra.mxu0 %v3535
      %3810 = vmatmul.bf16.gmra.mxu0 %v2978
      %v3811 = vpop.f32.mrf.mxu0
      %v3812 = vadd.f32 %v3763, %v3811
      %v3813 = vpop.f32.mrf.mxu0
      %v3814 = vadd.f32 %v3765, %v3813
      %3815 = vmatmul.bf16.gmra.mxu0 %v2982
      %v3816 = vpop.f32.mrf.mxu0
      %v3817 = vadd.f32 %v3768, %v3816
      %v3818 = vpop.f32.mrf.mxu0
      %v3819 = vadd.f32 %v3770, %v3818
      %3820 = vmatmul.bf16.gmra.mxu0 %v2986
      %v3821 = vpop.f32.mrf.mxu0
      %v3822 = vadd.f32 %v3773, %v3821
      %v3823 = vpop.f32.mrf.mxu0
      %v3824 = vadd.f32 %v3775, %v3823
      %3825 = vmatmul.bf16.gmra.mxu0 %v2990
      %v3826 = vpop.f32.mrf.mxu0
      %v3827 = vadd.f32 %v3778, %v3826
      %v3828 = vpop.f32.mrf.mxu0
      %v3829 = vadd.f32 %v3780, %v3828
      %3830 = vmatmul.bf16.gmra.mxu0 %v2994
      %v3831 = vpop.f32.mrf.mxu0
      %v3832 = vadd.f32 %v3783, %v3831
      %v3833 = vpop.f32.mrf.mxu0
      %v3834 = vadd.f32 %v3785, %v3833
      %3835 = vmatmul.bf16.gmra.mxu0 %v2998
      %v3836 = vpop.f32.mrf.mxu0
      %v3837 = vadd.f32 %v3788, %v3836
      %v3838 = vpop.f32.mrf.mxu0
      %v3839 = vadd.f32 %v3790, %v3838
      %3840 = vmatmul.bf16.gmra.mxu0 %v3002
      %v3841 = vpop.f32.mrf.mxu0
      %v3842 = vadd.f32 %v3793, %v3841
      %v3843 = vpop.f32.mrf.mxu0
      %v3844 = vadd.f32 %v3795, %v3843
      %3845 = vmatmul.bf16.gmra.mxu0 %v3006
      %v3846 = vpop.f32.mrf.mxu0
      %v3847 = vadd.f32 %v3798, %v3846
      %v3848 = vpop.f32.mrf.mxu0
      %v3849 = vadd.f32 %v3800, %v3848
      %3850 = vdwg.mxu0
      %3851 = vmatpush.bf16.msra.mxu0 %v3485
      %3852 = vmatpush.bf16.msra.mxu0 %v3482
      %3853 = vmatpush.bf16.msra.mxu0 %v3479
      %3854 = vmatpush.bf16.msra.mxu0 %v3476
      %3855 = vmatpush.bf16.msra.mxu0 %v3473
      %3856 = vmatpush.bf16.msra.mxu0 %v3470
      %3857 = vmatpush.bf16.msra.mxu0 %v3467
      %3858 = vmatpush.bf16.msra.mxu0 %v3464
      %3859 = vmatmul.bf16.gmra.mxu0 %v2975
      %v3860 = vpop.f32.mrf.mxu0
      %v3861 = vadd.f32 %v3138, %v3860
      %v3862 = vpop.f32.mrf.mxu0
      %v3863 = vadd.f32 %v3138, %v3862
      %3864 = vmatmul.bf16.gmra.mxu0 %v2979
      %v3865 = vpop.f32.mrf.mxu0
      %v3866 = vadd.f32 %v3138, %v3865
      %v3867 = vpop.f32.mrf.mxu0
      %v3868 = vadd.f32 %v3138, %v3867
      %3869 = vmatmul.bf16.gmra.mxu0 %v2983
      %v3870 = vpop.f32.mrf.mxu0
      %v3871 = vadd.f32 %v3138, %v3870
      %v3872 = vpop.f32.mrf.mxu0
      %v3873 = vadd.f32 %v3138, %v3872
      %3874 = vmatmul.bf16.gmra.mxu0 %v2987
      %v3875 = vpop.f32.mrf.mxu0
      %v3876 = vadd.f32 %v3138, %v3875
      %v3877 = vpop.f32.mrf.mxu0
      %v3878 = vadd.f32 %v3138, %v3877
      %3879 = vmatmul.bf16.gmra.mxu0 %v2991
      %v3880 = vpop.f32.mrf.mxu0
      %v3881 = vadd.f32 %v3138, %v3880
      %v3882 = vpop.f32.mrf.mxu0
      %v3883 = vadd.f32 %v3138, %v3882
      %3884 = vmatmul.bf16.gmra.mxu0 %v2995
      %v3885 = vpop.f32.mrf.mxu0
      %v3886 = vadd.f32 %v3138, %v3885
      %v3887 = vpop.f32.mrf.mxu0
      %v3888 = vadd.f32 %v3138, %v3887
      %3889 = vmatmul.bf16.gmra.mxu0 %v2999
      %v3890 = vpop.f32.mrf.mxu0
      %v3891 = vadd.f32 %v3138, %v3890
      %v3892 = vpop.f32.mrf.mxu0
      %v3893 = vadd.f32 %v3138, %v3892
      %3894 = vmatmul.bf16.gmra.mxu0 %v3003
      %v3895 = vpop.f32.mrf.mxu0
      %v3896 = vadd.f32 %v3138, %v3895
      %v3897 = vpop.f32.mrf.mxu0
      %v3898 = vadd.f32 %v3138, %v3897
      %3899 = vdwg.mxu0
      %3900 = vmatpush.bf16.msra.mxu0 %v3509
      %3901 = vmatpush.bf16.msra.mxu0 %v3506
      %3902 = vmatpush.bf16.msra.mxu0 %v3503
      %3903 = vmatpush.bf16.msra.mxu0 %v3500
      %3904 = vmatpush.bf16.msra.mxu0 %v3497
      %3905 = vmatpush.bf16.msra.mxu0 %v3494
      %3906 = vmatpush.bf16.msra.mxu0 %v3491
      %3907 = vmatpush.bf16.msra.mxu0 %v3488
      %3908 = vmatmul.bf16.gmra.mxu0 %v2976
      %v3909 = vpop.f32.mrf.mxu0
      %v3910 = vadd.f32 %v3861, %v3909
      %v3911 = vpop.f32.mrf.mxu0
      %v3912 = vadd.f32 %v3863, %v3911
      %3913 = vmatmul.bf16.gmra.mxu0 %v2980
      %v3914 = vpop.f32.mrf.mxu0
      %v3915 = vadd.f32 %v3866, %v3914
      %v3916 = vpop.f32.mrf.mxu0
      %v3917 = vadd.f32 %v3868, %v3916
      %3918 = vmatmul.bf16.gmra.mxu0 %v2984
      %v3919 = vpop.f32.mrf.mxu0
      %v3920 = vadd.f32 %v3871, %v3919
      %v3921 = vpop.f32.mrf.mxu0
      %v3922 = vadd.f32 %v3873, %v3921
      %3923 = vmatmul.bf16.gmra.mxu0 %v2988
      %v3924 = vpop.f32.mrf.mxu0
      %v3925 = vadd.f32 %v3876, %v3924
      %v3926 = vpop.f32.mrf.mxu0
      %v3927 = vadd.f32 %v3878, %v3926
      %3928 = vmatmul.bf16.gmra.mxu0 %v2992
      %v3929 = vpop.f32.mrf.mxu0
      %v3930 = vadd.f32 %v3881, %v3929
      %v3931 = vpop.f32.mrf.mxu0
      %v3932 = vadd.f32 %v3883, %v3931
      %3933 = vmatmul.bf16.gmra.mxu0 %v2996
      %v3934 = vpop.f32.mrf.mxu0
      %v3935 = vadd.f32 %v3886, %v3934
      %v3936 = vpop.f32.mrf.mxu0
      %v3937 = vadd.f32 %v3888, %v3936
      %3938 = vmatmul.bf16.gmra.mxu0 %v3000
      %v3939 = vpop.f32.mrf.mxu0
      %v3940 = vadd.f32 %v3891, %v3939
      %v3941 = vpop.f32.mrf.mxu0
      %v3942 = vadd.f32 %v3893, %v3941
      %3943 = vmatmul.bf16.gmra.mxu0 %v3004
      %v3944 = vpop.f32.mrf.mxu0
      %v3945 = vadd.f32 %v3896, %v3944
      %v3946 = vpop.f32.mrf.mxu0
      %v3947 = vadd.f32 %v3898, %v3946
      %3948 = vdwg.mxu0
      %3949 = vmatpush.bf16.msra.mxu0 %v3533
      %3950 = vmatpush.bf16.msra.mxu0 %v3530
      %3951 = vmatpush.bf16.msra.mxu0 %v3527
      %3952 = vmatpush.bf16.msra.mxu0 %v3524
      %3953 = vmatpush.bf16.msra.mxu0 %v3521
      %3954 = vmatpush.bf16.msra.mxu0 %v3518
      %3955 = vmatpush.bf16.msra.mxu0 %v3515
      %3956 = vmatpush.bf16.msra.mxu0 %v3512
      %3957 = vmatmul.bf16.gmra.mxu0 %v2977
      %v3958 = vpop.f32.mrf.mxu0
      %v3959 = vadd.f32 %v3910, %v3958
      %v3960 = vpop.f32.mrf.mxu0
      %v3961 = vadd.f32 %v3912, %v3960
      %3962 = vmatmul.bf16.gmra.mxu0 %v2981
      %v3963 = vpop.f32.mrf.mxu0
      %v3964 = vadd.f32 %v3915, %v3963
      %v3965 = vpop.f32.mrf.mxu0
      %v3966 = vadd.f32 %v3917, %v3965
      %3967 = vmatmul.bf16.gmra.mxu0 %v2985
      %v3968 = vpop.f32.mrf.mxu0
      %v3969 = vadd.f32 %v3920, %v3968
      %v3970 = vpop.f32.mrf.mxu0
      %v3971 = vadd.f32 %v3922, %v3970
      %3972 = vmatmul.bf16.gmra.mxu0 %v2989
      %v3973 = vpop.f32.mrf.mxu0
      %v3974 = vadd.f32 %v3925, %v3973
      %v3975 = vpop.f32.mrf.mxu0
      %v3976 = vadd.f32 %v3927, %v3975
      %3977 = vmatmul.bf16.gmra.mxu0 %v2993
      %v3978 = vpop.f32.mrf.mxu0
      %v3979 = vadd.f32 %v3930, %v3978
      %v3980 = vpop.f32.mrf.mxu0
      %v3981 = vadd.f32 %v3932, %v3980
      %3982 = vmatmul.bf16.gmra.mxu0 %v2997
      %v3983 = vpop.f32.mrf.mxu0
      %v3984 = vadd.f32 %v3935, %v3983
      %v3985 = vpop.f32.mrf.mxu0
      %v3986 = vadd.f32 %v3937, %v3985
      %3987 = vmatmul.bf16.gmra.mxu0 %v3001
      %v3988 = vpop.f32.mrf.mxu0
      %v3989 = vadd.f32 %v3940, %v3988
      %v3990 = vpop.f32.mrf.mxu0
      %v3991 = vadd.f32 %v3942, %v3990
      %3992 = vmatmul.bf16.gmra.mxu0 %v3005
      %v3993 = vpop.f32.mrf.mxu0
      %v3994 = vadd.f32 %v3945, %v3993
      %v3995 = vpop.f32.mrf.mxu0
      %v3996 = vadd.f32 %v3947, %v3995
      %3997 = vdwg.mxu0
      %3998 = vmatpush.bf16.msra.mxu0 %v3557
      %3999 = vmatpush.bf16.msra.mxu0 %v3554
      %4000 = vmatpush.bf16.msra.mxu0 %v3551
      %4001 = vmatpush.bf16.msra.mxu0 %v3548
      %4002 = vmatpush.bf16.msra.mxu0 %v3545
      %4003 = vmatpush.bf16.msra.mxu0 %v3542
      %4004 = vmatpush.bf16.msra.mxu0 %v3539
      %4005 = vmatpush.bf16.msra.mxu0 %v3536
      %4006 = vmatmul.bf16.gmra.mxu0 %v2978
      %v4007 = vpop.f32.mrf.mxu0
      %v4008 = vadd.f32 %v3959, %v4007
      %v4009 = vpop.f32.mrf.mxu0
      %v4010 = vadd.f32 %v3961, %v4009
      %4011 = vmatmul.bf16.gmra.mxu0 %v2982
      %v4012 = vpop.f32.mrf.mxu0
      %v4013 = vadd.f32 %v3964, %v4012
      %v4014 = vpop.f32.mrf.mxu0
      %v4015 = vadd.f32 %v3966, %v4014
      %4016 = vmatmul.bf16.gmra.mxu0 %v2986
      %v4017 = vpop.f32.mrf.mxu0
      %v4018 = vadd.f32 %v3969, %v4017
      %v4019 = vpop.f32.mrf.mxu0
      %v4020 = vadd.f32 %v3971, %v4019
      %4021 = vmatmul.bf16.gmra.mxu0 %v2990
      %v4022 = vpop.f32.mrf.mxu0
      %v4023 = vadd.f32 %v3974, %v4022
      %v4024 = vpop.f32.mrf.mxu0
      %v4025 = vadd.f32 %v3976, %v4024
      %4026 = vmatmul.bf16.gmra.mxu0 %v2994
      %v4027 = vpop.f32.mrf.mxu0
      %v4028 = vadd.f32 %v3979, %v4027
      %v4029 = vpop.f32.mrf.mxu0
      %v4030 = vadd.f32 %v3981, %v4029
      %4031 = vmatmul.bf16.gmra.mxu0 %v2998
      %v4032 = vpop.f32.mrf.mxu0
      %v4033 = vadd.f32 %v3984, %v4032
      %v4034 = vpop.f32.mrf.mxu0
      %v4035 = vadd.f32 %v3986, %v4034
      %4036 = vmatmul.bf16.gmra.mxu0 %v3002
      %v4037 = vpop.f32.mrf.mxu0
      %v4038 = vadd.f32 %v3989, %v4037
      %v4039 = vpop.f32.mrf.mxu0
      %v4040 = vadd.f32 %v3991, %v4039
      %4041 = vmatmul.bf16.gmra.mxu0 %v3006
      %v4042 = vpop.f32.mrf.mxu0
      %v4043 = vadd.f32 %v3994, %v4042
      %v4044 = vpop.f32.mrf.mxu0
      %v4045 = vadd.f32 %v3996, %v4044
      %4046 = vdwg.mxu0
      %4047 = vmatpush.bf16.msra.mxu0 %v3486
      %4048 = vmatpush.bf16.msra.mxu0 %v3483
      %4049 = vmatpush.bf16.msra.mxu0 %v3480
      %4050 = vmatpush.bf16.msra.mxu0 %v3477
      %4051 = vmatpush.bf16.msra.mxu0 %v3474
      %4052 = vmatpush.bf16.msra.mxu0 %v3471
      %4053 = vmatpush.bf16.msra.mxu0 %v3468
      %4054 = vmatpush.bf16.msra.mxu0 %v3465
      %4055 = vmatmul.bf16.gmra.mxu0 %v2975
      %v4056 = vpop.f32.mrf.mxu0
      %v4057 = vadd.f32 %v3139, %v4056
      %v4058 = vpop.f32.mrf.mxu0
      %v4059 = vadd.f32 %v3139, %v4058
      %4060 = vmatmul.bf16.gmra.mxu0 %v2979
      %v4061 = vpop.f32.mrf.mxu0
      %v4062 = vadd.f32 %v3139, %v4061
      %v4063 = vpop.f32.mrf.mxu0
      %v4064 = vadd.f32 %v3139, %v4063
      %4065 = vmatmul.bf16.gmra.mxu0 %v2983
      %v4066 = vpop.f32.mrf.mxu0
      %v4067 = vadd.f32 %v3139, %v4066
      %v4068 = vpop.f32.mrf.mxu0
      %v4069 = vadd.f32 %v3139, %v4068
      %4070 = vmatmul.bf16.gmra.mxu0 %v2987
      %v4071 = vpop.f32.mrf.mxu0
      %v4072 = vadd.f32 %v3139, %v4071
      %v4073 = vpop.f32.mrf.mxu0
      %v4074 = vadd.f32 %v3139, %v4073
      %4075 = vmatmul.bf16.gmra.mxu0 %v2991
      %v4076 = vpop.f32.mrf.mxu0
      %v4077 = vadd.f32 %v3139, %v4076
      %v4078 = vpop.f32.mrf.mxu0
      %v4079 = vadd.f32 %v3139, %v4078
      %4080 = vmatmul.bf16.gmra.mxu0 %v2995
      %v4081 = vpop.f32.mrf.mxu0
      %v4082 = vadd.f32 %v3139, %v4081
      %v4083 = vpop.f32.mrf.mxu0
      %v4084 = vadd.f32 %v3139, %v4083
      %4085 = vmatmul.bf16.gmra.mxu0 %v2999
      %v4086 = vpop.f32.mrf.mxu0
      %v4087 = vadd.f32 %v3139, %v4086
      %v4088 = vpop.f32.mrf.mxu0
      %v4089 = vadd.f32 %v3139, %v4088
      %4090 = vmatmul.bf16.gmra.mxu0 %v3003
      %v4091 = vpop.f32.mrf.mxu0
      %v4092 = vadd.f32 %v3139, %v4091
      %v4093 = vpop.f32.mrf.mxu0
      %v4094 = vadd.f32 %v3139, %v4093
      %4095 = vdwg.mxu0
      %4096 = vmatpush.bf16.msra.mxu0 %v3510
      %4097 = vmatpush.bf16.msra.mxu0 %v3507
      %4098 = vmatpush.bf16.msra.mxu0 %v3504
      %4099 = vmatpush.bf16.msra.mxu0 %v3501
      %4100 = vmatpush.bf16.msra.mxu0 %v3498
      %4101 = vmatpush.bf16.msra.mxu0 %v3495
      %4102 = vmatpush.bf16.msra.mxu0 %v3492
      %4103 = vmatpush.bf16.msra.mxu0 %v3489
      %4104 = vmatmul.bf16.gmra.mxu0 %v2976
      %v4105 = vpop.f32.mrf.mxu0
      %v4106 = vadd.f32 %v4057, %v4105
      %v4107 = vpop.f32.mrf.mxu0
      %v4108 = vadd.f32 %v4059, %v4107
      %4109 = vmatmul.bf16.gmra.mxu0 %v2980
      %v4110 = vpop.f32.mrf.mxu0
      %v4111 = vadd.f32 %v4062, %v4110
      %v4112 = vpop.f32.mrf.mxu0
      %v4113 = vadd.f32 %v4064, %v4112
      %4114 = vmatmul.bf16.gmra.mxu0 %v2984
      %v4115 = vpop.f32.mrf.mxu0
      %v4116 = vadd.f32 %v4067, %v4115
      %v4117 = vpop.f32.mrf.mxu0
      %v4118 = vadd.f32 %v4069, %v4117
      %4119 = vmatmul.bf16.gmra.mxu0 %v2988
      %v4120 = vpop.f32.mrf.mxu0
      %v4121 = vadd.f32 %v4072, %v4120
      %v4122 = vpop.f32.mrf.mxu0
      %v4123 = vadd.f32 %v4074, %v4122
      %4124 = vmatmul.bf16.gmra.mxu0 %v2992
      %v4125 = vpop.f32.mrf.mxu0
      %v4126 = vadd.f32 %v4077, %v4125
      %v4127 = vpop.f32.mrf.mxu0
      %v4128 = vadd.f32 %v4079, %v4127
      %4129 = vmatmul.bf16.gmra.mxu0 %v2996
      %v4130 = vpop.f32.mrf.mxu0
      %v4131 = vadd.f32 %v4082, %v4130
      %v4132 = vpop.f32.mrf.mxu0
      %v4133 = vadd.f32 %v4084, %v4132
      %4134 = vmatmul.bf16.gmra.mxu0 %v3000
      %v4135 = vpop.f32.mrf.mxu0
      %v4136 = vadd.f32 %v4087, %v4135
      %v4137 = vpop.f32.mrf.mxu0
      %v4138 = vadd.f32 %v4089, %v4137
      %4139 = vmatmul.bf16.gmra.mxu0 %v3004
      %v4140 = vpop.f32.mrf.mxu0
      %v4141 = vadd.f32 %v4092, %v4140
      %v4142 = vpop.f32.mrf.mxu0
      %v4143 = vadd.f32 %v4094, %v4142
      %4144 = vdwg.mxu0
      %4145 = vmatpush.bf16.msra.mxu0 %v3534
      %4146 = vmatpush.bf16.msra.mxu0 %v3531
      %4147 = vmatpush.bf16.msra.mxu0 %v3528
      %4148 = vmatpush.bf16.msra.mxu0 %v3525
      %4149 = vmatpush.bf16.msra.mxu0 %v3522
      %4150 = vmatpush.bf16.msra.mxu0 %v3519
      %4151 = vmatpush.bf16.msra.mxu0 %v3516
      %4152 = vmatpush.bf16.msra.mxu0 %v3513
      %4153 = vmatmul.bf16.gmra.mxu0 %v2977
      %v4154 = vpop.f32.mrf.mxu0
      %v4155 = vadd.f32 %v4106, %v4154
      %v4156 = vpop.f32.mrf.mxu0
      %v4157 = vadd.f32 %v4108, %v4156
      %4158 = vmatmul.bf16.gmra.mxu0 %v2981
      %v4159 = vpop.f32.mrf.mxu0
      %v4160 = vadd.f32 %v4111, %v4159
      %v4161 = vpop.f32.mrf.mxu0
      %v4162 = vadd.f32 %v4113, %v4161
      %4163 = vmatmul.bf16.gmra.mxu0 %v2985
      %v4164 = vpop.f32.mrf.mxu0
      %v4165 = vadd.f32 %v4116, %v4164
      %v4166 = vpop.f32.mrf.mxu0
      %v4167 = vadd.f32 %v4118, %v4166
      %4168 = vmatmul.bf16.gmra.mxu0 %v2989
      %v4169 = vpop.f32.mrf.mxu0
      %v4170 = vadd.f32 %v4121, %v4169
      %v4171 = vpop.f32.mrf.mxu0
      %v4172 = vadd.f32 %v4123, %v4171
      %4173 = vmatmul.bf16.gmra.mxu0 %v2993
      %v4174 = vpop.f32.mrf.mxu0
      %v4175 = vadd.f32 %v4126, %v4174
      %v4176 = vpop.f32.mrf.mxu0
      %v4177 = vadd.f32 %v4128, %v4176
      %4178 = vmatmul.bf16.gmra.mxu0 %v2997
      %v4179 = vpop.f32.mrf.mxu0
      %v4180 = vadd.f32 %v4131, %v4179
      %v4181 = vpop.f32.mrf.mxu0
      %v4182 = vadd.f32 %v4133, %v4181
      %4183 = vmatmul.bf16.gmra.mxu0 %v3001
      %v4184 = vpop.f32.mrf.mxu0
      %v4185 = vadd.f32 %v4136, %v4184
      %v4186 = vpop.f32.mrf.mxu0
      %v4187 = vadd.f32 %v4138, %v4186
      %4188 = vmatmul.bf16.gmra.mxu0 %v3005
      %v4189 = vpop.f32.mrf.mxu0
      %v4190 = vadd.f32 %v4141, %v4189
      %v4191 = vpop.f32.mrf.mxu0
      %v4192 = vadd.f32 %v4143, %v4191
      %4193 = vdwg.mxu0
      %4194 = vmatpush.bf16.msra.mxu0 %v3558
      %4195 = vmatpush.bf16.msra.mxu0 %v3555
      %4196 = vmatpush.bf16.msra.mxu0 %v3552
      %4197 = vmatpush.bf16.msra.mxu0 %v3549
      %4198 = vmatpush.bf16.msra.mxu0 %v3546
      %4199 = vmatpush.bf16.msra.mxu0 %v3543
      %4200 = vmatpush.bf16.msra.mxu0 %v3540
      %4201 = vmatpush.bf16.msra.mxu0 %v3537
      %4202 = vmatmul.bf16.gmra.mxu0 %v2978
      %v4203 = vpop.f32.mrf.mxu0
      %v4204 = vadd.f32 %v4155, %v4203
      %v4205 = vpop.f32.mrf.mxu0
      %v4206 = vadd.f32 %v4157, %v4205
      %4207 = vmatmul.bf16.gmra.mxu0 %v2982
      %v4208 = vpop.f32.mrf.mxu0
      %v4209 = vadd.f32 %v4160, %v4208
      %v4210 = vpop.f32.mrf.mxu0
      %v4211 = vadd.f32 %v4162, %v4210
      %4212 = vmatmul.bf16.gmra.mxu0 %v2986
      %v4213 = vpop.f32.mrf.mxu0
      %v4214 = vadd.f32 %v4165, %v4213
      %v4215 = vpop.f32.mrf.mxu0
      %v4216 = vadd.f32 %v4167, %v4215
      %4217 = vmatmul.bf16.gmra.mxu0 %v2990
      %v4218 = vpop.f32.mrf.mxu0
      %v4219 = vadd.f32 %v4170, %v4218
      %v4220 = vpop.f32.mrf.mxu0
      %v4221 = vadd.f32 %v4172, %v4220
      %4222 = vmatmul.bf16.gmra.mxu0 %v2994
      %v4223 = vpop.f32.mrf.mxu0
      %v4224 = vadd.f32 %v4175, %v4223
      %v4225 = vpop.f32.mrf.mxu0
      %v4226 = vadd.f32 %v4177, %v4225
      %4227 = vmatmul.bf16.gmra.mxu0 %v2998
      %v4228 = vpop.f32.mrf.mxu0
      %v4229 = vadd.f32 %v4180, %v4228
      %v4230 = vpop.f32.mrf.mxu0
      %v4231 = vadd.f32 %v4182, %v4230
      %4232 = vmatmul.bf16.gmra.mxu0 %v3002
      %v4233 = vpop.f32.mrf.mxu0
      %v4234 = vadd.f32 %v4185, %v4233
      %v4235 = vpop.f32.mrf.mxu0
      %v4236 = vadd.f32 %v4187, %v4235
      %4237 = vmatmul.bf16.gmra.mxu0 %v3006
      %v4238 = vpop.f32.mrf.mxu0
      %v4239 = vadd.f32 %v4190, %v4238
      %v4240 = vpop.f32.mrf.mxu0
      %v4241 = vadd.f32 %v4192, %v4240
      %4242 = vdwg.mxu0
      %v4243 = vtanh.pop %v3812
      %v4244 = vtanh.pop %v4008
      %v4245 = vtanh.pop %v4204
      %v4246 = vtanh.pop %v3814
      %v4247 = vtanh.pop %v4010
      %v4248 = vtanh.pop %v4206
      %v4249 = vtanh.pop %v3817
      %v4250 = vtanh.pop %v4013
      %v4251 = vtanh.pop %v4209
      %v4252 = vtanh.pop %v3819
      %v4253 = vtanh.pop %v4015
      %v4254 = vtanh.pop %v4211
      %v4255 = vtanh.pop %v3822
      %v4256 = vtanh.pop %v4018
      %v4257 = vtanh.pop %v4214
      %v4258 = vtanh.pop %v3824
      %v4259 = vtanh.pop %v4020
      %v4260 = vtanh.pop %v4216
      %v4261 = vtanh.pop %v3827
      %v4262 = vtanh.pop %v4023
      %v4263 = vtanh.pop %v4219
      %v4264 = vtanh.pop %v3829
      %v4265 = vtanh.pop %v4025
      %v4266 = vtanh.pop %v4221
      %v4267 = vtanh.pop %v3832
      %v4268 = vtanh.pop %v4028
      %v4269 = vtanh.pop %v4224
      %v4270 = vtanh.pop %v3834
      %v4271 = vtanh.pop %v4030
      %v4272 = vtanh.pop %v4226
      %v4273 = vtanh.pop %v3837
      %v4274 = vtanh.pop %v4033
      %v4275 = vtanh.pop %v4229
      %v4276 = vtanh.pop %v3839
      %v4277 = vtanh.pop %v4035
      %v4278 = vtanh.pop %v4231
      %v4279 = vtanh.pop %v3842
      %v4280 = vtanh.pop %v4038
      %v4281 = vtanh.pop %v4234
      %v4282 = vtanh.pop %v3844
      %v4283 = vtanh.pop %v4040
      %v4284 = vtanh.pop %v4236
      %v4285 = vtanh.pop %v3847
      %v4286 = vtanh.pop %v4043
      %v4287 = vtanh.pop %v4239
      %v4288 = vtanh.pop %v3849
      %v4289 = vtanh.pop %v4045
      %v4290 = vtanh.pop %v4241
      %v4291 = vpack.c.bf16 %v4246, %v4243
      %v4292 = vpack.c.bf16 %v4247, %v4244
      %v4293 = vpack.c.bf16 %v4248, %v4245
      %v4294 = vpack.c.bf16 %v4252, %v4249
      %v4295 = vpack.c.bf16 %v4253, %v4250
      %v4296 = vpack.c.bf16 %v4254, %v4251
      %v4297 = vpack.c.bf16 %v4258, %v4255
      %v4298 = vpack.c.bf16 %v4259, %v4256
      %v4299 = vpack.c.bf16 %v4260, %v4257
      %v4300 = vpack.c.bf16 %v4264, %v4261
      %v4301 = vpack.c.bf16 %v4265, %v4262
      %v4302 = vpack.c.bf16 %v4266, %v4263
      %v4303 = vpack.c.bf16 %v4270, %v4267
      %v4304 = vpack.c.bf16 %v4271, %v4268
      %v4305 = vpack.c.bf16 %v4272, %v4269
      %v4306 = vpack.c.bf16 %v4276, %v4273
      %v4307 = vpack.c.bf16 %v4277, %v4274
      %v4308 = vpack.c.bf16 %v4278, %v4275
      %v4309 = vpack.c.bf16 %v4282, %v4279
      %v4310 = vpack.c.bf16 %v4283, %v4280
      %v4311 = vpack.c.bf16 %v4284, %v4281
      %v4312 = vpack.c.bf16 %v4288, %v4285
      %v4313 = vpack.c.bf16 %v4289, %v4286
      %v4314 = vpack.c.bf16 %v4290, %v4287
      %v4315 = vld [vmem:[%s5] sm:$0xf]
      %v4316 = vld [vmem:[%s5 + $0x4] sm:$0xf]
      %v4317 = vld [vmem:[%s5 + $0x8] sm:$0xf]
      %v4318 = vld [vmem:[%s5 + $0xc] sm:$0xf]
      %v4319 = vld [vmem:[%s5 + $0x10] sm:$0xf]
      %v4320 = vld [vmem:[%s5 + $0x14] sm:$0xf]
      %v4321 = vld [vmem:[%s5 + $0x18] sm:$0xf]
      %v4322 = vld [vmem:[%s5 + $0x1c] sm:$0xf]
      %v4323 = vld [vmem:[%s5 + $0x20] sm:$0xf]
      %v4324 = vld [vmem:[%s5 + $0x24] sm:$0xf]
      %v4325 = vld [vmem:[%s5 + $0x28] sm:$0xf]
      %v4326 = vld [vmem:[%s5 + $0x2c] sm:$0xf]
      %v4327 = vld [vmem:[%s5 + $0x30] sm:$0xf]
      %v4328 = vld [vmem:[%s5 + $0x34] sm:$0xf]
      %v4329 = vld [vmem:[%s5 + $0x38] sm:$0xf]
      %v4330 = vld [vmem:[%s5 + $0x3c] sm:$0xf]
      %v4331 = vld [vmem:[%s5 + $0x40] sm:$0xf]
      %v4332 = vld [vmem:[%s5 + $0x44] sm:$0xf]
      %v4333 = vld [vmem:[%s5 + $0x48] sm:$0xf]
      %v4334 = vld [vmem:[%s5 + $0x4c] sm:$0xf]
      %v4335 = vld [vmem:[%s5 + $0x50] sm:$0xf]
      %v4336 = vld [vmem:[%s5 + $0x54] sm:$0xf]
      %v4337 = vld [vmem:[%s5 + $0x58] sm:$0xf]
      %v4338 = vld [vmem:[%s5 + $0x5c] sm:$0xf]
      %v4339 = vld [vmem:[%s5 + $0x60] sm:$0xf]
      %v4340 = vld [vmem:[%s5 + $0x64] sm:$0xf]
      %v4341 = vld [vmem:[%s5 + $0x68] sm:$0xf]
      %v4342 = vld [vmem:[%s5 + $0x6c] sm:$0xf]
      %v4343 = vld [vmem:[%s5 + $0x70] sm:$0xf]
      %v4344 = vld [vmem:[%s5 + $0x74] sm:$0xf]
      %v4345 = vld [vmem:[%s5 + $0x78] sm:$0xf]
      %v4346 = vld [vmem:[%s5 + $0x7c] sm:$0xf]
      %v4347 = vld [vmem:[%s5 + $0x80] sm:$0xf]
      %v4348 = vld [vmem:[%s5 + $0x84] sm:$0xf]
      %v4349 = vld [vmem:[%s5 + $0x88] sm:$0xf]
      %v4350 = vld [vmem:[%s5 + $0x8c] sm:$0xf]
      %v4351 = vld [vmem:[%s5 + $0x90] sm:$0xf]
      %v4352 = vld [vmem:[%s5 + $0x94] sm:$0xf]
      %v4353 = vld [vmem:[%s5 + $0x98] sm:$0xf]
      %v4354 = vld [vmem:[%s5 + $0x9c] sm:$0xf]
      %v4355 = vld [vmem:[%s5 + $0xa0] sm:$0xf]
      %v4356 = vld [vmem:[%s5 + $0xa4] sm:$0xf]
      %v4357 = vld [vmem:[%s5 + $0xa8] sm:$0xf]
      %v4358 = vld [vmem:[%s5 + $0xac] sm:$0xf]
      %v4359 = vld [vmem:[%s5 + $0xb0] sm:$0xf]
      %v4360 = vld [vmem:[%s5 + $0xb4] sm:$0xf]
      %v4361 = vld [vmem:[%s5 + $0xb8] sm:$0xf]
      %v4362 = vld [vmem:[%s5 + $0xbc] sm:$0xf]
      %v4363 = vld [vmem:[%s6] sm:$0x1]
      %v4365 = vperm.slane %v4363, 0
      %v4415 = vunpack.c.l.b16 %v4315
      %v4416 = vunpack.c.l.b16 %v4316
      %v4417 = vunpack.c.l.b16 %v4317
      %v4418 = vunpack.c.l.b16 %v4318
      %v4419 = vunpack.c.l.b16 %v4319
      %v4420 = vunpack.c.l.b16 %v4320
      %v4421 = vunpack.c.l.b16 %v4321
      %v4422 = vunpack.c.l.b16 %v4322
      %v4423 = vunpack.c.l.b16 %v4323
      %v4424 = vunpack.c.l.b16 %v4324
      %v4425 = vunpack.c.l.b16 %v4325
      %v4426 = vunpack.c.l.b16 %v4326
      %v4427 = vunpack.c.l.b16 %v4327
      %v4428 = vunpack.c.l.b16 %v4328
      %v4429 = vunpack.c.l.b16 %v4329
      %v4430 = vunpack.c.l.b16 %v4330
      %v4431 = vunpack.c.l.b16 %v4331
      %v4432 = vunpack.c.l.b16 %v4332
      %v4433 = vunpack.c.l.b16 %v4333
      %v4434 = vunpack.c.l.b16 %v4334
      %v4435 = vunpack.c.l.b16 %v4335
      %v4436 = vunpack.c.l.b16 %v4336
      %v4437 = vunpack.c.l.b16 %v4337
      %v4438 = vunpack.c.l.b16 %v4338
      %v4439 = vunpack.c.l.b16 %v4339
      %v4440 = vunpack.c.l.b16 %v4340
      %v4441 = vunpack.c.l.b16 %v4341
      %v4442 = vunpack.c.l.b16 %v4342
      %v4443 = vunpack.c.l.b16 %v4343
      %v4444 = vunpack.c.l.b16 %v4344
      %v4445 = vunpack.c.l.b16 %v4345
      %v4446 = vunpack.c.l.b16 %v4346
      %v4447 = vunpack.c.l.b16 %v4347
      %v4448 = vunpack.c.l.b16 %v4348
      %v4449 = vunpack.c.l.b16 %v4349
      %v4450 = vunpack.c.l.b16 %v4350
      %v4451 = vunpack.c.l.b16 %v4351
      %v4452 = vunpack.c.l.b16 %v4352
      %v4453 = vunpack.c.l.b16 %v4353
      %v4454 = vunpack.c.l.b16 %v4354
      %v4455 = vunpack.c.l.b16 %v4355
      %v4456 = vunpack.c.l.b16 %v4356
      %v4457 = vunpack.c.l.b16 %v4357
      %v4458 = vunpack.c.l.b16 %v4358
      %v4459 = vunpack.c.l.b16 %v4359
      %v4460 = vunpack.c.l.b16 %v4360
      %v4461 = vunpack.c.l.b16 %v4361
      %v4462 = vunpack.c.l.b16 %v4362
      %v4463 = vpack.c.b16 %v4416, %v4415
      %v4464 = vpack.c.b16 %v4418, %v4417
      %v4465 = vpack.c.b16 %v4420, %v4419
      %v4466 = vpack.c.b16 %v4422, %v4421
      %v4467 = vpack.c.b16 %v4424, %v4423
      %v4468 = vpack.c.b16 %v4426, %v4425
      %v4469 = vpack.c.b16 %v4428, %v4427
      %v4470 = vpack.c.b16 %v4430, %v4429
      %v4471 = vpack.c.b16 %v4432, %v4431
      %v4472 = vpack.c.b16 %v4434, %v4433
      %v4473 = vpack.c.b16 %v4436, %v4435
      %v4474 = vpack.c.b16 %v4438, %v4437
      %v4475 = vpack.c.b16 %v4440, %v4439
      %v4476 = vpack.c.b16 %v4442, %v4441
      %v4477 = vpack.c.b16 %v4444, %v4443
      %v4478 = vpack.c.b16 %v4446, %v4445
      %v4479 = vpack.c.b16 %v4448, %v4447
      %v4480 = vpack.c.b16 %v4450, %v4449
      %v4481 = vpack.c.b16 %v4452, %v4451
      %v4482 = vpack.c.b16 %v4454, %v4453
      %v4483 = vpack.c.b16 %v4456, %v4455
      %v4484 = vpack.c.b16 %v4458, %v4457
      %v4485 = vpack.c.b16 %v4460, %v4459
      %v4486 = vpack.c.b16 %v4462, %v4461
      %4511 = vmatpush.bf16.msra.mxu0 %v4470
      %4512 = vmatpush.bf16.msra.mxu0 %v4469
      %4513 = vmatpush.bf16.msra.mxu0 %v4468
      %4514 = vmatpush.bf16.msra.mxu0 %v4467
      %4515 = vmatpush.bf16.msra.mxu0 %v4466
      %4516 = vmatpush.bf16.msra.mxu0 %v4465
      %4517 = vmatpush.bf16.msra.mxu0 %v4464
      %4518 = vmatpush.bf16.msra.mxu0 %v4463
      %4519 = vmatmul.bf16.gmra.mxu0 %v4291
      %v4520 = vpop.f32.mrf.mxu0
      %v4521 = vadd.f32 %v4365, %v4520
      %v4522 = vpop.f32.mrf.mxu0
      %v4523 = vadd.f32 %v4365, %v4522
      %4524 = vmatmul.bf16.gmra.mxu0 %v4294
      %v4525 = vpop.f32.mrf.mxu0
      %v4526 = vadd.f32 %v4365, %v4525
      %v4527 = vpop.f32.mrf.mxu0
      %v4528 = vadd.f32 %v4365, %v4527
      %4529 = vmatmul.bf16.gmra.mxu0 %v4297
      %v4530 = vpop.f32.mrf.mxu0
      %v4531 = vadd.f32 %v4365, %v4530
      %v4532 = vpop.f32.mrf.mxu0
      %v4533 = vadd.f32 %v4365, %v4532
      %4534 = vmatmul.bf16.gmra.mxu0 %v4300
      %v4535 = vpop.f32.mrf.mxu0
      %v4536 = vadd.f32 %v4365, %v4535
      %v4537 = vpop.f32.mrf.mxu0
      %v4538 = vadd.f32 %v4365, %v4537
      %4539 = vmatmul.bf16.gmra.mxu0 %v4303
      %v4540 = vpop.f32.mrf.mxu0
      %v4541 = vadd.f32 %v4365, %v4540
      %v4542 = vpop.f32.mrf.mxu0
      %v4543 = vadd.f32 %v4365, %v4542
      %4544 = vmatmul.bf16.gmra.mxu0 %v4306
      %v4545 = vpop.f32.mrf.mxu0
      %v4546 = vadd.f32 %v4365, %v4545
      %v4547 = vpop.f32.mrf.mxu0
      %v4548 = vadd.f32 %v4365, %v4547
      %4549 = vmatmul.bf16.gmra.mxu0 %v4309
      %v4550 = vpop.f32.mrf.mxu0
      %v4551 = vadd.f32 %v4365, %v4550
      %v4552 = vpop.f32.mrf.mxu0
      %v4553 = vadd.f32 %v4365, %v4552
      %4554 = vmatmul.bf16.gmra.mxu0 %v4312
      %v4555 = vpop.f32.mrf.mxu0
      %v4556 = vadd.f32 %v4365, %v4555
      %v4557 = vpop.f32.mrf.mxu0
      %v4558 = vadd.f32 %v4365, %v4557
      %4559 = vdwg.mxu0
      %4560 = vmatpush.bf16.msra.mxu0 %v4478
      %4561 = vmatpush.bf16.msra.mxu0 %v4477
      %4562 = vmatpush.bf16.msra.mxu0 %v4476
      %4563 = vmatpush.bf16.msra.mxu0 %v4475
      %4564 = vmatpush.bf16.msra.mxu0 %v4474
      %4565 = vmatpush.bf16.msra.mxu0 %v4473
      %4566 = vmatpush.bf16.msra.mxu0 %v4472
      %4567 = vmatpush.bf16.msra.mxu0 %v4471
      %4568 = vmatmul.bf16.gmra.mxu0 %v4292
      %v4569 = vpop.f32.mrf.mxu0
      %v4570 = vadd.f32 %v4521, %v4569
      %v4571 = vpop.f32.mrf.mxu0
      %v4572 = vadd.f32 %v4523, %v4571
      %4573 = vmatmul.bf16.gmra.mxu0 %v4295
      %v4574 = vpop.f32.mrf.mxu0
      %v4575 = vadd.f32 %v4526, %v4574
      %v4576 = vpop.f32.mrf.mxu0
      %v4577 = vadd.f32 %v4528, %v4576
      %4578 = vmatmul.bf16.gmra.mxu0 %v4298
      %v4579 = vpop.f32.mrf.mxu0
      %v4580 = vadd.f32 %v4531, %v4579
      %v4581 = vpop.f32.mrf.mxu0
      %v4582 = vadd.f32 %v4533, %v4581
      %4583 = vmatmul.bf16.gmra.mxu0 %v4301
      %v4584 = vpop.f32.mrf.mxu0
      %v4585 = vadd.f32 %v4536, %v4584
      %v4586 = vpop.f32.mrf.mxu0
      %v4587 = vadd.f32 %v4538, %v4586
      %4588 = vmatmul.bf16.gmra.mxu0 %v4304
      %v4589 = vpop.f32.mrf.mxu0
      %v4590 = vadd.f32 %v4541, %v4589
      %v4591 = vpop.f32.mrf.mxu0
      %v4592 = vadd.f32 %v4543, %v4591
      %4593 = vmatmul.bf16.gmra.mxu0 %v4307
      %v4594 = vpop.f32.mrf.mxu0
      %v4595 = vadd.f32 %v4546, %v4594
      %v4596 = vpop.f32.mrf.mxu0
      %v4597 = vadd.f32 %v4548, %v4596
      %4598 = vmatmul.bf16.gmra.mxu0 %v4310
      %v4599 = vpop.f32.mrf.mxu0
      %v4600 = vadd.f32 %v4551, %v4599
      %v4601 = vpop.f32.mrf.mxu0
      %v4602 = vadd.f32 %v4553, %v4601
      %4603 = vmatmul.bf16.gmra.mxu0 %v4313
      %v4604 = vpop.f32.mrf.mxu0
      %v4605 = vadd.f32 %v4556, %v4604
      %v4606 = vpop.f32.mrf.mxu0
      %v4607 = vadd.f32 %v4558, %v4606
      %4608 = vdwg.mxu0
      %4609 = vmatpush.bf16.msra.mxu0 %v4486
      %4610 = vmatpush.bf16.msra.mxu0 %v4485
      %4611 = vmatpush.bf16.msra.mxu0 %v4484
      %4612 = vmatpush.bf16.msra.mxu0 %v4483
      %4613 = vmatpush.bf16.msra.mxu0 %v4482
      %4614 = vmatpush.bf16.msra.mxu0 %v4481
      %4615 = vmatpush.bf16.msra.mxu0 %v4480
      %4616 = vmatpush.bf16.msra.mxu0 %v4479
      %4617 = vmatmul.bf16.gmra.mxu0 %v4293
      %v4618 = vpop.f32.mrf.mxu0
      %v4619 = vadd.f32 %v4570, %v4618
      %v4620 = vpop.f32.mrf.mxu0
      %v4621 = vadd.f32 %v4572, %v4620
      %4622 = vmatmul.bf16.gmra.mxu0 %v4296
      %v4623 = vpop.f32.mrf.mxu0
      %v4624 = vadd.f32 %v4575, %v4623
      %v4625 = vpop.f32.mrf.mxu0
      %v4626 = vadd.f32 %v4577, %v4625
      %4627 = vmatmul.bf16.gmra.mxu0 %v4299
      %v4628 = vpop.f32.mrf.mxu0
      %v4629 = vadd.f32 %v4580, %v4628
      %v4630 = vpop.f32.mrf.mxu0
      %v4631 = vadd.f32 %v4582, %v4630
      %4632 = vmatmul.bf16.gmra.mxu0 %v4302
      %v4633 = vpop.f32.mrf.mxu0
      %v4634 = vadd.f32 %v4585, %v4633
      %v4635 = vpop.f32.mrf.mxu0
      %v4636 = vadd.f32 %v4587, %v4635
      %4637 = vmatmul.bf16.gmra.mxu0 %v4305
      %v4638 = vpop.f32.mrf.mxu0
      %v4639 = vadd.f32 %v4590, %v4638
      %v4640 = vpop.f32.mrf.mxu0
      %v4641 = vadd.f32 %v4592, %v4640
      %4642 = vmatmul.bf16.gmra.mxu0 %v4308
      %v4643 = vpop.f32.mrf.mxu0
      %v4644 = vadd.f32 %v4595, %v4643
      %v4645 = vpop.f32.mrf.mxu0
      %v4646 = vadd.f32 %v4597, %v4645
      %4647 = vmatmul.bf16.gmra.mxu0 %v4311
      %v4648 = vpop.f32.mrf.mxu0
      %v4649 = vadd.f32 %v4600, %v4648
      %v4650 = vpop.f32.mrf.mxu0
      %v4651 = vadd.f32 %v4602, %v4650
      %4652 = vmatmul.bf16.gmra.mxu0 %v4314
      %v4653 = vpop.f32.mrf.mxu0
      %v4654 = vadd.f32 %v4605, %v4653
      %v4655 = vpop.f32.mrf.mxu0
      %v4656 = vadd.f32 %v4607, %v4655
      %4657 = vdwg.mxu0
      %4658 = vmax.xlane.f32.xlu0 %v4619
      %v4659 = vpop.xlane.xlu0 %4658
      %4660 = vmax.xlane.f32.xlu0 %v4621
      %v4661 = vpop.xlane.xlu0 %4660
      %4662 = vmax.xlane.f32.xlu0 %v4624
      %v4663 = vpop.xlane.xlu0 %4662
      %4664 = vmax.xlane.f32.xlu0 %v4626
      %v4665 = vpop.xlane.xlu0 %4664
      %4666 = vmax.xlane.f32.xlu0 %v4629
      %v4667 = vpop.xlane.xlu0 %4666
      %4668 = vmax.xlane.f32.xlu0 %v4631
      %v4669 = vpop.xlane.xlu0 %4668
      %4670 = vmax.xlane.f32.xlu0 %v4634
      %v4671 = vpop.xlane.xlu0 %4670
      %4672 = vmax.xlane.f32.xlu0 %v4636
      %v4673 = vpop.xlane.xlu0 %4672
      %4674 = vmax.xlane.f32.xlu0 %v4639
      %v4675 = vpop.xlane.xlu0 %4674
      %4676 = vmax.xlane.f32.xlu0 %v4641
      %v4677 = vpop.xlane.xlu0 %4676
      %4678 = vmax.xlane.f32.xlu0 %v4644
      %v4679 = vpop.xlane.xlu0 %4678
      %4680 = vmax.xlane.f32.xlu0 %v4646
      %v4681 = vpop.xlane.xlu0 %4680
      %4682 = vmax.xlane.f32.xlu0 %v4649
      %v4683 = vpop.xlane.xlu0 %4682
      %4684 = vmax.xlane.f32.xlu0 %v4651
      %v4685 = vpop.xlane.xlu0 %4684
      %4686 = vmax.xlane.f32.xlu0 %v4654
      %v4687 = vpop.xlane.xlu0 %4686
      %4688 = vmax.xlane.f32.xlu0 %v4656
      %v4689 = vpop.xlane.xlu0 %4688
      %v4690 = vsub.f32 %v4619, %v4659
      %v4691 = vsub.f32 %v4621, %v4661
      %v4692 = vsub.f32 %v4624, %v4663
      %v4693 = vsub.f32 %v4626, %v4665
      %v4694 = vsub.f32 %v4629, %v4667
      %v4695 = vsub.f32 %v4631, %v4669
      %v4696 = vsub.f32 %v4634, %v4671
      %v4697 = vsub.f32 %v4636, %v4673
      %v4698 = vsub.f32 %v4639, %v4675
      %v4699 = vsub.f32 %v4641, %v4677
      %v4700 = vsub.f32 %v4644, %v4679
      %v4701 = vsub.f32 %v4646, %v4681
      %v4702 = vsub.f32 %v4649, %v4683
      %v4703 = vsub.f32 %v4651, %v4685
      %v4704 = vsub.f32 %v4654, %v4687
      %v4705 = vsub.f32 %v4656, %v4689
      %v4706 = vmul.f32 %v4690, 1.442695
      %v4707 = vpow.pop %v4706
      %v4708 = vmul.f32 %v4691, 1.442695
      %v4709 = vpow.pop %v4708
      %v4710 = vmul.f32 %v4692, 1.442695
      %v4711 = vpow.pop %v4710
      %v4712 = vmul.f32 %v4693, 1.442695
      %v4713 = vpow.pop %v4712
      %v4714 = vmul.f32 %v4694, 1.442695
      %v4715 = vpow.pop %v4714
      %v4716 = vmul.f32 %v4695, 1.442695
      %v4717 = vpow.pop %v4716
      %v4718 = vmul.f32 %v4696, 1.442695
      %v4719 = vpow.pop %v4718
      %v4720 = vmul.f32 %v4697, 1.442695
      %v4721 = vpow.pop %v4720
      %v4722 = vmul.f32 %v4698, 1.442695
      %v4723 = vpow.pop %v4722
      %v4724 = vmul.f32 %v4699, 1.442695
      %v4725 = vpow.pop %v4724
      %v4726 = vmul.f32 %v4700, 1.442695
      %v4727 = vpow.pop %v4726
      %v4728 = vmul.f32 %v4701, 1.442695
      %v4729 = vpow.pop %v4728
      %v4730 = vmul.f32 %v4702, 1.442695
      %v4731 = vpow.pop %v4730
      %v4732 = vmul.f32 %v4703, 1.442695
      %v4733 = vpow.pop %v4732
      %v4734 = vmul.f32 %v4704, 1.442695
      %v4735 = vpow.pop %v4734
      %v4736 = vmul.f32 %v4705, 1.442695
      %v4737 = vpow.pop %v4736
      %4738 = vadd.xlane.f32.xlu0 %v4707
      %v4739 = vpop.xlane.xlu0 %4738
      %4740 = vadd.xlane.f32.xlu0 %v4709
      %v4741 = vpop.xlane.xlu0 %4740
      %4742 = vadd.xlane.f32.xlu0 %v4711
      %v4743 = vpop.xlane.xlu0 %4742
      %4744 = vadd.xlane.f32.xlu0 %v4713
      %v4745 = vpop.xlane.xlu0 %4744
      %4746 = vadd.xlane.f32.xlu0 %v4715
      %v4747 = vpop.xlane.xlu0 %4746
      %4748 = vadd.xlane.f32.xlu0 %v4717
      %v4749 = vpop.xlane.xlu0 %4748
      %4750 = vadd.xlane.f32.xlu0 %v4719
      %v4751 = vpop.xlane.xlu0 %4750
      %4752 = vadd.xlane.f32.xlu0 %v4721
      %v4753 = vpop.xlane.xlu0 %4752
      %4754 = vadd.xlane.f32.xlu0 %v4723
      %v4755 = vpop.xlane.xlu0 %4754
      %4756 = vadd.xlane.f32.xlu0 %v4725
      %v4757 = vpop.xlane.xlu0 %4756
      %4758 = vadd.xlane.f32.xlu0 %v4727
      %v4759 = vpop.xlane.xlu0 %4758
      %4760 = vadd.xlane.f32.xlu0 %v4729
      %v4761 = vpop.xlane.xlu0 %4760
      %4762 = vadd.xlane.f32.xlu0 %v4731
      %v4763 = vpop.xlane.xlu0 %4762
      %4764 = vadd.xlane.f32.xlu0 %v4733
      %v4765 = vpop.xlane.xlu0 %4764
      %4766 = vadd.xlane.f32.xlu0 %v4735
      %v4767 = vpop.xlane.xlu0 %4766
      %4768 = vadd.xlane.f32.xlu0 %v4737
      %v4769 = vpop.xlane.xlu0 %4768
      %v4770 = vrcp.pop %v4739
      %v4771 = vmul.f32 %v4739, %v4770
      %v4772 = vsub.f32 1.0, %v4771
      %v4773 = vmul.f32 %v4770, %v4772
      %v4774 = vadd.f32 %v4770, %v4773
      %vm4775 = vweird.f32 %v4739
      %vm4776 = vweird.f32 %v4770
      %vm4777 = vmor %vm4775, %vm4776
      %v4778 = vsel %vm4777, %v4770, %v4774
      %v4779 = vand.u32 2147483647, %v4739
      %vm4780 = vcmp.eq.f32.partialorder %v4779, 8.507059e+37
      %v4781 = vand.u32 %v4739, 2147483648
      %v4782 = vor.u32 1.1754944e-38, %v4781
      %v4783 = vsel %vm4780, %v4782, %v4778
      %v4784 = vmul.f32 %v4707, %v4783
      %v4785 = vrcp.pop %v4741
      %v4786 = vmul.f32 %v4741, %v4785
      %v4787 = vsub.f32 1.0, %v4786
      %v4788 = vmul.f32 %v4785, %v4787
      %v4789 = vadd.f32 %v4785, %v4788
      %vm4790 = vweird.f32 %v4741
      %vm4791 = vweird.f32 %v4785
      %vm4792 = vmor %vm4790, %vm4791
      %v4793 = vsel %vm4792, %v4785, %v4789
      %v4794 = vand.u32 2147483647, %v4741
      %vm4795 = vcmp.eq.f32.partialorder %v4794, 8.507059e+37
      %v4796 = vand.u32 %v4741, 2147483648
      %v4797 = vor.u32 1.1754944e-38, %v4796
      %v4798 = vsel %vm4795, %v4797, %v4793
      %v4799 = vmul.f32 %v4709, %v4798
      %v4800 = vrcp.pop %v4743
      %v4801 = vmul.f32 %v4743, %v4800
      %v4802 = vsub.f32 1.0, %v4801
      %v4803 = vmul.f32 %v4800, %v4802
      %v4804 = vadd.f32 %v4800, %v4803
      %vm4805 = vweird.f32 %v4743
      %vm4806 = vweird.f32 %v4800
      %vm4807 = vmor %vm4805, %vm4806
      %v4808 = vsel %vm4807, %v4800, %v4804
      %v4809 = vand.u32 2147483647, %v4743
      %vm4810 = vcmp.eq.f32.partialorder %v4809, 8.507059e+37
      %v4811 = vand.u32 %v4743, 2147483648
      %v4812 = vor.u32 1.1754944e-38, %v4811
      %v4813 = vsel %vm4810, %v4812, %v4808
      %v4814 = vmul.f32 %v4711, %v4813
      %v4815 = vrcp.pop %v4745
      %v4816 = vmul.f32 %v4745, %v4815
      %v4817 = vsub.f32 1.0, %v4816
      %v4818 = vmul.f32 %v4815, %v4817
      %v4819 = vadd.f32 %v4815, %v4818
      %vm4820 = vweird.f32 %v4745
      %vm4821 = vweird.f32 %v4815
      %vm4822 = vmor %vm4820, %vm4821
      %v4823 = vsel %vm4822, %v4815, %v4819
      %v4824 = vand.u32 2147483647, %v4745
      %vm4825 = vcmp.eq.f32.partialorder %v4824, 8.507059e+37
      %v4826 = vand.u32 %v4745, 2147483648
      %v4827 = vor.u32 1.1754944e-38, %v4826
      %v4828 = vsel %vm4825, %v4827, %v4823
      %v4829 = vmul.f32 %v4713, %v4828
      %v4830 = vrcp.pop %v4747
      %v4831 = vmul.f32 %v4747, %v4830
      %v4832 = vsub.f32 1.0, %v4831
      %v4833 = vmul.f32 %v4830, %v4832
      %v4834 = vadd.f32 %v4830, %v4833
      %vm4835 = vweird.f32 %v4747
      %vm4836 = vweird.f32 %v4830
      %vm4837 = vmor %vm4835, %vm4836
      %v4838 = vsel %vm4837, %v4830, %v4834
      %v4839 = vand.u32 2147483647, %v4747
      %vm4840 = vcmp.eq.f32.partialorder %v4839, 8.507059e+37
      %v4841 = vand.u32 %v4747, 2147483648
      %v4842 = vor.u32 1.1754944e-38, %v4841
      %v4843 = vsel %vm4840, %v4842, %v4838
      %v4844 = vmul.f32 %v4715, %v4843
      %v4845 = vrcp.pop %v4749
      %v4846 = vmul.f32 %v4749, %v4845
      %v4847 = vsub.f32 1.0, %v4846
      %v4848 = vmul.f32 %v4845, %v4847
      %v4849 = vadd.f32 %v4845, %v4848
      %vm4850 = vweird.f32 %v4749
      %vm4851 = vweird.f32 %v4845
      %vm4852 = vmor %vm4850, %vm4851
      %v4853 = vsel %vm4852, %v4845, %v4849
      %v4854 = vand.u32 2147483647, %v4749
      %vm4855 = vcmp.eq.f32.partialorder %v4854, 8.507059e+37
      %v4856 = vand.u32 %v4749, 2147483648
      %v4857 = vor.u32 1.1754944e-38, %v4856
      %v4858 = vsel %vm4855, %v4857, %v4853
      %v4859 = vmul.f32 %v4717, %v4858
      %v4860 = vrcp.pop %v4751
      %v4861 = vmul.f32 %v4751, %v4860
      %v4862 = vsub.f32 1.0, %v4861
      %v4863 = vmul.f32 %v4860, %v4862
      %v4864 = vadd.f32 %v4860, %v4863
      %vm4865 = vweird.f32 %v4751
      %vm4866 = vweird.f32 %v4860
      %vm4867 = vmor %vm4865, %vm4866
      %v4868 = vsel %vm4867, %v4860, %v4864
      %v4869 = vand.u32 2147483647, %v4751
      %vm4870 = vcmp.eq.f32.partialorder %v4869, 8.507059e+37
      %v4871 = vand.u32 %v4751, 2147483648
      %v4872 = vor.u32 1.1754944e-38, %v4871
      %v4873 = vsel %vm4870, %v4872, %v4868
      %v4874 = vmul.f32 %v4719, %v4873
      %v4875 = vrcp.pop %v4753
      %v4876 = vmul.f32 %v4753, %v4875
      %v4877 = vsub.f32 1.0, %v4876
      %v4878 = vmul.f32 %v4875, %v4877
      %v4879 = vadd.f32 %v4875, %v4878
      %vm4880 = vweird.f32 %v4753
      %vm4881 = vweird.f32 %v4875
      %vm4882 = vmor %vm4880, %vm4881
      %v4883 = vsel %vm4882, %v4875, %v4879
      %v4884 = vand.u32 2147483647, %v4753
      %vm4885 = vcmp.eq.f32.partialorder %v4884, 8.507059e+37
      %v4886 = vand.u32 %v4753, 2147483648
      %v4887 = vor.u32 1.1754944e-38, %v4886
      %v4888 = vsel %vm4885, %v4887, %v4883
      %v4889 = vmul.f32 %v4721, %v4888
      %v4890 = vrcp.pop %v4755
      %v4891 = vmul.f32 %v4755, %v4890
      %v4892 = vsub.f32 1.0, %v4891
      %v4893 = vmul.f32 %v4890, %v4892
      %v4894 = vadd.f32 %v4890, %v4893
      %vm4895 = vweird.f32 %v4755
      %vm4896 = vweird.f32 %v4890
      %vm4897 = vmor %vm4895, %vm4896
      %v4898 = vsel %vm4897, %v4890, %v4894
      %v4899 = vand.u32 2147483647, %v4755
      %vm4900 = vcmp.eq.f32.partialorder %v4899, 8.507059e+37
      %v4901 = vand.u32 %v4755, 2147483648
      %v4902 = vor.u32 1.1754944e-38, %v4901
      %v4903 = vsel %vm4900, %v4902, %v4898
      %v4904 = vmul.f32 %v4723, %v4903
      %v4905 = vrcp.pop %v4757
      %v4906 = vmul.f32 %v4757, %v4905
      %v4907 = vsub.f32 1.0, %v4906
      %v4908 = vmul.f32 %v4905, %v4907
      %v4909 = vadd.f32 %v4905, %v4908
      %vm4910 = vweird.f32 %v4757
      %vm4911 = vweird.f32 %v4905
      %vm4912 = vmor %vm4910, %vm4911
      %v4913 = vsel %vm4912, %v4905, %v4909
      %v4914 = vand.u32 2147483647, %v4757
      %vm4915 = vcmp.eq.f32.partialorder %v4914, 8.507059e+37
      %v4916 = vand.u32 %v4757, 2147483648
      %v4917 = vor.u32 1.1754944e-38, %v4916
      %v4918 = vsel %vm4915, %v4917, %v4913
      %v4919 = vmul.f32 %v4725, %v4918
      %v4920 = vrcp.pop %v4759
      %v4921 = vmul.f32 %v4759, %v4920
      %v4922 = vsub.f32 1.0, %v4921
      %v4923 = vmul.f32 %v4920, %v4922
      %v4924 = vadd.f32 %v4920, %v4923
      %vm4925 = vweird.f32 %v4759
      %vm4926 = vweird.f32 %v4920
      %vm4927 = vmor %vm4925, %vm4926
      %v4928 = vsel %vm4927, %v4920, %v4924
      %v4929 = vand.u32 2147483647, %v4759
      %vm4930 = vcmp.eq.f32.partialorder %v4929, 8.507059e+37
      %v4931 = vand.u32 %v4759, 2147483648
      %v4932 = vor.u32 1.1754944e-38, %v4931
      %v4933 = vsel %vm4930, %v4932, %v4928
      %v4934 = vmul.f32 %v4727, %v4933
      %v4935 = vrcp.pop %v4761
      %v4936 = vmul.f32 %v4761, %v4935
      %v4937 = vsub.f32 1.0, %v4936
      %v4938 = vmul.f32 %v4935, %v4937
      %v4939 = vadd.f32 %v4935, %v4938
      %vm4940 = vweird.f32 %v4761
      %vm4941 = vweird.f32 %v4935
      %vm4942 = vmor %vm4940, %vm4941
      %v4943 = vsel %vm4942, %v4935, %v4939
      %v4944 = vand.u32 2147483647, %v4761
      %vm4945 = vcmp.eq.f32.partialorder %v4944, 8.507059e+37
      %v4946 = vand.u32 %v4761, 2147483648
      %v4947 = vor.u32 1.1754944e-38, %v4946
      %v4948 = vsel %vm4945, %v4947, %v4943
      %v4949 = vmul.f32 %v4729, %v4948
      %v4950 = vrcp.pop %v4763
      %v4951 = vmul.f32 %v4763, %v4950
      %v4952 = vsub.f32 1.0, %v4951
      %v4953 = vmul.f32 %v4950, %v4952
      %v4954 = vadd.f32 %v4950, %v4953
      %vm4955 = vweird.f32 %v4763
      %vm4956 = vweird.f32 %v4950
      %vm4957 = vmor %vm4955, %vm4956
      %v4958 = vsel %vm4957, %v4950, %v4954
      %v4959 = vand.u32 2147483647, %v4763
      %vm4960 = vcmp.eq.f32.partialorder %v4959, 8.507059e+37
      %v4961 = vand.u32 %v4763, 2147483648
      %v4962 = vor.u32 1.1754944e-38, %v4961
      %v4963 = vsel %vm4960, %v4962, %v4958
      %v4964 = vmul.f32 %v4731, %v4963
      %v4965 = vrcp.pop %v4765
      %v4966 = vmul.f32 %v4765, %v4965
      %v4967 = vsub.f32 1.0, %v4966
      %v4968 = vmul.f32 %v4965, %v4967
      %v4969 = vadd.f32 %v4965, %v4968
      %vm4970 = vweird.f32 %v4765
      %vm4971 = vweird.f32 %v4965
      %vm4972 = vmor %vm4970, %vm4971
      %v4973 = vsel %vm4972, %v4965, %v4969
      %v4974 = vand.u32 2147483647, %v4765
      %vm4975 = vcmp.eq.f32.partialorder %v4974, 8.507059e+37
      %v4976 = vand.u32 %v4765, 2147483648
      %v4977 = vor.u32 1.1754944e-38, %v4976
      %v4978 = vsel %vm4975, %v4977, %v4973
      %v4979 = vmul.f32 %v4733, %v4978
      %v4980 = vrcp.pop %v4767
      %v4981 = vmul.f32 %v4767, %v4980
      %v4982 = vsub.f32 1.0, %v4981
      %v4983 = vmul.f32 %v4980, %v4982
      %v4984 = vadd.f32 %v4980, %v4983
      %vm4985 = vweird.f32 %v4767
      %vm4986 = vweird.f32 %v4980
      %vm4987 = vmor %vm4985, %vm4986
      %v4988 = vsel %vm4987, %v4980, %v4984
      %v4989 = vand.u32 2147483647, %v4767
      %vm4990 = vcmp.eq.f32.partialorder %v4989, 8.507059e+37
      %v4991 = vand.u32 %v4767, 2147483648
      %v4992 = vor.u32 1.1754944e-38, %v4991
      %v4993 = vsel %vm4990, %v4992, %v4988
      %v4994 = vmul.f32 %v4735, %v4993
      %v4995 = vrcp.pop %v4769
      %v4996 = vmul.f32 %v4769, %v4995
      %v4997 = vsub.f32 1.0, %v4996
      %v4998 = vmul.f32 %v4995, %v4997
      %v4999 = vadd.f32 %v4995, %v4998
      %vm5000 = vweird.f32 %v4769
      %vm5001 = vweird.f32 %v4995
      %vm5002 = vmor %vm5000, %vm5001
      %v5003 = vsel %vm5002, %v4995, %v4999
      %v5004 = vand.u32 2147483647, %v4769
      %vm5005 = vcmp.eq.f32.partialorder %v5004, 8.507059e+37
      %v5006 = vand.u32 %v4769, 2147483648
      %v5007 = vor.u32 1.1754944e-38, %v5006
      %v5008 = vsel %vm5005, %v5007, %v5003
      %v5009 = vmul.f32 %v4737, %v5008
      %5010 = vst [vmem:[%s283] sm:$0xff] %v4784
      %5011 = vst [vmem:[%s283 + $0x8] sm:$0xff] %v4799
      %5012 = vst [vmem:[%s283 + $0x10] sm:$0xff] %v4814
      %5013 = vst [vmem:[%s283 + $0x18] sm:$0xff] %v4829
      %5014 = vst [vmem:[%s283 + $0x20] sm:$0xff] %v4844
      %5015 = vst [vmem:[%s283 + $0x28] sm:$0xff] %v4859
      %5016 = vst [vmem:[%s283 + $0x30] sm:$0xff] %v4874
      %5017 = vst [vmem:[%s283 + $0x38] sm:$0xff] %v4889
      %5018 = vst [vmem:[%s283 + $0x40] sm:$0xff] %v4904
      %5019 = vst [vmem:[%s283 + $0x48] sm:$0xff] %v4919
      %5020 = vst [vmem:[%s283 + $0x50] sm:$0xff] %v4934
      %5021 = vst [vmem:[%s283 + $0x58] sm:$0xff] %v4949
      %5022 = vst [vmem:[%s283 + $0x60] sm:$0xff] %v4964
      %5023 = vst [vmem:[%s283 + $0x68] sm:$0xff] %v4979
      %5024 = vst [vmem:[%s283 + $0x70] sm:$0xff] %v4994
      %5025 = vst [vmem:[%s283 + $0x78] sm:$0xff] %v5009
      %s5026 = smul.u32 16, %s18
      %p5027 = scmp.lt.s32.totalorder %s5026, 63
      %s5028 = scalar_select %p5027, %s5026, 63
      %s5029 = smul.addr %s5028, 8
      %s5030 = scalar_lea.vmem %s7, %s5029
      // Predicated region
      $region49: #{word2vec_forward.1} parent=47 // pred_check
        %p5031 = pneg %p188
      $region50: #{word2vec_forward.1} parent=47 // pred_check_branch
        %5033 = sbr.rel (%p5031) target = $region52
      $region51: #{word2vec_forward.1} parent=47 // pred_region
        %s5034 = smul.u32 16, %s18
      $region52: #{word2vec_forward.1} parent=47 // pred_fallthru
        _
    $region48: #{word2vec_forward.1} parent=5 // pred_fallthru
      _
    %p5035 = scmp.le.s32.totalorder 2, %s13
    // Predicated region
    $region53: #{word2vec_forward.1} parent=5 // pred_check
      %p5036 = pneg %p5035
    $region54: #{word2vec_forward.1} parent=5 // pred_check_branch
      %5038 = sbr.rel (%p5036) target = $region56
    $region55: #{word2vec_forward.1} parent=5 // pred_region
      %s5039 = ssub.s32 %s13, 2
      // Predicated region
      $region57: #{word2vec_forward.1} parent=55 // pred_check
        %p5040 = pneg %p194
      $region58: #{word2vec_forward.1} parent=55 // pred_check_branch
        %5042 = sbr.rel (%p5040) target = $region60
      $region59: #{word2vec_forward.1} parent=55 // pred_region
        %s5043 = smul.u32 16, %s19
        %p5044 = scmp.lt.s32.totalorder %s5043, 63
        %s5045 = scalar_select %p5044, %s5043, 63
        %s5046 = smul.addr %s5045, 8
        %s5047 = scalar_lea.vmem %s7, %s5046
      $region60: #{word2vec_forward.1} parent=55 // pred_fallthru
        _
    $region56: #{word2vec_forward.1} parent=5 // pred_fallthru
      _
  $region6: #{word2vec_forward.1} parent=0 // loop_footer
    %s17 = sadd.s32 1, %s13
  $region7: #{word2vec_forward.1} parent=0 // loop_footer_branch
    %12 = sbr.rel target = $region3
  $region8: #{word2vec_forward.1} parent=0 // loop_exit
    _

</llo_original>
